<compile_context>
chip_gen: v7x
topology: tpu7x:2x2x1
jax: 0.10.0
libtpu: 0.0.40
codegen_flags: <defaults>
</compile_context>

<pallas_src>
import functools

import jax
import jax.numpy as jnp
from jax import lax
from jax.experimental import pallas as pl
from jax.experimental.pallas import tpu as pltpu

HIDDEN = 512     # head hidden width (module constant)
SLAB = 128       # lane-dense output slab: [probs(n_actions) | value | zeros]

# conv config: nn.Conv2d(C,32,8,4), nn.Conv2d(32,64,4,2), nn.Conv2d(64,64,3,1)
K1, S1, C1 = 8, 4, 32
K2, S2, C2 = 4, 2, 64
K3, S3, C3 = 3, 1, 64

_CompilerParams = getattr(pltpu, "CompilerParams", None)
if _CompilerParams is None:               # older jax fallback
    _CompilerParams = getattr(pltpu, "TPUCompilerParams")


# -----------------------------------------------------------------------------
# Fused Pallas kernel (one batch block per grid step)
# -----------------------------------------------------------------------------
def _a2c_kernel(
    p1_ref,                # (H1*W1*Bblk, 8*8*Cin) bf16  conv1 im2col patches,
                           #   rows ordered (h1, w1 % 2, w1 // 2, b)
    w1_ref, b1_ref,        # (8*8*Cin, 32) bf16, (1, 32) f32
    w2_ref, b2_ref,        # (4*4*32, 64)  bf16, (1, 64) f32   rows (kh, kw, c1)
    w3_ref, b3_ref,        # (3*3*64, 64)  bf16, (1, 64) f32   rows (kh, kw, c2)
    wh1_ref, bh1_ref,      # (F, 2*HIDDEN) bf16, (1, 2*HIDDEN) f32  [policy fc1 | value fc1]
    wh2_ref, bh2_ref,      # (2*HIDDEN, SLAB) bf16 block-diag, (1, SLAB) f32
    out_ref,               # (Bblk, SLAB) f32
    a1_ref,                # scratch (H1*W1*Bblk, 32) f32   conv1 act, rows (h1, w%2, w//2, b)
    p2_ref,                # scratch (H2*W2*Bblk, 512) bf16 conv2 im2col patches
    a2_ref,                # scratch (H2*W2*Bblk, 64)  f32  conv2 act, rows (h2, w2, b)
    p3_ref,                # scratch (H3*W3*Bblk, 576) bf16 conv3 im2col patches
    a3_ref,                # scratch (H3*W3*Bblk, 64)  f32  conv3 act, rows (h3, w3, b)
    feat_ref,              # scratch (Bblk, H3*W3*64)  bf16 flattened features
    *, Bblk, W1, H2, W2, H3, W3, n_actions,
):
    f32, bf16 = jnp.float32, jnp.bfloat16
    W1h = W1 // 2

    # ---- conv1: ONE big im2col matmul (patches built in the wrapper) -----------
    y1 = jnp.dot(p1_ref[...], w1_ref[...], preferred_element_type=f32) + b1_ref[...]
    a1_ref[...] = jnp.maximum(y1, 0.0)
    # a1 row order (h1, w1 % 2, w1 // 2, b): the w-phase split makes every stride-2
    # conv2 tap below a single contiguous slice.

    # ---- conv2: in-kernel im2col gather (contiguous slices) + ONE matmul -------
    def gather2(oh, carry):
        for kh in range(K2):
            for kw in range(K2):
                src = ((S2 * oh + kh) * W1 + (kw % 2) * W1h + kw // 2) * Bblk
                col = (kh * K2 + kw) * C1
                p2_ref[pl.ds(oh * W2 * Bblk, W2 * Bblk), col:col + C1] = (
                    a1_ref[pl.ds(src, W2 * Bblk), :].astype(bf16))
        return carry
    lax.fori_loop(0, H2, gather2, 0)

    y2 = jnp.dot(p2_ref[...], w2_ref[...], preferred_element_type=f32) + b2_ref[...]
    a2_ref[...] = jnp.maximum(y2, 0.0)                     # rows (h2, w2, b)

    # ---- conv3 (stride 1): in-kernel im2col gather + ONE matmul ----------------
    def gather3(oh, carry):
        for kh in range(K3):
            for kw in range(K3):
                src = ((oh + kh) * W2 + kw) * Bblk
                col = (kh * K3 + kw) * C2
                p3_ref[pl.ds(oh * W3 * Bblk, W3 * Bblk), col:col + C2] = (
                    a2_ref[pl.ds(src, W3 * Bblk), :].astype(bf16))
        return carry
    lax.fori_loop(0, H3, gather3, 0)

    y3 = jnp.dot(p3_ref[...], w3_ref[...], preferred_element_type=f32) + b3_ref[...]
    a3_ref[...] = jnp.maximum(y3, 0.0)                     # rows (h3, w3, b)

    # ---- features: (pos, b) rows -> (b, pos*C3) via static lane-offset stores ---
    for pos in range(H3 * W3):
        feat_ref[:, pos * C3:(pos + 1) * C3] = (
            a3_ref[pl.ds(pos * Bblk, Bblk), :].astype(bf16))

    # ---- heads: policy/value fc1 fused; fc2 block-diagonal lane-dense slab ------
    h = jnp.dot(feat_ref[...], wh1_ref[...], preferred_element_type=f32) + bh1_ref[...]
    h = jnp.maximum(h, 0.0).astype(bf16)                   # (Bblk, 2*HIDDEN)
    out = jnp.dot(h, wh2_ref[...], preferred_element_type=f32) + bh2_ref[...]
    # lanes [0, n_actions) = policy logits, lane n_actions = value, rest = 0

    lane = lax.broadcasted_iota(jnp.int32, out.shape, dimension=1)
    is_logit = lane < n_actions
    logits = jnp.where(is_logit, out, -1e30)               # finite mask (no NaN risk)
    m = jnp.max(logits, axis=-1, keepdims=True)
    e = jnp.where(is_logit, jnp.exp(logits - m), 0.0)
    s = jnp.sum(e, axis=-1, keepdims=True)
    probs = e / s
    out_ref[...] = jnp.where(is_logit, probs, out).astype(out_ref.dtype)


# -----------------------------------------------------------------------------
# Wrapper glue
# -----------------------------------------------------------------------------
def _im2col_nhwc(x, k, s):
    """(B,H,W,C) -> (B,Ho,Wo,k*k*C); feature order (kh, kw, c)."""
    _, h, w, _ = x.shape
    ho = (h - k) // s + 1
    wo = (w - k) // s + 1
    cols = []
    for kh in range(k):
        for kw in range(k):
            cols.append(x[:, kh:kh + s * (ho - 1) + 1:s, kw:kw + s * (wo - 1) + 1:s, :])
    return jnp.concatenate(cols, axis=-1), ho, wo


def init_params(key, in_channels, conv_out_size, n_actions):
    ks = jax.random.split(key, 14)
    def w(k, shape, scale=0.05):
        return (scale * jax.random.normal(k, shape)).astype(jnp.float32)
    p = {}
    # conv weights stored as (kh*kw*Cin, Cout) matching im2col feature order
    p["cw1"] = w(ks[0], (K1 * K1 * in_channels, C1)); p["cb1"] = w(ks[1], (1, C1))
    p["cw2"] = w(ks[2], (K2 * K2 * C1, C2));          p["cb2"] = w(ks[3], (1, C2))
    p["cw3"] = w(ks[4], (K3 * K3 * C2, C3));          p["cb3"] = w(ks[5], (1, C3))
    # heads: (in, out) layout
    p["wp1"] = w(ks[6], (conv_out_size, HIDDEN));     p["bp1"] = w(ks[7], (1, HIDDEN))
    p["wp2"] = w(ks[8], (HIDDEN, n_actions));         p["bp2"] = w(ks[9], (1, n_actions))
    p["wv1"] = w(ks[10], (conv_out_size, HIDDEN));    p["bv1"] = w(ks[11], (1, HIDDEN))
    p["wv2"] = w(ks[12], (HIDDEN, 1));                p["bv2"] = w(ks[13], (1, 1))
    return p


def atari_a2c_forward(state_nchw, params, n_actions, *, block_b=16):
    """Returns (policy_probs, value); probs parameterize the Categorical."""
    x = jnp.transpose(state_nchw.astype(jnp.float32), (0, 2, 3, 1))   # NCHW -> NHWC
    B = x.shape[0]
    assert B % block_b == 0, "batch must be divisible by the batch block"
    nb = B // block_b

    patches, H1, W1 = _im2col_nhwc(x, K1, S1)           # (B, H1, W1, 8*8*Cin)
    assert W1 % 2 == 0, "conv1 output width must be even for the stride-2 phase split"
    H2, W2 = (H1 - K2) // S2 + 1, (W1 - K2) // S2 + 1
    H3, W3 = (H2 - K3) // S3 + 1, (W2 - K3) // S3 + 1
    F = H3 * W3 * C3
    Kin1 = patches.shape[-1]
    W1h = W1 // 2
    R1 = H1 * W1 * block_b

    # rows per batch block ordered (h1, w1 % 2, w1 // 2, b)  (w-phase split for conv2)
    p1 = patches.reshape(nb, block_b, H1, W1h, 2, Kin1)
    p1 = jnp.transpose(p1, (0, 2, 4, 3, 1, 5)).reshape(nb * R1, Kin1)
    p1 = p1.astype(jnp.bfloat16)

    bf = lambda a: a.astype(jnp.bfloat16)
    # heads: fc1 layers fused; fc2 layers block-diagonal, zero-padded to SLAB lanes
    assert n_actions + 1 <= SLAB
    wh1 = bf(jnp.concatenate([params["wp1"], params["wv1"]], axis=1))   # (F, 2*HIDDEN)
    bh1 = jnp.concatenate([params["bp1"], params["bv1"]], axis=1)       # (1, 2*HIDDEN)
    wh2 = jnp.zeros((2 * HIDDEN, SLAB), jnp.float32)
    wh2 = wh2.at[:HIDDEN, :n_actions].set(params["wp2"])
    wh2 = wh2.at[HIDDEN:, n_actions:n_actions + 1].set(params["wv2"])
    wh2 = bf(wh2)
    bh2 = jnp.zeros((1, SLAB), jnp.float32)
    bh2 = bh2.at[:, :n_actions].set(params["bp2"])
    bh2 = bh2.at[:, n_actions:n_actions + 1].set(params["bv2"])

    in_arrays = [bf(params["cw1"]), params["cb1"],
                 bf(params["cw2"]), params["cb2"],
                 bf(params["cw3"]), params["cb3"],
                 wh1, bh1, wh2, bh2]
    full = lambda a: pl.BlockSpec(a.shape, lambda i: (0, 0))

    kernel = functools.partial(
        _a2c_kernel, Bblk=block_b, W1=W1, H2=H2, W2=W2, H3=H3, W3=W3,
        n_actions=n_actions)

    out = pl.pallas_call(
        kernel,
        out_shape=jax.ShapeDtypeStruct((B, SLAB), jnp.float32),
        grid=(nb,),
        in_specs=[pl.BlockSpec((R1, Kin1), lambda i: (i, 0))] + [full(a) for a in in_arrays],
        out_specs=pl.BlockSpec((block_b, SLAB), lambda i: (i, 0)),
        scratch_shapes=[
            pltpu.VMEM((H1 * W1 * block_b, C1), jnp.float32),             # a1
            pltpu.VMEM((H2 * W2 * block_b, K2 * K2 * C1), jnp.bfloat16),  # p2
            pltpu.VMEM((H2 * W2 * block_b, C2), jnp.float32),             # a2
            pltpu.VMEM((H3 * W3 * block_b, K3 * K3 * C2), jnp.bfloat16),  # p3
            pltpu.VMEM((H3 * W3 * block_b, C3), jnp.float32),             # a3
            pltpu.VMEM((block_b, F), jnp.bfloat16),                       # feat
        ],
        compiler_params=_CompilerParams(dimension_semantics=("parallel",)),
    )(p1, *in_arrays)

    probs = out[:, :n_actions]
    value = out[:, n_actions:n_actions + 1]
    return probs, value


# -----------------------------------------------------------------------------
# Pure-JAX reference (f32) for correctness check
# -----------------------------------------------------------------------------
def _reference(state_nchw, params, n_actions):
    x = jnp.transpose(state_nchw.astype(jnp.float32), (0, 2, 3, 1))

    def conv(xx, wm, b, k, s, cout):
        p, ho, wo = _im2col_nhwc(xx, k, s)
        y = jnp.maximum(p.reshape(-1, p.shape[-1]) @ wm + b, 0.0)
        return y.reshape(xx.shape[0], ho, wo, cout)

    x = conv(x, params["cw1"], params["cb1"], K1, S1, C1)
    x = conv(x, params["cw2"], params["cb2"], K2, S2, C2)
    x = conv(x, params["cw3"], params["cb3"], K3, S3, C3)
    feat = x.reshape(x.shape[0], -1)
    hp = jnp.maximum(feat @ params["wp1"] + params["bp1"], 0.0)
    probs = jax.nn.softmax(hp @ params["wp2"] + params["bp2"], axis=-1)
    hv = jnp.maximum(feat @ params["wv1"] + params["bv1"], 0.0)
    value = hv @ params["wv2"] + params["bv2"]
    return probs, value


# -----------------------------------------------------------------------------
if __name__ == "__main__":
    key = jax.random.PRNGKey(0)
    k_x, k_p = jax.random.split(key)

    batch, in_channels, H, W = 32, 4, 36, 36    # spatial: 36 -> 8 -> 3 -> 1
    n_actions = 6
    H1 = (H - K1) // S1 + 1; W1 = (W - K1) // S1 + 1
    H2 = (H1 - K2) // S2 + 1; W2 = (W1 - K2) // S2 + 1
    H3 = (H2 - K3) // S3 + 1; W3 = (W2 - K3) // S3 + 1
    conv_out_size = H3 * W3 * C3                # what PyTorch's _get_conv_out computes

    state = jax.random.normal(k_x, (batch, in_channels, H, W), dtype=jnp.float32)
    params = init_params(k_p, in_channels, conv_out_size, n_actions)

    forward = jax.jit(lambda s, p: atari_a2c_forward(s, p, n_actions))
    probs, value = jax.block_until_ready(forward(state, params))

    ref_probs, ref_value = _reference(state, params, n_actions)
    assert probs.shape == (batch, n_actions) and value.shape == (batch, 1)
    # bf16 matmul operands (f32 accumulation) -> loosened tolerance vs f32 reference
    assert jnp.allclose(probs, ref_probs, atol=2e-2, rtol=2e-2)
    assert jnp.allclose(value, ref_value, atol=2e-2, rtol=2e-2)
    assert jnp.allclose(jnp.sum(probs, axis=-1), 1.0, atol=1e-3)

    print("KERNEL_OK")
</pallas_src>

<mosaic_0001>
module attributes {stable_mosaic.version = 11 : i64} {
  func.func @_a2c_kernel(%arg0: i32, %arg1: memref<1024x256xbf16, #tpu.memory_space<vmem>>, %arg2: memref<256x32xbf16, #tpu.memory_space<vmem>>, %arg3: memref<1x32xf32, #tpu.memory_space<vmem>>, %arg4: memref<512x64xbf16, #tpu.memory_space<vmem>>, %arg5: memref<1x64xf32, #tpu.memory_space<vmem>>, %arg6: memref<576x64xbf16, #tpu.memory_space<vmem>>, %arg7: memref<1x64xf32, #tpu.memory_space<vmem>>, %arg8: memref<64x1024xbf16, #tpu.memory_space<vmem>>, %arg9: memref<1x1024xf32, #tpu.memory_space<vmem>>, %arg10: memref<1024x128xbf16, #tpu.memory_space<vmem>>, %arg11: memref<1x128xf32, #tpu.memory_space<vmem>>, %arg12: memref<16x128xf32, #tpu.memory_space<vmem>>, %arg13: memref<1024x32xf32, #tpu.memory_space<vmem>>, %arg14: memref<144x512xbf16, #tpu.memory_space<vmem>>, %arg15: memref<144x64xf32, #tpu.memory_space<vmem>>, %arg16: memref<16x576xbf16, #tpu.memory_space<vmem>>, %arg17: memref<16x64xf32, #tpu.memory_space<vmem>>, %arg18: memref<16x64xbf16, #tpu.memory_space<vmem>>) attributes {dimension_semantics = [#tpu.dimension_semantics<parallel>], iteration_bounds = array<i64: 2>, scalar_prefetch = 0 : i64, scratch_operands = 6 : i64, tpu.core_type = #tpu.core_type<tc>, window_params = [{transform_indices = @transform_0, window_bounds = array<i64: 1024, 256>}, {pipeline_mode = #tpu.pipeline_mode<synchronous>, transform_indices = @transform_1, window_bounds = array<i64: 256, 32>}, {pipeline_mode = #tpu.pipeline_mode<synchronous>, transform_indices = @transform_2, window_bounds = array<i64: 1, 32>}, {pipeline_mode = #tpu.pipeline_mode<synchronous>, transform_indices = @transform_3, window_bounds = array<i64: 512, 64>}, {pipeline_mode = #tpu.pipeline_mode<synchronous>, transform_indices = @transform_4, window_bounds = array<i64: 1, 64>}, {pipeline_mode = #tpu.pipeline_mode<synchronous>, transform_indices = @transform_5, window_bounds = array<i64: 576, 64>}, {pipeline_mode = #tpu.pipeline_mode<synchronous>, transform_indices = @transform_6, window_bounds = array<i64: 1, 64>}, {pipeline_mode = #tpu.pipeline_mode<synchronous>, transform_indices = @transform_7, window_bounds = array<i64: 64, 1024>}, {pipeline_mode = #tpu.pipeline_mode<synchronous>, transform_indices = @transform_8, window_bounds = array<i64: 1, 1024>}, {pipeline_mode = #tpu.pipeline_mode<synchronous>, transform_indices = @transform_9, window_bounds = array<i64: 1024, 128>}, {pipeline_mode = #tpu.pipeline_mode<synchronous>, transform_indices = @transform_10, window_bounds = array<i64: 1, 128>}, {transform_indices = @transform_11, window_bounds = array<i64: 16, 128>}]} {
    %c0 = arith.constant 0 : index
    %c0_0 = arith.constant 0 : index
    %0 = vector.load %arg1[%c0, %c0_0] : memref<1024x256xbf16, #tpu.memory_space<vmem>>, vector<1024x256xbf16>
    %c0_1 = arith.constant 0 : index
    %c0_2 = arith.constant 0 : index
    %1 = vector.load %arg2[%c0_1, %c0_2] : memref<256x32xbf16, #tpu.memory_space<vmem>>, vector<256x32xbf16>
    %cst = arith.constant dense<0.000000e+00> : vector<1024x32xf32>
    %2 = tpu.matmul %0, %1, %cst {dimension_numbers = #tpu.dot_dimension_numbers<[1], [0], [0], [1], [0, 0, 1, 1], [], []>} : vector<1024x256xbf16>, vector<256x32xbf16>, vector<1024x32xf32> -> vector<1024x32xf32>
    %c0_3 = arith.constant 0 : index
    %c0_4 = arith.constant 0 : index
    %3 = vector.load %arg3[%c0_3, %c0_4] : memref<1x32xf32, #tpu.memory_space<vmem>>, vector<1x32xf32>
    %4 = vector.broadcast %3 : vector<1x32xf32> to vector<1024x32xf32>
    %5 = arith.addf %2, %4 : vector<1024x32xf32>
    %cst_5 = arith.constant 0.000000e+00 : f32
    %6 = vector.broadcast %cst_5 : f32 to vector<1024x32xf32>
    %7 = arith.maximumf %5, %6 : vector<1024x32xf32>
    %c0_6 = arith.constant 0 : index
    %c0_7 = arith.constant 0 : index
    %8 = vector.load %arg13[%c0_6, %c0_7] : memref<1024x32xf32, #tpu.memory_space<vmem>>, vector<1024x32xf32>
    tpu.vector_store %arg13[%c0_6, %c0_7], %7 {strides = array<i32>} : memref<1024x32xf32, #tpu.memory_space<vmem>>, vector<1024x32xf32>,
    %c0_i32 = arith.constant 0 : i32
    %c3_i32 = arith.constant 3 : i32
    %9 = arith.addi %c0_i32, %c3_i32 : i32
    %c1_i32 = arith.constant 1 : i32
    scf.for %arg19 = %c0_i32 to %9 step %c1_i32  : i32 {
      %c2_i32_116 = arith.constant 2 : i32
      %162 = arith.muli %c2_i32_116, %arg19 : i32
      %c0_i32_117 = arith.constant 0 : i32
      %163 = arith.addi %162, %c0_i32_117 : i32
      %c8_i32 = arith.constant 8 : i32
      %164 = arith.muli %163, %c8_i32 : i32
      %c0_i32_118 = arith.constant 0 : i32
      %165 = arith.addi %164, %c0_i32_118 : i32
      %c0_i32_119 = arith.constant 0 : i32
      %166 = arith.addi %165, %c0_i32_119 : i32
      %c16_i32_120 = arith.constant 16 : i32
      %167 = arith.muli %166, %c16_i32_120 : i32
      %168 = arith.index_cast %167 : i32 to index
      %c0_121 = arith.constant 0 : index
      %169 = vector.load %arg13[%168, %c0_121] : memref<1024x32xf32, #tpu.memory_space<vmem>>, vector<48x32xf32>
      %170 = arith.truncf %169 : vector<48x32xf32> to vector<48x32xbf16>
      %c3_i32_122 = arith.constant 3 : i32
      %171 = arith.muli %arg19, %c3_i32_122 : i32
      %c16_i32_123 = arith.constant 16 : i32
      %172 = arith.muli %171, %c16_i32_123 : i32
      %173 = arith.index_cast %172 : i32 to index
      %c0_124 = arith.constant 0 : index
      %174 = vector.load %arg14[%173, %c0_124] : memref<144x512xbf16, #tpu.memory_space<vmem>>, vector<48x32xbf16>
      tpu.vector_store %arg14[%173, %c0_124], %170 {strides = array<i32>} : memref<144x512xbf16, #tpu.memory_space<vmem>>, vector<48x32xbf16>,
      %c2_i32_125 = arith.constant 2 : i32
      %175 = arith.muli %c2_i32_125, %arg19 : i32
      %c0_i32_126 = arith.constant 0 : i32
      %176 = arith.addi %175, %c0_i32_126 : i32
      %c8_i32_127 = arith.constant 8 : i32
      %177 = arith.muli %176, %c8_i32_127 : i32
      %c4_i32 = arith.constant 4 : i32
      %178 = arith.addi %177, %c4_i32 : i32
      %c0_i32_128 = arith.constant 0 : i32
      %179 = arith.addi %178, %c0_i32_128 : i32
      %c16_i32_129 = arith.constant 16 : i32
      %180 = arith.muli %179, %c16_i32_129 : i32
      %181 = arith.index_cast %180 : i32 to index
      %c0_130 = arith.constant 0 : index
      %182 = vector.load %arg13[%181, %c0_130] : memref<1024x32xf32, #tpu.memory_space<vmem>>, vector<48x32xf32>
      %183 = arith.truncf %182 : vector<48x32xf32> to vector<48x32xbf16>
      %c3_i32_131 = arith.constant 3 : i32
      %184 = arith.muli %arg19, %c3_i32_131 : i32
      %c16_i32_132 = arith.constant 16 : i32
      %185 = arith.muli %184, %c16_i32_132 : i32
      %186 = arith.index_cast %185 : i32 to index
      %c32 = arith.constant 32 : index
      %187 = vector.load %arg14[%186, %c32] : memref<144x512xbf16, #tpu.memory_space<vmem>>, vector<48x32xbf16>
      tpu.vector_store %arg14[%186, %c32], %183 {strides = array<i32>} : memref<144x512xbf16, #tpu.memory_space<vmem>>, vector<48x32xbf16>,
      %c2_i32_133 = arith.constant 2 : i32
      %188 = arith.muli %c2_i32_133, %arg19 : i32
      %c0_i32_134 = arith.constant 0 : i32
      %189 = arith.addi %188, %c0_i32_134 : i32
      %c8_i32_135 = arith.constant 8 : i32
      %190 = arith.muli %189, %c8_i32_135 : i32
      %c0_i32_136 = arith.constant 0 : i32
      %191 = arith.addi %190, %c0_i32_136 : i32
      %c1_i32_137 = arith.constant 1 : i32
      %192 = arith.addi %191, %c1_i32_137 : i32
      %c16_i32_138 = arith.constant 16 : i32
      %193 = arith.muli %192, %c16_i32_138 : i32
      %194 = arith.index_cast %193 : i32 to index
      %c0_139 = arith.constant 0 : index
      %195 = vector.load %arg13[%194, %c0_139] : memref<1024x32xf32, #tpu.memory_space<vmem>>, vector<48x32xf32>
      %196 = arith.truncf %195 : vector<48x32xf32> to vector<48x32xbf16>
      %c3_i32_140 = arith.constant 3 : i32
      %197 = arith.muli %arg19, %c3_i32_140 : i32
      %c16_i32_141 = arith.constant 16 : i32
      %198 = arith.muli %197, %c16_i32_141 : i32
      %199 = arith.index_cast %198 : i32 to index
      %c64_142 = arith.constant 64 : index
      %200 = vector.load %arg14[%199, %c64_142] : memref<144x512xbf16, #tpu.memory_space<vmem>>, vector<48x32xbf16>
      tpu.vector_store %arg14[%199, %c64_142], %196 {strides = array<i32>} : memref<144x512xbf16, #tpu.memory_space<vmem>>, vector<48x32xbf16>,
      %c2_i32_143 = arith.constant 2 : i32
      %201 = arith.muli %c2_i32_143, %arg19 : i32
      %c0_i32_144 = arith.constant 0 : i32
      %202 = arith.addi %201, %c0_i32_144 : i32
      %c8_i32_145 = arith.constant 8 : i32
      %203 = arith.muli %202, %c8_i32_145 : i32
      %c4_i32_146 = arith.constant 4 : i32
      %204 = arith.addi %203, %c4_i32_146 : i32
      %c1_i32_147 = arith.constant 1 : i32
      %205 = arith.addi %204, %c1_i32_147 : i32
      %c16_i32_148 = arith.constant 16 : i32
      %206 = arith.muli %205, %c16_i32_148 : i32
      %207 = arith.index_cast %206 : i32 to index
      %c0_149 = arith.constant 0 : index
      %208 = vector.load %arg13[%207, %c0_149] : memref<1024x32xf32, #tpu.memory_space<vmem>>, vector<48x32xf32>
      %209 = arith.truncf %208 : vector<48x32xf32> to vector<48x32xbf16>
      %c3_i32_150 = arith.constant 3 : i32
      %210 = arith.muli %arg19, %c3_i32_150 : i32
      %c16_i32_151 = arith.constant 16 : i32
      %211 = arith.muli %210, %c16_i32_151 : i32
      %212 = arith.index_cast %211 : i32 to index
      %c96 = arith.constant 96 : index
      %213 = vector.load %arg14[%212, %c96] : memref<144x512xbf16, #tpu.memory_space<vmem>>, vector<48x32xbf16>
      tpu.vector_store %arg14[%212, %c96], %209 {strides = array<i32>} : memref<144x512xbf16, #tpu.memory_space<vmem>>, vector<48x32xbf16>,
      %c2_i32_152 = arith.constant 2 : i32
      %214 = arith.muli %c2_i32_152, %arg19 : i32
      %c1_i32_153 = arith.constant 1 : i32
      %215 = arith.addi %214, %c1_i32_153 : i32
      %c8_i32_154 = arith.constant 8 : i32
      %216 = arith.muli %215, %c8_i32_154 : i32
      %c0_i32_155 = arith.constant 0 : i32
      %217 = arith.addi %216, %c0_i32_155 : i32
      %c0_i32_156 = arith.constant 0 : i32
      %218 = arith.addi %217, %c0_i32_156 : i32
      %c16_i32_157 = arith.constant 16 : i32
      %219 = arith.muli %218, %c16_i32_157 : i32
      %220 = arith.index_cast %219 : i32 to index
      %c0_158 = arith.constant 0 : index
      %221 = vector.load %arg13[%220, %c0_158] : memref<1024x32xf32, #tpu.memory_space<vmem>>, vector<48x32xf32>
      %222 = arith.truncf %221 : vector<48x32xf32> to vector<48x32xbf16>
      %c3_i32_159 = arith.constant 3 : i32
      %223 = arith.muli %arg19, %c3_i32_159 : i32
      %c16_i32_160 = arith.constant 16 : i32
      %224 = arith.muli %223, %c16_i32_160 : i32
      %225 = arith.index_cast %224 : i32 to index
      %c128_161 = arith.constant 128 : index
      %226 = vector.load %arg14[%225, %c128_161] : memref<144x512xbf16, #tpu.memory_space<vmem>>, vector<48x32xbf16>
      tpu.vector_store %arg14[%225, %c128_161], %222 {strides = array<i32>} : memref<144x512xbf16, #tpu.memory_space<vmem>>, vector<48x32xbf16>,
      %c2_i32_162 = arith.constant 2 : i32
      %227 = arith.muli %c2_i32_162, %arg19 : i32
      %c1_i32_163 = arith.constant 1 : i32
      %228 = arith.addi %227, %c1_i32_163 : i32
      %c8_i32_164 = arith.constant 8 : i32
      %229 = arith.muli %228, %c8_i32_164 : i32
      %c4_i32_165 = arith.constant 4 : i32
      %230 = arith.addi %229, %c4_i32_165 : i32
      %c0_i32_166 = arith.constant 0 : i32
      %231 = arith.addi %230, %c0_i32_166 : i32
      %c16_i32_167 = arith.constant 16 : i32
      %232 = arith.muli %231, %c16_i32_167 : i32
      %233 = arith.index_cast %232 : i32 to index
      %c0_168 = arith.constant 0 : index
      %234 = vector.load %arg13[%233, %c0_168] : memref<1024x32xf32, #tpu.memory_space<vmem>>, vector<48x32xf32>
      %235 = arith.truncf %234 : vector<48x32xf32> to vector<48x32xbf16>
      %c3_i32_169 = arith.constant 3 : i32
      %236 = arith.muli %arg19, %c3_i32_169 : i32
      %c16_i32_170 = arith.constant 16 : i32
      %237 = arith.muli %236, %c16_i32_170 : i32
      %238 = arith.index_cast %237 : i32 to index
      %c160 = arith.constant 160 : index
      %239 = vector.load %arg14[%238, %c160] : memref<144x512xbf16, #tpu.memory_space<vmem>>, vector<48x32xbf16>
      tpu.vector_store %arg14[%238, %c160], %235 {strides = array<i32>} : memref<144x512xbf16, #tpu.memory_space<vmem>>, vector<48x32xbf16>,
      %c2_i32_171 = arith.constant 2 : i32
      %240 = arith.muli %c2_i32_171, %arg19 : i32
      %c1_i32_172 = arith.constant 1 : i32
      %241 = arith.addi %240, %c1_i32_172 : i32
      %c8_i32_173 = arith.constant 8 : i32
      %242 = arith.muli %241, %c8_i32_173 : i32
      %c0_i32_174 = arith.constant 0 : i32
      %243 = arith.addi %242, %c0_i32_174 : i32
      %c1_i32_175 = arith.constant 1 : i32
      %244 = arith.addi %243, %c1_i32_175 : i32
      %c16_i32_176 = arith.constant 16 : i32
      %245 = arith.muli %244, %c16_i32_176 : i32
      %246 = arith.index_cast %245 : i32 to index
      %c0_177 = arith.constant 0 : index
      %247 = vector.load %arg13[%246, %c0_177] : memref<1024x32xf32, #tpu.memory_space<vmem>>, vector<48x32xf32>
      %248 = arith.truncf %247 : vector<48x32xf32> to vector<48x32xbf16>
      %c3_i32_178 = arith.constant 3 : i32
      %249 = arith.muli %arg19, %c3_i32_178 : i32
      %c16_i32_179 = arith.constant 16 : i32
      %250 = arith.muli %249, %c16_i32_179 : i32
      %251 = arith.index_cast %250 : i32 to index
      %c192_180 = arith.constant 192 : index
      %252 = vector.load %arg14[%251, %c192_180] : memref<144x512xbf16, #tpu.memory_space<vmem>>, vector<48x32xbf16>
      tpu.vector_store %arg14[%251, %c192_180], %248 {strides = array<i32>} : memref<144x512xbf16, #tpu.memory_space<vmem>>, vector<48x32xbf16>,
      %c2_i32_181 = arith.constant 2 : i32
      %253 = arith.muli %c2_i32_181, %arg19 : i32
      %c1_i32_182 = arith.constant 1 : i32
      %254 = arith.addi %253, %c1_i32_182 : i32
      %c8_i32_183 = arith.constant 8 : i32
      %255 = arith.muli %254, %c8_i32_183 : i32
      %c4_i32_184 = arith.constant 4 : i32
      %256 = arith.addi %255, %c4_i32_184 : i32
      %c1_i32_185 = arith.constant 1 : i32
      %257 = arith.addi %256, %c1_i32_185 : i32
      %c16_i32_186 = arith.constant 16 : i32
      %258 = arith.muli %257, %c16_i32_186 : i32
      %259 = arith.index_cast %258 : i32 to index
      %c0_187 = arith.constant 0 : index
      %260 = vector.load %arg13[%259, %c0_187] : memref<1024x32xf32, #tpu.memory_space<vmem>>, vector<48x32xf32>
      %261 = arith.truncf %260 : vector<48x32xf32> to vector<48x32xbf16>
      %c3_i32_188 = arith.constant 3 : i32
      %262 = arith.muli %arg19, %c3_i32_188 : i32
      %c16_i32_189 = arith.constant 16 : i32
      %263 = arith.muli %262, %c16_i32_189 : i32
      %264 = arith.index_cast %263 : i32 to index
      %c224 = arith.constant 224 : index
      %265 = vector.load %arg14[%264, %c224] : memref<144x512xbf16, #tpu.memory_space<vmem>>, vector<48x32xbf16>
      tpu.vector_store %arg14[%264, %c224], %261 {strides = array<i32>} : memref<144x512xbf16, #tpu.memory_space<vmem>>, vector<48x32xbf16>,
      %c2_i32_190 = arith.constant 2 : i32
      %266 = arith.muli %c2_i32_190, %arg19 : i32
      %c2_i32_191 = arith.constant 2 : i32
      %267 = arith.addi %266, %c2_i32_191 : i32
      %c8_i32_192 = arith.constant 8 : i32
      %268 = arith.muli %267, %c8_i32_192 : i32
      %c0_i32_193 = arith.constant 0 : i32
      %269 = arith.addi %268, %c0_i32_193 : i32
      %c0_i32_194 = arith.constant 0 : i32
      %270 = arith.addi %269, %c0_i32_194 : i32
      %c16_i32_195 = arith.constant 16 : i32
      %271 = arith.muli %270, %c16_i32_195 : i32
      %272 = arith.index_cast %271 : i32 to index
      %c0_196 = arith.constant 0 : index
      %273 = vector.load %arg13[%272, %c0_196] : memref<1024x32xf32, #tpu.memory_space<vmem>>, vector<48x32xf32>
      %274 = arith.truncf %273 : vector<48x32xf32> to vector<48x32xbf16>
      %c3_i32_197 = arith.constant 3 : i32
      %275 = arith.muli %arg19, %c3_i32_197 : i32
      %c16_i32_198 = arith.constant 16 : i32
      %276 = arith.muli %275, %c16_i32_198 : i32
      %277 = arith.index_cast %276 : i32 to index
      %c256_199 = arith.constant 256 : index
      %278 = vector.load %arg14[%277, %c256_199] : memref<144x512xbf16, #tpu.memory_space<vmem>>, vector<48x32xbf16>
      tpu.vector_store %arg14[%277, %c256_199], %274 {strides = array<i32>} : memref<144x512xbf16, #tpu.memory_space<vmem>>, vector<48x32xbf16>,
      %c2_i32_200 = arith.constant 2 : i32
      %279 = arith.muli %c2_i32_200, %arg19 : i32
      %c2_i32_201 = arith.constant 2 : i32
      %280 = arith.addi %279, %c2_i32_201 : i32
      %c8_i32_202 = arith.constant 8 : i32
      %281 = arith.muli %280, %c8_i32_202 : i32
      %c4_i32_203 = arith.constant 4 : i32
      %282 = arith.addi %281, %c4_i32_203 : i32
      %c0_i32_204 = arith.constant 0 : i32
      %283 = arith.addi %282, %c0_i32_204 : i32
      %c16_i32_205 = arith.constant 16 : i32
      %284 = arith.muli %283, %c16_i32_205 : i32
      %285 = arith.index_cast %284 : i32 to index
      %c0_206 = arith.constant 0 : index
      %286 = vector.load %arg13[%285, %c0_206] : memref<1024x32xf32, #tpu.memory_space<vmem>>, vector<48x32xf32>
      %287 = arith.truncf %286 : vector<48x32xf32> to vector<48x32xbf16>
      %c3_i32_207 = arith.constant 3 : i32
      %288 = arith.muli %arg19, %c3_i32_207 : i32
      %c16_i32_208 = arith.constant 16 : i32
      %289 = arith.muli %288, %c16_i32_208 : i32
      %290 = arith.index_cast %289 : i32 to index
      %c288 = arith.constant 288 : index
      %291 = vector.load %arg14[%290, %c288] : memref<144x512xbf16, #tpu.memory_space<vmem>>, vector<48x32xbf16>
      tpu.vector_store %arg14[%290, %c288], %287 {strides = array<i32>} : memref<144x512xbf16, #tpu.memory_space<vmem>>, vector<48x32xbf16>,
      %c2_i32_209 = arith.constant 2 : i32
      %292 = arith.muli %c2_i32_209, %arg19 : i32
      %c2_i32_210 = arith.constant 2 : i32
      %293 = arith.addi %292, %c2_i32_210 : i32
      %c8_i32_211 = arith.constant 8 : i32
      %294 = arith.muli %293, %c8_i32_211 : i32
      %c0_i32_212 = arith.constant 0 : i32
      %295 = arith.addi %294, %c0_i32_212 : i32
      %c1_i32_213 = arith.constant 1 : i32
      %296 = arith.addi %295, %c1_i32_213 : i32
      %c16_i32_214 = arith.constant 16 : i32
      %297 = arith.muli %296, %c16_i32_214 : i32
      %298 = arith.index_cast %297 : i32 to index
      %c0_215 = arith.constant 0 : index
      %299 = vector.load %arg13[%298, %c0_215] : memref<1024x32xf32, #tpu.memory_space<vmem>>, vector<48x32xf32>
      %300 = arith.truncf %299 : vector<48x32xf32> to vector<48x32xbf16>
      %c3_i32_216 = arith.constant 3 : i32
      %301 = arith.muli %arg19, %c3_i32_216 : i32
      %c16_i32_217 = arith.constant 16 : i32
      %302 = arith.muli %301, %c16_i32_217 : i32
      %303 = arith.index_cast %302 : i32 to index
      %c320_218 = arith.constant 320 : index
      %304 = vector.load %arg14[%303, %c320_218] : memref<144x512xbf16, #tpu.memory_space<vmem>>, vector<48x32xbf16>
      tpu.vector_store %arg14[%303, %c320_218], %300 {strides = array<i32>} : memref<144x512xbf16, #tpu.memory_space<vmem>>, vector<48x32xbf16>,
      %c2_i32_219 = arith.constant 2 : i32
      %305 = arith.muli %c2_i32_219, %arg19 : i32
      %c2_i32_220 = arith.constant 2 : i32
      %306 = arith.addi %305, %c2_i32_220 : i32
      %c8_i32_221 = arith.constant 8 : i32
      %307 = arith.muli %306, %c8_i32_221 : i32
      %c4_i32_222 = arith.constant 4 : i32
      %308 = arith.addi %307, %c4_i32_222 : i32
      %c1_i32_223 = arith.constant 1 : i32
      %309 = arith.addi %308, %c1_i32_223 : i32
      %c16_i32_224 = arith.constant 16 : i32
      %310 = arith.muli %309, %c16_i32_224 : i32
      %311 = arith.index_cast %310 : i32 to index
      %c0_225 = arith.constant 0 : index
      %312 = vector.load %arg13[%311, %c0_225] : memref<1024x32xf32, #tpu.memory_space<vmem>>, vector<48x32xf32>
      %313 = arith.truncf %312 : vector<48x32xf32> to vector<48x32xbf16>
      %c3_i32_226 = arith.constant 3 : i32
      %314 = arith.muli %arg19, %c3_i32_226 : i32
      %c16_i32_227 = arith.constant 16 : i32
      %315 = arith.muli %314, %c16_i32_227 : i32
      %316 = arith.index_cast %315 : i32 to index
      %c352 = arith.constant 352 : index
      %317 = vector.load %arg14[%316, %c352] : memref<144x512xbf16, #tpu.memory_space<vmem>>, vector<48x32xbf16>
      tpu.vector_store %arg14[%316, %c352], %313 {strides = array<i32>} : memref<144x512xbf16, #tpu.memory_space<vmem>>, vector<48x32xbf16>,
      %c2_i32_228 = arith.constant 2 : i32
      %318 = arith.muli %c2_i32_228, %arg19 : i32
      %c3_i32_229 = arith.constant 3 : i32
      %319 = arith.addi %318, %c3_i32_229 : i32
      %c8_i32_230 = arith.constant 8 : i32
      %320 = arith.muli %319, %c8_i32_230 : i32
      %c0_i32_231 = arith.constant 0 : i32
      %321 = arith.addi %320, %c0_i32_231 : i32
      %c0_i32_232 = arith.constant 0 : i32
      %322 = arith.addi %321, %c0_i32_232 : i32
      %c16_i32_233 = arith.constant 16 : i32
      %323 = arith.muli %322, %c16_i32_233 : i32
      %324 = arith.index_cast %323 : i32 to index
      %c0_234 = arith.constant 0 : index
      %325 = vector.load %arg13[%324, %c0_234] : memref<1024x32xf32, #tpu.memory_space<vmem>>, vector<48x32xf32>
      %326 = arith.truncf %325 : vector<48x32xf32> to vector<48x32xbf16>
      %c3_i32_235 = arith.constant 3 : i32
      %327 = arith.muli %arg19, %c3_i32_235 : i32
      %c16_i32_236 = arith.constant 16 : i32
      %328 = arith.muli %327, %c16_i32_236 : i32
      %329 = arith.index_cast %328 : i32 to index
      %c384_237 = arith.constant 384 : index
      %330 = vector.load %arg14[%329, %c384_237] : memref<144x512xbf16, #tpu.memory_space<vmem>>, vector<48x32xbf16>
      tpu.vector_store %arg14[%329, %c384_237], %326 {strides = array<i32>} : memref<144x512xbf16, #tpu.memory_space<vmem>>, vector<48x32xbf16>,
      %c2_i32_238 = arith.constant 2 : i32
      %331 = arith.muli %c2_i32_238, %arg19 : i32
      %c3_i32_239 = arith.constant 3 : i32
      %332 = arith.addi %331, %c3_i32_239 : i32
      %c8_i32_240 = arith.constant 8 : i32
      %333 = arith.muli %332, %c8_i32_240 : i32
      %c4_i32_241 = arith.constant 4 : i32
      %334 = arith.addi %333, %c4_i32_241 : i32
      %c0_i32_242 = arith.constant 0 : i32
      %335 = arith.addi %334, %c0_i32_242 : i32
      %c16_i32_243 = arith.constant 16 : i32
      %336 = arith.muli %335, %c16_i32_243 : i32
      %337 = arith.index_cast %336 : i32 to index
      %c0_244 = arith.constant 0 : index
      %338 = vector.load %arg13[%337, %c0_244] : memref<1024x32xf32, #tpu.memory_space<vmem>>, vector<48x32xf32>
      %339 = arith.truncf %338 : vector<48x32xf32> to vector<48x32xbf16>
      %c3_i32_245 = arith.constant 3 : i32
      %340 = arith.muli %arg19, %c3_i32_245 : i32
      %c16_i32_246 = arith.constant 16 : i32
      %341 = arith.muli %340, %c16_i32_246 : i32
      %342 = arith.index_cast %341 : i32 to index
      %c416 = arith.constant 416 : index
      %343 = vector.load %arg14[%342, %c416] : memref<144x512xbf16, #tpu.memory_space<vmem>>, vector<48x32xbf16>
      tpu.vector_store %arg14[%342, %c416], %339 {strides = array<i32>} : memref<144x512xbf16, #tpu.memory_space<vmem>>, vector<48x32xbf16>,
      %c2_i32_247 = arith.constant 2 : i32
      %344 = arith.muli %c2_i32_247, %arg19 : i32
      %c3_i32_248 = arith.constant 3 : i32
      %345 = arith.addi %344, %c3_i32_248 : i32
      %c8_i32_249 = arith.constant 8 : i32
      %346 = arith.muli %345, %c8_i32_249 : i32
      %c0_i32_250 = arith.constant 0 : i32
      %347 = arith.addi %346, %c0_i32_250 : i32
      %c1_i32_251 = arith.constant 1 : i32
      %348 = arith.addi %347, %c1_i32_251 : i32
      %c16_i32_252 = arith.constant 16 : i32
      %349 = arith.muli %348, %c16_i32_252 : i32
      %350 = arith.index_cast %349 : i32 to index
      %c0_253 = arith.constant 0 : index
      %351 = vector.load %arg13[%350, %c0_253] : memref<1024x32xf32, #tpu.memory_space<vmem>>, vector<48x32xf32>
      %352 = arith.truncf %351 : vector<48x32xf32> to vector<48x32xbf16>
      %c3_i32_254 = arith.constant 3 : i32
      %353 = arith.muli %arg19, %c3_i32_254 : i32
      %c16_i32_255 = arith.constant 16 : i32
      %354 = arith.muli %353, %c16_i32_255 : i32
      %355 = arith.index_cast %354 : i32 to index
      %c448_256 = arith.constant 448 : index
      %356 = vector.load %arg14[%355, %c448_256] : memref<144x512xbf16, #tpu.memory_space<vmem>>, vector<48x32xbf16>
      tpu.vector_store %arg14[%355, %c448_256], %352 {strides = array<i32>} : memref<144x512xbf16, #tpu.memory_space<vmem>>, vector<48x32xbf16>,
      %c2_i32_257 = arith.constant 2 : i32
      %357 = arith.muli %c2_i32_257, %arg19 : i32
      %c3_i32_258 = arith.constant 3 : i32
      %358 = arith.addi %357, %c3_i32_258 : i32
      %c8_i32_259 = arith.constant 8 : i32
      %359 = arith.muli %358, %c8_i32_259 : i32
      %c4_i32_260 = arith.constant 4 : i32
      %360 = arith.addi %359, %c4_i32_260 : i32
      %c1_i32_261 = arith.constant 1 : i32
      %361 = arith.addi %360, %c1_i32_261 : i32
      %c16_i32_262 = arith.constant 16 : i32
      %362 = arith.muli %361, %c16_i32_262 : i32
      %363 = arith.index_cast %362 : i32 to index
      %c0_263 = arith.constant 0 : index
      %364 = vector.load %arg13[%363, %c0_263] : memref<1024x32xf32, #tpu.memory_space<vmem>>, vector<48x32xf32>
      %365 = arith.truncf %364 : vector<48x32xf32> to vector<48x32xbf16>
      %c3_i32_264 = arith.constant 3 : i32
      %366 = arith.muli %arg19, %c3_i32_264 : i32
      %c16_i32_265 = arith.constant 16 : i32
      %367 = arith.muli %366, %c16_i32_265 : i32
      %368 = arith.index_cast %367 : i32 to index
      %c480 = arith.constant 480 : index
      %369 = vector.load %arg14[%368, %c480] : memref<144x512xbf16, #tpu.memory_space<vmem>>, vector<48x32xbf16>
      tpu.vector_store %arg14[%368, %c480], %365 {strides = array<i32>} : memref<144x512xbf16, #tpu.memory_space<vmem>>, vector<48x32xbf16>,
    }
    %c3_i32_8 = arith.constant 3 : i32
    %c0_9 = arith.constant 0 : index
    %c0_10 = arith.constant 0 : index
    %10 = vector.load %arg14[%c0_9, %c0_10] : memref<144x512xbf16, #tpu.memory_space<vmem>>, vector<144x512xbf16>
    %c0_11 = arith.constant 0 : index
    %c0_12 = arith.constant 0 : index
    %11 = vector.load %arg4[%c0_11, %c0_12] : memref<512x64xbf16, #tpu.memory_space<vmem>>, vector<512x64xbf16>
    %cst_13 = arith.constant dense<0.000000e+00> : vector<144x64xf32>
    %12 = tpu.matmul %10, %11, %cst_13 {dimension_numbers = #tpu.dot_dimension_numbers<[1], [0], [0], [1], [0, 0, 1, 1], [], []>} : vector<144x512xbf16>, vector<512x64xbf16>, vector<144x64xf32> -> vector<144x64xf32>
    %c0_14 = arith.constant 0 : index
    %c0_15 = arith.constant 0 : index
    %13 = vector.load %arg5[%c0_14, %c0_15] : memref<1x64xf32, #tpu.memory_space<vmem>>, vector<1x64xf32>
    %14 = vector.broadcast %13 : vector<1x64xf32> to vector<144x64xf32>
    %15 = arith.addf %12, %14 : vector<144x64xf32>
    %cst_16 = arith.constant 0.000000e+00 : f32
    %16 = vector.broadcast %cst_16 : f32 to vector<144x64xf32>
    %17 = arith.maximumf %15, %16 : vector<144x64xf32>
    %c0_17 = arith.constant 0 : index
    %c0_18 = arith.constant 0 : index
    %18 = vector.load %arg15[%c0_17, %c0_18] : memref<144x64xf32, #tpu.memory_space<vmem>>, vector<144x64xf32>
    tpu.vector_store %arg15[%c0_17, %c0_18], %17 {strides = array<i32>} : memref<144x64xf32, #tpu.memory_space<vmem>>, vector<144x64xf32>,
    %c0_i32_19 = arith.constant 0 : i32
    %c0_i32_20 = arith.constant 0 : i32
    %19 = arith.addi %c0_i32_19, %c0_i32_20 : i32
    %c3_i32_21 = arith.constant 3 : i32
    %20 = arith.muli %19, %c3_i32_21 : i32
    %c0_i32_22 = arith.constant 0 : i32
    %21 = arith.addi %20, %c0_i32_22 : i32
    %c16_i32 = arith.constant 16 : i32
    %22 = arith.muli %21, %c16_i32 : i32
    %23 = arith.index_cast %22 : i32 to index
    %c0_23 = arith.constant 0 : index
    %24 = vector.load %arg15[%23, %c0_23] : memref<144x64xf32, #tpu.memory_space<vmem>>, vector<16x64xf32>
    %25 = arith.truncf %24 : vector<16x64xf32> to vector<16x64xbf16>
    %c1_i32_24 = arith.constant 1 : i32
    %26 = arith.muli %c0_i32_19, %c1_i32_24 : i32
    %c16_i32_25 = arith.constant 16 : i32
    %27 = arith.muli %26, %c16_i32_25 : i32
    %28 = arith.index_cast %27 : i32 to index
    %c0_26 = arith.constant 0 : index
    %29 = vector.load %arg16[%28, %c0_26] : memref<16x576xbf16, #tpu.memory_space<vmem>>, vector<16x64xbf16>
    tpu.vector_store %arg16[%28, %c0_26], %25 {strides = array<i32>} : memref<16x576xbf16, #tpu.memory_space<vmem>>, vector<16x64xbf16>,
    %c0_i32_27 = arith.constant 0 : i32
    %30 = arith.addi %c0_i32_19, %c0_i32_27 : i32
    %c3_i32_28 = arith.constant 3 : i32
    %31 = arith.muli %30, %c3_i32_28 : i32
    %c1_i32_29 = arith.constant 1 : i32
    %32 = arith.addi %31, %c1_i32_29 : i32
    %c16_i32_30 = arith.constant 16 : i32
    %33 = arith.muli %32, %c16_i32_30 : i32
    %34 = arith.index_cast %33 : i32 to index
    %c0_31 = arith.constant 0 : index
    %35 = vector.load %arg15[%34, %c0_31] : memref<144x64xf32, #tpu.memory_space<vmem>>, vector<16x64xf32>
    %36 = arith.truncf %35 : vector<16x64xf32> to vector<16x64xbf16>
    %c1_i32_32 = arith.constant 1 : i32
    %37 = arith.muli %c0_i32_19, %c1_i32_32 : i32
    %c16_i32_33 = arith.constant 16 : i32
    %38 = arith.muli %37, %c16_i32_33 : i32
    %39 = arith.index_cast %38 : i32 to index
    %c64 = arith.constant 64 : index
    %40 = vector.load %arg16[%39, %c64] : memref<16x576xbf16, #tpu.memory_space<vmem>>, vector<16x64xbf16>
    tpu.vector_store %arg16[%39, %c64], %36 {strides = array<i32>} : memref<16x576xbf16, #tpu.memory_space<vmem>>, vector<16x64xbf16>,
    %c0_i32_34 = arith.constant 0 : i32
    %41 = arith.addi %c0_i32_19, %c0_i32_34 : i32
    %c3_i32_35 = arith.constant 3 : i32
    %42 = arith.muli %41, %c3_i32_35 : i32
    %c2_i32 = arith.constant 2 : i32
    %43 = arith.addi %42, %c2_i32 : i32
    %c16_i32_36 = arith.constant 16 : i32
    %44 = arith.muli %43, %c16_i32_36 : i32
    %45 = arith.index_cast %44 : i32 to index
    %c0_37 = arith.constant 0 : index
    %46 = vector.load %arg15[%45, %c0_37] : memref<144x64xf32, #tpu.memory_space<vmem>>, vector<16x64xf32>
    %47 = arith.truncf %46 : vector<16x64xf32> to vector<16x64xbf16>
    %c1_i32_38 = arith.constant 1 : i32
    %48 = arith.muli %c0_i32_19, %c1_i32_38 : i32
    %c16_i32_39 = arith.constant 16 : i32
    %49 = arith.muli %48, %c16_i32_39 : i32
    %50 = arith.index_cast %49 : i32 to index
    %c128 = arith.constant 128 : index
    %51 = vector.load %arg16[%50, %c128] : memref<16x576xbf16, #tpu.memory_space<vmem>>, vector<16x64xbf16>
    tpu.vector_store %arg16[%50, %c128], %47 {strides = array<i32>} : memref<16x576xbf16, #tpu.memory_space<vmem>>, vector<16x64xbf16>,
    %c1_i32_40 = arith.constant 1 : i32
    %52 = arith.addi %c0_i32_19, %c1_i32_40 : i32
    %c3_i32_41 = arith.constant 3 : i32
    %53 = arith.muli %52, %c3_i32_41 : i32
    %c0_i32_42 = arith.constant 0 : i32
    %54 = arith.addi %53, %c0_i32_42 : i32
    %c16_i32_43 = arith.constant 16 : i32
    %55 = arith.muli %54, %c16_i32_43 : i32
    %56 = arith.index_cast %55 : i32 to index
    %c0_44 = arith.constant 0 : index
    %57 = vector.load %arg15[%56, %c0_44] : memref<144x64xf32, #tpu.memory_space<vmem>>, vector<16x64xf32>
    %58 = arith.truncf %57 : vector<16x64xf32> to vector<16x64xbf16>
    %c1_i32_45 = arith.constant 1 : i32
    %59 = arith.muli %c0_i32_19, %c1_i32_45 : i32
    %c16_i32_46 = arith.constant 16 : i32
    %60 = arith.muli %59, %c16_i32_46 : i32
    %61 = arith.index_cast %60 : i32 to index
    %c192 = arith.constant 192 : index
    %62 = vector.load %arg16[%61, %c192] : memref<16x576xbf16, #tpu.memory_space<vmem>>, vector<16x64xbf16>
    tpu.vector_store %arg16[%61, %c192], %58 {strides = array<i32>} : memref<16x576xbf16, #tpu.memory_space<vmem>>, vector<16x64xbf16>,
    %c1_i32_47 = arith.constant 1 : i32
    %63 = arith.addi %c0_i32_19, %c1_i32_47 : i32
    %c3_i32_48 = arith.constant 3 : i32
    %64 = arith.muli %63, %c3_i32_48 : i32
    %c1_i32_49 = arith.constant 1 : i32
    %65 = arith.addi %64, %c1_i32_49 : i32
    %c16_i32_50 = arith.constant 16 : i32
    %66 = arith.muli %65, %c16_i32_50 : i32
    %67 = arith.index_cast %66 : i32 to index
    %c0_51 = arith.constant 0 : index
    %68 = vector.load %arg15[%67, %c0_51] : memref<144x64xf32, #tpu.memory_space<vmem>>, vector<16x64xf32>
    %69 = arith.truncf %68 : vector<16x64xf32> to vector<16x64xbf16>
    %c1_i32_52 = arith.constant 1 : i32
    %70 = arith.muli %c0_i32_19, %c1_i32_52 : i32
    %c16_i32_53 = arith.constant 16 : i32
    %71 = arith.muli %70, %c16_i32_53 : i32
    %72 = arith.index_cast %71 : i32 to index
    %c256 = arith.constant 256 : index
    %73 = vector.load %arg16[%72, %c256] : memref<16x576xbf16, #tpu.memory_space<vmem>>, vector<16x64xbf16>
    tpu.vector_store %arg16[%72, %c256], %69 {strides = array<i32>} : memref<16x576xbf16, #tpu.memory_space<vmem>>, vector<16x64xbf16>,
    %c1_i32_54 = arith.constant 1 : i32
    %74 = arith.addi %c0_i32_19, %c1_i32_54 : i32
    %c3_i32_55 = arith.constant 3 : i32
    %75 = arith.muli %74, %c3_i32_55 : i32
    %c2_i32_56 = arith.constant 2 : i32
    %76 = arith.addi %75, %c2_i32_56 : i32
    %c16_i32_57 = arith.constant 16 : i32
    %77 = arith.muli %76, %c16_i32_57 : i32
    %78 = arith.index_cast %77 : i32 to index
    %c0_58 = arith.constant 0 : index
    %79 = vector.load %arg15[%78, %c0_58] : memref<144x64xf32, #tpu.memory_space<vmem>>, vector<16x64xf32>
    %80 = arith.truncf %79 : vector<16x64xf32> to vector<16x64xbf16>
    %c1_i32_59 = arith.constant 1 : i32
    %81 = arith.muli %c0_i32_19, %c1_i32_59 : i32
    %c16_i32_60 = arith.constant 16 : i32
    %82 = arith.muli %81, %c16_i32_60 : i32
    %83 = arith.index_cast %82 : i32 to index
    %c320 = arith.constant 320 : index
    %84 = vector.load %arg16[%83, %c320] : memref<16x576xbf16, #tpu.memory_space<vmem>>, vector<16x64xbf16>
    tpu.vector_store %arg16[%83, %c320], %80 {strides = array<i32>} : memref<16x576xbf16, #tpu.memory_space<vmem>>, vector<16x64xbf16>,
    %c2_i32_61 = arith.constant 2 : i32
    %85 = arith.addi %c0_i32_19, %c2_i32_61 : i32
    %c3_i32_62 = arith.constant 3 : i32
    %86 = arith.muli %85, %c3_i32_62 : i32
    %c0_i32_63 = arith.constant 0 : i32
    %87 = arith.addi %86, %c0_i32_63 : i32
    %c16_i32_64 = arith.constant 16 : i32
    %88 = arith.muli %87, %c16_i32_64 : i32
    %89 = arith.index_cast %88 : i32 to index
    %c0_65 = arith.constant 0 : index
    %90 = vector.load %arg15[%89, %c0_65] : memref<144x64xf32, #tpu.memory_space<vmem>>, vector<16x64xf32>
    %91 = arith.truncf %90 : vector<16x64xf32> to vector<16x64xbf16>
    %c1_i32_66 = arith.constant 1 : i32
    %92 = arith.muli %c0_i32_19, %c1_i32_66 : i32
    %c16_i32_67 = arith.constant 16 : i32
    %93 = arith.muli %92, %c16_i32_67 : i32
    %94 = arith.index_cast %93 : i32 to index
    %c384 = arith.constant 384 : index
    %95 = vector.load %arg16[%94, %c384] : memref<16x576xbf16, #tpu.memory_space<vmem>>, vector<16x64xbf16>
    tpu.vector_store %arg16[%94, %c384], %91 {strides = array<i32>} : memref<16x576xbf16, #tpu.memory_space<vmem>>, vector<16x64xbf16>,
    %c2_i32_68 = arith.constant 2 : i32
    %96 = arith.addi %c0_i32_19, %c2_i32_68 : i32
    %c3_i32_69 = arith.constant 3 : i32
    %97 = arith.muli %96, %c3_i32_69 : i32
    %c1_i32_70 = arith.constant 1 : i32
    %98 = arith.addi %97, %c1_i32_70 : i32
    %c16_i32_71 = arith.constant 16 : i32
    %99 = arith.muli %98, %c16_i32_71 : i32
    %100 = arith.index_cast %99 : i32 to index
    %c0_72 = arith.constant 0 : index
    %101 = vector.load %arg15[%100, %c0_72] : memref<144x64xf32, #tpu.memory_space<vmem>>, vector<16x64xf32>
    %102 = arith.truncf %101 : vector<16x64xf32> to vector<16x64xbf16>
    %c1_i32_73 = arith.constant 1 : i32
    %103 = arith.muli %c0_i32_19, %c1_i32_73 : i32
    %c16_i32_74 = arith.constant 16 : i32
    %104 = arith.muli %103, %c16_i32_74 : i32
    %105 = arith.index_cast %104 : i32 to index
    %c448 = arith.constant 448 : index
    %106 = vector.load %arg16[%105, %c448] : memref<16x576xbf16, #tpu.memory_space<vmem>>, vector<16x64xbf16>
    tpu.vector_store %arg16[%105, %c448], %102 {strides = array<i32>} : memref<16x576xbf16, #tpu.memory_space<vmem>>, vector<16x64xbf16>,
    %c2_i32_75 = arith.constant 2 : i32
    %107 = arith.addi %c0_i32_19, %c2_i32_75 : i32
    %c3_i32_76 = arith.constant 3 : i32
    %108 = arith.muli %107, %c3_i32_76 : i32
    %c2_i32_77 = arith.constant 2 : i32
    %109 = arith.addi %108, %c2_i32_77 : i32
    %c16_i32_78 = arith.constant 16 : i32
    %110 = arith.muli %109, %c16_i32_78 : i32
    %111 = arith.index_cast %110 : i32 to index
    %c0_79 = arith.constant 0 : index
    %112 = vector.load %arg15[%111, %c0_79] : memref<144x64xf32, #tpu.memory_space<vmem>>, vector<16x64xf32>
    %113 = arith.truncf %112 : vector<16x64xf32> to vector<16x64xbf16>
    %c1_i32_80 = arith.constant 1 : i32
    %114 = arith.muli %c0_i32_19, %c1_i32_80 : i32
    %c16_i32_81 = arith.constant 16 : i32
    %115 = arith.muli %114, %c16_i32_81 : i32
    %116 = arith.index_cast %115 : i32 to index
    %c512 = arith.constant 512 : index
    %117 = vector.load %arg16[%116, %c512] : memref<16x576xbf16, #tpu.memory_space<vmem>>, vector<16x64xbf16>
    tpu.vector_store %arg16[%116, %c512], %113 {strides = array<i32>} : memref<16x576xbf16, #tpu.memory_space<vmem>>, vector<16x64xbf16>,
    %c1_i32_82 = arith.constant 1 : i32
    %c0_83 = arith.constant 0 : index
    %c0_84 = arith.constant 0 : index
    %118 = vector.load %arg16[%c0_83, %c0_84] : memref<16x576xbf16, #tpu.memory_space<vmem>>, vector<16x576xbf16>
    %c0_85 = arith.constant 0 : index
    %c0_86 = arith.constant 0 : index
    %119 = vector.load %arg6[%c0_85, %c0_86] : memref<576x64xbf16, #tpu.memory_space<vmem>>, vector<576x64xbf16>
    %cst_87 = arith.constant dense<0.000000e+00> : vector<16x64xf32>
    %120 = tpu.matmul %118, %119, %cst_87 {dimension_numbers = #tpu.dot_dimension_numbers<[1], [0], [0], [1], [0, 0, 1, 1], [], []>} : vector<16x576xbf16>, vector<576x64xbf16>, vector<16x64xf32> -> vector<16x64xf32>
    %c0_88 = arith.constant 0 : index
    %c0_89 = arith.constant 0 : index
    %121 = vector.load %arg7[%c0_88, %c0_89] : memref<1x64xf32, #tpu.memory_space<vmem>>, vector<1x64xf32>
    %122 = vector.broadcast %121 : vector<1x64xf32> to vector<16x64xf32>
    %123 = arith.addf %120, %122 : vector<16x64xf32>
    %cst_90 = arith.constant 0.000000e+00 : f32
    %124 = vector.broadcast %cst_90 : f32 to vector<16x64xf32>
    %125 = arith.maximumf %123, %124 : vector<16x64xf32>
    %c0_91 = arith.constant 0 : index
    %c0_92 = arith.constant 0 : index
    %126 = vector.load %arg17[%c0_91, %c0_92] : memref<16x64xf32, #tpu.memory_space<vmem>>, vector<16x64xf32>
    tpu.vector_store %arg17[%c0_91, %c0_92], %125 {strides = array<i32>} : memref<16x64xf32, #tpu.memory_space<vmem>>, vector<16x64xf32>,
    %c0_93 = arith.constant 0 : index
    %c0_94 = arith.constant 0 : index
    %127 = vector.load %arg17[%c0_93, %c0_94] : memref<16x64xf32, #tpu.memory_space<vmem>>, vector<16x64xf32>
    %128 = arith.truncf %127 : vector<16x64xf32> to vector<16x64xbf16>
    %c0_95 = arith.constant 0 : index
    %c0_96 = arith.constant 0 : index
    %129 = vector.load %arg18[%c0_95, %c0_96] : memref<16x64xbf16, #tpu.memory_space<vmem>>, vector<16x64xbf16>
    tpu.vector_store %arg18[%c0_95, %c0_96], %128 {strides = array<i32>} : memref<16x64xbf16, #tpu.memory_space<vmem>>, vector<16x64xbf16>,
    %c0_97 = arith.constant 0 : index
    %c0_98 = arith.constant 0 : index
    %130 = vector.load %arg18[%c0_97, %c0_98] : memref<16x64xbf16, #tpu.memory_space<vmem>>, vector<16x64xbf16>
    %c0_99 = arith.constant 0 : index
    %c0_100 = arith.constant 0 : index
    %131 = vector.load %arg8[%c0_99, %c0_100] : memref<64x1024xbf16, #tpu.memory_space<vmem>>, vector<64x1024xbf16>
    %cst_101 = arith.constant dense<0.000000e+00> : vector<16x1024xf32>
    %132 = tpu.matmul %130, %131, %cst_101 {dimension_numbers = #tpu.dot_dimension_numbers<[1], [0], [0], [1], [0, 0, 1, 1], [], []>} : vector<16x64xbf16>, vector<64x1024xbf16>, vector<16x1024xf32> -> vector<16x1024xf32>
    %c0_102 = arith.constant 0 : index
    %c0_103 = arith.constant 0 : index
    %133 = vector.load %arg9[%c0_102, %c0_103] : memref<1x1024xf32, #tpu.memory_space<vmem>>, vector<1x1024xf32>
    %134 = vector.broadcast %133 : vector<1x1024xf32> to vector<16x1024xf32>
    %135 = arith.addf %132, %134 : vector<16x1024xf32>
    %cst_104 = arith.constant 0.000000e+00 : f32
    %136 = vector.broadcast %cst_104 : f32 to vector<16x1024xf32>
    %137 = arith.maximumf %135, %136 : vector<16x1024xf32>
    %138 = arith.truncf %137 : vector<16x1024xf32> to vector<16x1024xbf16>
    %c0_105 = arith.constant 0 : index
    %c0_106 = arith.constant 0 : index
    %139 = vector.load %arg10[%c0_105, %c0_106] : memref<1024x128xbf16, #tpu.memory_space<vmem>>, vector<1024x128xbf16>
    %cst_107 = arith.constant dense<0.000000e+00> : vector<16x128xf32>
    %140 = tpu.matmul %138, %139, %cst_107 {dimension_numbers = #tpu.dot_dimension_numbers<[1], [0], [0], [1], [0, 0, 1, 1], [], []>} : vector<16x1024xbf16>, vector<1024x128xbf16>, vector<16x128xf32> -> vector<16x128xf32>
    %c0_108 = arith.constant 0 : index
    %c0_109 = arith.constant 0 : index
    %141 = vector.load %arg11[%c0_108, %c0_109] : memref<1x128xf32, #tpu.memory_space<vmem>>, vector<1x128xf32>
    %142 = vector.broadcast %141 : vector<1x128xf32> to vector<16x128xf32>
    %143 = arith.addf %140, %142 : vector<16x128xf32>
    %144 = tpu.iota {dimensions = array<i32: 1>} : vector<16x128xi32>
    %c6_i32 = arith.constant 6 : i32
    %145 = vector.broadcast %c6_i32 : i32 to vector<16x128xi32>
    %146 = arith.cmpi slt, %144, %145 : vector<16x128xi32>
    %cst_110 = arith.constant -1.000000e+30 : f32
    %147 = vector.broadcast %cst_110 : f32 to vector<16x128xf32>
    %148 = arith.select %146, %143, %147 : vector<16x128xi1>, vector<16x128xf32>
    %cst_111 = arith.constant dense<0xFF800000> : vector<16xf32>
    %149 = vector.multi_reduction <maximumf>, %148, %cst_111 [1] : vector<16x128xf32> to vector<16xf32>
    %150 = vector.shape_cast %149 : vector<16xf32> to vector<16x1xf32>
    %151 = vector.broadcast %150 : vector<16x1xf32> to vector<16x128xf32>
    %152 = arith.subf %148, %151 : vector<16x128xf32>
    %153 = math.exp %152 : vector<16x128xf32>
    %cst_112 = arith.constant 0.000000e+00 : f32
    %154 = vector.broadcast %cst_112 : f32 to vector<16x128xf32>
    %155 = arith.select %146, %153, %154 : vector<16x128xi1>, vector<16x128xf32>
    %cst_113 = arith.constant dense<0.000000e+00> : vector<16xf32>
    %156 = vector.multi_reduction <add>, %155, %cst_113 [1] : vector<16x128xf32> to vector<16xf32>
    %157 = vector.shape_cast %156 : vector<16xf32> to vector<16x1xf32>
    %158 = vector.broadcast %157 : vector<16x1xf32> to vector<16x128xf32>
    %159 = arith.divf %155, %158 : vector<16x128xf32>
    %160 = arith.select %146, %159, %143 : vector<16x128xi1>, vector<16x128xf32>
    %c0_114 = arith.constant 0 : index
    %c0_115 = arith.constant 0 : index
    %161 = vector.load %arg12[%c0_114, %c0_115] : memref<16x128xf32, #tpu.memory_space<vmem>>, vector<16x128xf32>
    tpu.vector_store %arg12[%c0_114, %c0_115], %160 {strides = array<i32>} : memref<16x128xf32, #tpu.memory_space<vmem>>, vector<16x128xf32>,
    return
  }
  func.func @transform_0(%arg0: i32) -> (i32, i32) {
    %c0_i32 = arith.constant 0 : i32
    %c0_i32_0 = arith.constant 0 : i32
    return %arg0, %c0_i32 : i32, i32
  }
  func.func @transform_1(%arg0: i32) -> (i32, i32) {
    %c0_i32 = arith.constant 0 : i32
    %c0_i32_0 = arith.constant 0 : i32
    %c0_i32_1 = arith.constant 0 : i32
    return %c0_i32, %c0_i32_0 : i32, i32
  }
  func.func @transform_2(%arg0: i32) -> (i32, i32) {
    %c0_i32 = arith.constant 0 : i32
    %c0_i32_0 = arith.constant 0 : i32
    %c0_i32_1 = arith.constant 0 : i32
    return %c0_i32, %c0_i32_0 : i32, i32
  }
  func.func @transform_3(%arg0: i32) -> (i32, i32) {
    %c0_i32 = arith.constant 0 : i32
    %c0_i32_0 = arith.constant 0 : i32
    %c0_i32_1 = arith.constant 0 : i32
    return %c0_i32, %c0_i32_0 : i32, i32
  }
  func.func @transform_4(%arg0: i32) -> (i32, i32) {
    %c0_i32 = arith.constant 0 : i32
    %c0_i32_0 = arith.constant 0 : i32
    %c0_i32_1 = arith.constant 0 : i32
    return %c0_i32, %c0_i32_0 : i32, i32
  }
  func.func @transform_5(%arg0: i32) -> (i32, i32) {
    %c0_i32 = arith.constant 0 : i32
    %c0_i32_0 = arith.constant 0 : i32
    %c0_i32_1 = arith.constant 0 : i32
    return %c0_i32, %c0_i32_0 : i32, i32
  }
  func.func @transform_6(%arg0: i32) -> (i32, i32) {
    %c0_i32 = arith.constant 0 : i32
    %c0_i32_0 = arith.constant 0 : i32
    %c0_i32_1 = arith.constant 0 : i32
    return %c0_i32, %c0_i32_0 : i32, i32
  }
  func.func @transform_7(%arg0: i32) -> (i32, i32) {
    %c0_i32 = arith.constant 0 : i32
    %c0_i32_0 = arith.constant 0 : i32
    %c0_i32_1 = arith.constant 0 : i32
    return %c0_i32, %c0_i32_0 : i32, i32
  }
  func.func @transform_8(%arg0: i32) -> (i32, i32) {
    %c0_i32 = arith.constant 0 : i32
    %c0_i32_0 = arith.constant 0 : i32
    %c0_i32_1 = arith.constant 0 : i32
    return %c0_i32, %c0_i32_0 : i32, i32
  }
  func.func @transform_9(%arg0: i32) -> (i32, i32) {
    %c0_i32 = arith.constant 0 : i32
    %c0_i32_0 = arith.constant 0 : i32
    %c0_i32_1 = arith.constant 0 : i32
    return %c0_i32, %c0_i32_0 : i32, i32
  }
  func.func @transform_10(%arg0: i32) -> (i32, i32) {
    %c0_i32 = arith.constant 0 : i32
    %c0_i32_0 = arith.constant 0 : i32
    %c0_i32_1 = arith.constant 0 : i32
    return %c0_i32, %c0_i32_0 : i32, i32
  }
  func.func @transform_11(%arg0: i32) -> (i32, i32) {
    %c0_i32 = arith.constant 0 : i32
    %c0_i32_0 = arith.constant 0 : i32
    return %arg0, %c0_i32 : i32, i32
  }
}

</mosaic_0001>

<llo_original>
// kernel: _lambda_.1
$region0: #{_lambda_.1}
  #allocation0 [shape = 'u32[]', space=smem, size = 0x4, offset = 0x4, fixed_abs, tag = 'smem constant byte address 0x4 - core index']
  #allocation1 [shape = 'u32[144,128]{1,0:T(1,128)}', space=vmem, size = 0x12000, scoped, tag = 'internal scratch']
  #allocation2 [shape = 'f32[1024,32]{1,0:T(8,128)}', space=vmem, size = 0x80000, scoped, tag = 'scratch operand']
  #allocation3 [shape = 'bf16[144,512]{1,0:T(16,128)(2,1)}', space=vmem, size = 0x24000, scoped, tag = 'scratch operand']
  #allocation4 [shape = 'f32[144,64]{1,0:T(8,128)}', space=vmem, size = 0x12000, scoped, tag = 'scratch operand']
  #allocation5 [shape = 'bf16[16,576]{1,0:T(16,128)(2,1)}', space=vmem, size = 0x5000, scoped, tag = 'scratch operand']
  #allocation6 [shape = 'f32[16,64]{1,0:T(8,128)}', space=vmem, size = 0x2000, scoped, tag = 'scratch operand']
  #allocation7 [shape = 'bf16[16,64]{1,0:T(16,128)(2,1)}', space=vmem, size = 0x1000, scoped, tag = 'scratch operand']
  %s0 = inlined_call_operand.vmem [shape: bf16[2048,256], index: 0, kind: input, shape index: {}]
  %s1 = inlined_call_operand.vmem [shape: bf16[256,32], index: 1, kind: input, shape index: {}]
  %s2 = inlined_call_operand.vmem [shape: f32[1,32], index: 2, kind: input, shape index: {}]
  %s3 = inlined_call_operand.vmem [shape: bf16[512,64], index: 3, kind: input, shape index: {}]
  %s4 = inlined_call_operand.vmem [shape: f32[1,64], index: 4, kind: input, shape index: {}]
  %s5 = inlined_call_operand.vmem [shape: bf16[576,64], index: 5, kind: input, shape index: {}]
  %s6 = inlined_call_operand.vmem [shape: f32[1,64], index: 6, kind: input, shape index: {}]
  %s7 = inlined_call_operand.vmem [shape: bf16[64,1024], index: 7, kind: input, shape index: {}]
  %s8 = inlined_call_operand.vmem [shape: f32[1,1024], index: 8, kind: input, shape index: {}]
  %s9 = inlined_call_operand.vmem [shape: bf16[1024,128], index: 9, kind: input, shape index: {}]
  %s10 = inlined_call_operand.vmem [shape: f32[1,128], index: 10, kind: input, shape index: {}]
  %s11 = inlined_call_operand.vmem [shape: f32[32,128], index: 11, kind: output, shape index: {}]
  %s12 = sld [smem:[#allocation0]]
  $region84: #{_lambda_.1} parent=0
    _
  %s14 = ssub.s32 1, %s12
  %s15 = scalar_select 0, %s14, %s12
  loop: start=0, step=1, limit=4
  $region2: #{_lambda_.1} parent=0 // loop_pre_header
    _
  $region3: #{_lambda_.1} parent=0 // loop_header
    %s17 = sphi 0, %s21
    %p18 = scmp.ge.s32.totalorder %s17, 4
    %s27 = sphi 0, %s29
    %s30 = sphi 0, %s27
    %s31 = sphi 0, %s30
    %s47 = sphi 0, %s31
    %s51 = sphi 0, %s51
    %s53 = sphi 0, %s51
    %s54 = sphi 0, %s53
    %s68 = sphi 0, %s54
    %s72 = sphi 0, %s72
    %s74 = sphi 0, %s72
    %s75 = sphi 0, %s74
    %s89 = sphi 0, %s75
    %s93 = sphi 0, %s93
    %s95 = sphi 0, %s93
    %s96 = sphi 0, %s95
    %s110 = sphi 0, %s96
    %s114 = sphi 0, %s114
    %s116 = sphi 0, %s114
    %s117 = sphi 0, %s116
    %s131 = sphi 0, %s117
    %s135 = sphi 0, %s135
    %s137 = sphi 0, %s135
    %s138 = sphi 0, %s137
    %s152 = sphi 0, %s138
    %s156 = sphi 0, %s156
    %s158 = sphi 0, %s156
    %s159 = sphi 0, %s158
    %s173 = sphi 0, %s159
    %s177 = sphi 0, %s177
    %s179 = sphi 0, %s177
    %s180 = sphi 0, %s179
    %s194 = sphi 0, %s180
    %s198 = sphi 0, %s198
    %s200 = sphi 0, %s198
    %s201 = sphi 0, %s200
    %s215 = sphi 0, %s201
    %s219 = sphi 0, %s219
    %s221 = sphi 0, %s219
    %s222 = sphi 0, %s221
    %s236 = sphi 0, %s222
    %s240 = sphi 0, %s240
    %s242 = sphi 0, %s240
    %s243 = sphi 0, %s242
    %s257 = sphi 0, %s243
    %s263 = sphi 0, %s265
    %s266 = sphi 0, %s263
    %s267 = sphi 0, %s266
    %s283 = sphi 0, %s267
  $region4: #{_lambda_.1} parent=0 // loop_header_branch
    %20 = sbr.rel (%p18) target = $region8
  $region5: #{_lambda_.1} parent=0 // loop_body
    %s22 = ssub.s32 %s17, 1
    %s23 = ssub.s32 %s17, 2
    %s24 = sadd.s32 %s17, 1
    %s25 = ssub.s32 %s17, %s24
    %p26 = scmp.eq.s32.totalorder %s25, 0
    %s28 = sadd.s32 %s27, 1
    %s29 = scalar_select %p26, %s27, %s28
    %p32 = pneg %p26
    %p33 = scmp.eq.s32.totalorder %s17, 1
    %p34 = por %p32, %p33
    %p35 = scmp.ne.s32.totalorder %s27, %s30
    %p36 = scmp.eq.s32.totalorder %s17, 0
    %p37 = por %p35, %p36
    %p38 = scmp.ne.s32.totalorder %s27, %s30
    %p39 = scmp.eq.s32.totalorder %s22, 1
    %p40 = por %p38, %p39
    %p41 = scmp.ne.s32.totalorder %s30, %s31
    %p42 = scmp.eq.s32.totalorder %s22, 0
    %p43 = por %p41, %p42
    %p44 = scmp.ne.s32.totalorder %s30, %s31
    %p45 = scmp.eq.s32.totalorder %s23, 1
    %p46 = por %p44, %p45
    %p48 = scmp.ne.s32.totalorder %s31, %s47
    %p49 = scmp.eq.s32.totalorder %s23, 0
    %p50 = por %p48, %p49
    %s52 = sadd.s32 %s51, 1
    %p55 = scmp.eq.s32.totalorder %s17, 1
    %p56 = scmp.ne.s32.totalorder %s51, %s53
    %p57 = scmp.eq.s32.totalorder %s17, 0
    %p58 = por %p56, %p57
    %p59 = scmp.ne.s32.totalorder %s51, %s53
    %p60 = scmp.eq.s32.totalorder %s22, 1
    %p61 = por %p59, %p60
    %p62 = scmp.ne.s32.totalorder %s53, %s54
    %p63 = scmp.eq.s32.totalorder %s22, 0
    %p64 = por %p62, %p63
    %p65 = scmp.ne.s32.totalorder %s53, %s54
    %p66 = scmp.eq.s32.totalorder %s23, 1
    %p67 = por %p65, %p66
    %p69 = scmp.ne.s32.totalorder %s54, %s68
    %p70 = scmp.eq.s32.totalorder %s23, 0
    %p71 = por %p69, %p70
    %s73 = sadd.s32 %s72, 1
    %p76 = scmp.eq.s32.totalorder %s17, 1
    %p77 = scmp.ne.s32.totalorder %s72, %s74
    %p78 = scmp.eq.s32.totalorder %s17, 0
    %p79 = por %p77, %p78
    %p80 = scmp.ne.s32.totalorder %s72, %s74
    %p81 = scmp.eq.s32.totalorder %s22, 1
    %p82 = por %p80, %p81
    %p83 = scmp.ne.s32.totalorder %s74, %s75
    %p84 = scmp.eq.s32.totalorder %s22, 0
    %p85 = por %p83, %p84
    %p86 = scmp.ne.s32.totalorder %s74, %s75
    %p87 = scmp.eq.s32.totalorder %s23, 1
    %p88 = por %p86, %p87
    %p90 = scmp.ne.s32.totalorder %s75, %s89
    %p91 = scmp.eq.s32.totalorder %s23, 0
    %p92 = por %p90, %p91
    %s94 = sadd.s32 %s93, 1
    %p97 = scmp.eq.s32.totalorder %s17, 1
    %p98 = scmp.ne.s32.totalorder %s93, %s95
    %p99 = scmp.eq.s32.totalorder %s17, 0
    %p100 = por %p98, %p99
    %p101 = scmp.ne.s32.totalorder %s93, %s95
    %p102 = scmp.eq.s32.totalorder %s22, 1
    %p103 = por %p101, %p102
    %p104 = scmp.ne.s32.totalorder %s95, %s96
    %p105 = scmp.eq.s32.totalorder %s22, 0
    %p106 = por %p104, %p105
    %p107 = scmp.ne.s32.totalorder %s95, %s96
    %p108 = scmp.eq.s32.totalorder %s23, 1
    %p109 = por %p107, %p108
    %p111 = scmp.ne.s32.totalorder %s96, %s110
    %p112 = scmp.eq.s32.totalorder %s23, 0
    %p113 = por %p111, %p112
    %s115 = sadd.s32 %s114, 1
    %p118 = scmp.eq.s32.totalorder %s17, 1
    %p119 = scmp.ne.s32.totalorder %s114, %s116
    %p120 = scmp.eq.s32.totalorder %s17, 0
    %p121 = por %p119, %p120
    %p122 = scmp.ne.s32.totalorder %s114, %s116
    %p123 = scmp.eq.s32.totalorder %s22, 1
    %p124 = por %p122, %p123
    %p125 = scmp.ne.s32.totalorder %s116, %s117
    %p126 = scmp.eq.s32.totalorder %s22, 0
    %p127 = por %p125, %p126
    %p128 = scmp.ne.s32.totalorder %s116, %s117
    %p129 = scmp.eq.s32.totalorder %s23, 1
    %p130 = por %p128, %p129
    %p132 = scmp.ne.s32.totalorder %s117, %s131
    %p133 = scmp.eq.s32.totalorder %s23, 0
    %p134 = por %p132, %p133
    %s136 = sadd.s32 %s135, 1
    %p139 = scmp.eq.s32.totalorder %s17, 1
    %p140 = scmp.ne.s32.totalorder %s135, %s137
    %p141 = scmp.eq.s32.totalorder %s17, 0
    %p142 = por %p140, %p141
    %p143 = scmp.ne.s32.totalorder %s135, %s137
    %p144 = scmp.eq.s32.totalorder %s22, 1
    %p145 = por %p143, %p144
    %p146 = scmp.ne.s32.totalorder %s137, %s138
    %p147 = scmp.eq.s32.totalorder %s22, 0
    %p148 = por %p146, %p147
    %p149 = scmp.ne.s32.totalorder %s137, %s138
    %p150 = scmp.eq.s32.totalorder %s23, 1
    %p151 = por %p149, %p150
    %p153 = scmp.ne.s32.totalorder %s138, %s152
    %p154 = scmp.eq.s32.totalorder %s23, 0
    %p155 = por %p153, %p154
    %s157 = sadd.s32 %s156, 1
    %p160 = scmp.eq.s32.totalorder %s17, 1
    %p161 = scmp.ne.s32.totalorder %s156, %s158
    %p162 = scmp.eq.s32.totalorder %s17, 0
    %p163 = por %p161, %p162
    %p164 = scmp.ne.s32.totalorder %s156, %s158
    %p165 = scmp.eq.s32.totalorder %s22, 1
    %p166 = por %p164, %p165
    %p167 = scmp.ne.s32.totalorder %s158, %s159
    %p168 = scmp.eq.s32.totalorder %s22, 0
    %p169 = por %p167, %p168
    %p170 = scmp.ne.s32.totalorder %s158, %s159
    %p171 = scmp.eq.s32.totalorder %s23, 1
    %p172 = por %p170, %p171
    %p174 = scmp.ne.s32.totalorder %s159, %s173
    %p175 = scmp.eq.s32.totalorder %s23, 0
    %p176 = por %p174, %p175
    %s178 = sadd.s32 %s177, 1
    %p181 = scmp.eq.s32.totalorder %s17, 1
    %p182 = scmp.ne.s32.totalorder %s177, %s179
    %p183 = scmp.eq.s32.totalorder %s17, 0
    %p184 = por %p182, %p183
    %p185 = scmp.ne.s32.totalorder %s177, %s179
    %p186 = scmp.eq.s32.totalorder %s22, 1
    %p187 = por %p185, %p186
    %p188 = scmp.ne.s32.totalorder %s179, %s180
    %p189 = scmp.eq.s32.totalorder %s22, 0
    %p190 = por %p188, %p189
    %p191 = scmp.ne.s32.totalorder %s179, %s180
    %p192 = scmp.eq.s32.totalorder %s23, 1
    %p193 = por %p191, %p192
    %p195 = scmp.ne.s32.totalorder %s180, %s194
    %p196 = scmp.eq.s32.totalorder %s23, 0
    %p197 = por %p195, %p196
    %s199 = sadd.s32 %s198, 1
    %p202 = scmp.eq.s32.totalorder %s17, 1
    %p203 = scmp.ne.s32.totalorder %s198, %s200
    %p204 = scmp.eq.s32.totalorder %s17, 0
    %p205 = por %p203, %p204
    %p206 = scmp.ne.s32.totalorder %s198, %s200
    %p207 = scmp.eq.s32.totalorder %s22, 1
    %p208 = por %p206, %p207
    %p209 = scmp.ne.s32.totalorder %s200, %s201
    %p210 = scmp.eq.s32.totalorder %s22, 0
    %p211 = por %p209, %p210
    %p212 = scmp.ne.s32.totalorder %s200, %s201
    %p213 = scmp.eq.s32.totalorder %s23, 1
    %p214 = por %p212, %p213
    %p216 = scmp.ne.s32.totalorder %s201, %s215
    %p217 = scmp.eq.s32.totalorder %s23, 0
    %p218 = por %p216, %p217
    %s220 = sadd.s32 %s219, 1
    %p223 = scmp.eq.s32.totalorder %s17, 1
    %p224 = scmp.ne.s32.totalorder %s219, %s221
    %p225 = scmp.eq.s32.totalorder %s17, 0
    %p226 = por %p224, %p225
    %p227 = scmp.ne.s32.totalorder %s219, %s221
    %p228 = scmp.eq.s32.totalorder %s22, 1
    %p229 = por %p227, %p228
    %p230 = scmp.ne.s32.totalorder %s221, %s222
    %p231 = scmp.eq.s32.totalorder %s22, 0
    %p232 = por %p230, %p231
    %p233 = scmp.ne.s32.totalorder %s221, %s222
    %p234 = scmp.eq.s32.totalorder %s23, 1
    %p235 = por %p233, %p234
    %p237 = scmp.ne.s32.totalorder %s222, %s236
    %p238 = scmp.eq.s32.totalorder %s23, 0
    %p239 = por %p237, %p238
    %s241 = sadd.s32 %s240, 1
    %p244 = scmp.eq.s32.totalorder %s17, 1
    %p245 = scmp.ne.s32.totalorder %s240, %s242
    %p246 = scmp.eq.s32.totalorder %s17, 0
    %p247 = por %p245, %p246
    %p248 = scmp.ne.s32.totalorder %s240, %s242
    %p249 = scmp.eq.s32.totalorder %s22, 1
    %p250 = por %p248, %p249
    %p251 = scmp.ne.s32.totalorder %s242, %s243
    %p252 = scmp.eq.s32.totalorder %s22, 0
    %p253 = por %p251, %p252
    %p254 = scmp.ne.s32.totalorder %s242, %s243
    %p255 = scmp.eq.s32.totalorder %s23, 1
    %p256 = por %p254, %p255
    %p258 = scmp.ne.s32.totalorder %s243, %s257
    %p259 = scmp.eq.s32.totalorder %s23, 0
    %p260 = por %p258, %p259
    %s261 = ssub.s32 %s17, %s24
    %p262 = scmp.eq.s32.totalorder %s261, 0
    %s264 = sadd.s32 %s263, 1
    %s265 = scalar_select %p262, %s263, %s264
    %p268 = pneg %p262
    %p269 = scmp.eq.s32.totalorder %s17, 1
    %p270 = por %p268, %p269
    %p271 = scmp.ne.s32.totalorder %s263, %s266
    %p272 = scmp.eq.s32.totalorder %s17, 0
    %p273 = por %p271, %p272
    %p274 = scmp.ne.s32.totalorder %s263, %s266
    %p275 = scmp.eq.s32.totalorder %s22, 1
    %p276 = por %p274, %p275
    %p277 = scmp.ne.s32.totalorder %s266, %s267
    %p278 = scmp.eq.s32.totalorder %s22, 0
    %p279 = por %p277, %p278
    %p280 = scmp.ne.s32.totalorder %s266, %s267
    %p281 = scmp.eq.s32.totalorder %s23, 1
    %p282 = por %p280, %p281
    %p284 = scmp.ne.s32.totalorder %s267, %s283
    %p285 = scmp.eq.s32.totalorder %s23, 0
    %p286 = por %p284, %p285
    %p287 = scmp.le.s32.totalorder 1, %s17
    %p288 = scmp.lt.s32.totalorder %s17, 3
    %p289 = pnand %p287, %p288
    %p290 = pneg %p289
    // Predicated region
    $region9: #{_lambda_.1} parent=5 // pred_check
      _
    $region10: #{_lambda_.1} parent=5 // pred_check_branch
      %292 = sbr.rel (%p289) target = $region12
    $region11: #{_lambda_.1} parent=5 // pred_region
      %s293 = ssub.s32 %s17, 1
      // Predicated region
      $region13: #{_lambda_.1} parent=11 // pred_check
        %p294 = pneg %p64
      $region14: #{_lambda_.1} parent=11 // pred_check_branch
        %296 = sbr.rel (%p294) target = $region16
      $region15: #{_lambda_.1} parent=11 // pred_region
        _
      $region16: #{_lambda_.1} parent=11 // pred_fallthru
        _
      // Predicated region
      $region17: #{_lambda_.1} parent=11 // pred_check
        %p297 = pneg %p85
      $region18: #{_lambda_.1} parent=11 // pred_check_branch
        %299 = sbr.rel (%p297) target = $region20
      $region19: #{_lambda_.1} parent=11 // pred_region
        _
      $region20: #{_lambda_.1} parent=11 // pred_fallthru
        _
      // Predicated region
      $region21: #{_lambda_.1} parent=11 // pred_check
        %p300 = pneg %p106
      $region22: #{_lambda_.1} parent=11 // pred_check_branch
        %302 = sbr.rel (%p300) target = $region24
      $region23: #{_lambda_.1} parent=11 // pred_region
        _
      $region24: #{_lambda_.1} parent=11 // pred_fallthru
        _
      // Predicated region
      $region25: #{_lambda_.1} parent=11 // pred_check
        %p303 = pneg %p127
      $region26: #{_lambda_.1} parent=11 // pred_check_branch
        %305 = sbr.rel (%p303) target = $region28
      $region27: #{_lambda_.1} parent=11 // pred_region
        _
      $region28: #{_lambda_.1} parent=11 // pred_fallthru
        _
      // Predicated region
      $region29: #{_lambda_.1} parent=11 // pred_check
        %p306 = pneg %p148
      $region30: #{_lambda_.1} parent=11 // pred_check_branch
        %308 = sbr.rel (%p306) target = $region32
      $region31: #{_lambda_.1} parent=11 // pred_region
        _
      $region32: #{_lambda_.1} parent=11 // pred_fallthru
        _
      // Predicated region
      $region33: #{_lambda_.1} parent=11 // pred_check
        %p309 = pneg %p169
      $region34: #{_lambda_.1} parent=11 // pred_check_branch
        %311 = sbr.rel (%p309) target = $region36
      $region35: #{_lambda_.1} parent=11 // pred_region
        _
      $region36: #{_lambda_.1} parent=11 // pred_fallthru
        _
      // Predicated region
      $region37: #{_lambda_.1} parent=11 // pred_check
        %p312 = pneg %p190
      $region38: #{_lambda_.1} parent=11 // pred_check_branch
        %314 = sbr.rel (%p312) target = $region40
      $region39: #{_lambda_.1} parent=11 // pred_region
        _
      $region40: #{_lambda_.1} parent=11 // pred_fallthru
        _
      // Predicated region
      $region41: #{_lambda_.1} parent=11 // pred_check
        %p315 = pneg %p211
      $region42: #{_lambda_.1} parent=11 // pred_check_branch
        %317 = sbr.rel (%p315) target = $region44
      $region43: #{_lambda_.1} parent=11 // pred_region
        _
      $region44: #{_lambda_.1} parent=11 // pred_fallthru
        _
      // Predicated region
      $region45: #{_lambda_.1} parent=11 // pred_check
        %p318 = pneg %p232
      $region46: #{_lambda_.1} parent=11 // pred_check_branch
        %320 = sbr.rel (%p318) target = $region48
      $region47: #{_lambda_.1} parent=11 // pred_region
        _
      $region48: #{_lambda_.1} parent=11 // pred_fallthru
        _
      // Predicated region
      $region49: #{_lambda_.1} parent=11 // pred_check
        %p321 = pneg %p253
      $region50: #{_lambda_.1} parent=11 // pred_check_branch
        %323 = sbr.rel (%p321) target = $region52
      $region51: #{_lambda_.1} parent=11 // pred_region
        _
      $region52: #{_lambda_.1} parent=11 // pred_fallthru
        _
    $region12: #{_lambda_.1} parent=5 // pred_fallthru
      _
    %p324 = scmp.lt.s32.totalorder %s17, 2
    // Predicated region
    $region53: #{_lambda_.1} parent=5 // pred_check
      %p325 = pneg %p324
    $region54: #{_lambda_.1} parent=5 // pred_check_branch
      %327 = sbr.rel (%p325) target = $region56
    $region55: #{_lambda_.1} parent=5 // pred_region
      // Predicated region
      $region57: #{_lambda_.1} parent=55 // pred_check
        %p328 = pneg %p37
      $region58: #{_lambda_.1} parent=55 // pred_check_branch
        %330 = sbr.rel (%p328) target = $region60
      $region59: #{_lambda_.1} parent=55 // pred_region
        %s331 = smul.u32 128, %s17
        %p332 = scmp.lt.s32.totalorder %s331, 255
        %s333 = scalar_select %p332, %s331, 255
        %s334 = smul.addr %s333, 2
        %s335 = smul.addr %s334, 4
        %s336 = scalar_lea.vmem %s0, %s335
        %s337 = smul.u32 128, %s17
      $region60: #{_lambda_.1} parent=55 // pred_fallthru
        _
    $region56: #{_lambda_.1} parent=5 // pred_fallthru
      _
    %p338 = scmp.le.s32.totalorder 1, %s17
    %p339 = scmp.lt.s32.totalorder %s17, 3
    %p340 = pnand %p338, %p339
    %p341 = pneg %p340
    // Predicated region
    $region61: #{_lambda_.1} parent=5 // pred_check
      _
    $region62: #{_lambda_.1} parent=5 // pred_check_branch
      %343 = sbr.rel (%p340) target = $region64
    $region63: #{_lambda_.1} parent=5 // pred_region
      %s344 = ssub.s32 %s17, 1
      %s345 = smul.u32 128, %s22
      %p346 = scmp.lt.s32.totalorder %s345, 255
      %s347 = scalar_select %p346, %s345, 255
      %s348 = smul.addr %s347, 2
      %s349 = smul.addr %s348, 4
      %s350 = scalar_lea.vmem %s0, %s349
      %p351 = pneg %p43
      %p352 = pneg %p40
      %p353 = pneg %p64
      %p354 = pneg %p61
      %p355 = pneg %p85
      %p356 = pneg %p82
      %p357 = pneg %p106
      %p358 = pneg %p103
      %p359 = pneg %p127
      %p360 = pneg %p124
      %p361 = pneg %p148
      %p362 = pneg %p145
      %p363 = pneg %p169
      %p364 = pneg %p166
      %p365 = pneg %p190
      %p366 = pneg %p187
      %p367 = pneg %p211
      %p368 = pneg %p208
      %p369 = pneg %p232
      %p370 = pneg %p229
      %p371 = pneg %p253
      %p372 = pneg %p250
      %p373 = pneg %p279
      %p374 = pneg %p276
      %s375 = smul.u32 2, %s22
      %p376 = scmp.lt.s32.totalorder %s375, 3
      %s377 = scalar_select %p376, %s375, 3
      %s378 = smul.addr %s377, 8
      %s379 = scalar_lea.vmem %s11, %s378
      %s380 = smul.u32 128, %s22
      %p381 = scmp.lt.s32.totalorder %s380, 255
      %s382 = scalar_select %p381, %s380, 255
      %s383 = smul.addr %s382, 2
      %s384 = smul.addr %s383, 4
      %s385 = scalar_lea.vmem %s0, %s384
      %s386 = smul.u32 128, %s22
      %s387 = smul.u32 2, %s22
      %p388 = scmp.lt.s32.totalorder %s387, 3
      %s389 = scalar_select %p388, %s387, 3
      %s390 = smul.addr %s389, 8
      %s391 = scalar_lea.vmem %s11, %s390
      %s392 = smul.u32 2, %s22
      %v394 = vld [vmem:[%s385] sm:$0xff]
      %v395 = vld [vmem:[%s385 + $0x8] sm:$0xff]
      %v396 = vld [vmem:[%s385 + $0x10] sm:$0xff]
      %v397 = vld [vmem:[%s385 + $0x18] sm:$0xff]
      %v398 = vld [vmem:[%s385 + $0x20] sm:$0xff]
      %v399 = vld [vmem:[%s385 + $0x28] sm:$0xff]
      %v400 = vld [vmem:[%s385 + $0x30] sm:$0xff]
      %v401 = vld [vmem:[%s385 + $0x38] sm:$0xff]
      %v402 = vld [vmem:[%s385 + $0x40] sm:$0xff]
      %v403 = vld [vmem:[%s385 + $0x48] sm:$0xff]
      %v404 = vld [vmem:[%s385 + $0x50] sm:$0xff]
      %v405 = vld [vmem:[%s385 + $0x58] sm:$0xff]
      %v406 = vld [vmem:[%s385 + $0x60] sm:$0xff]
      %v407 = vld [vmem:[%s385 + $0x68] sm:$0xff]
      %v408 = vld [vmem:[%s385 + $0x70] sm:$0xff]
      %v409 = vld [vmem:[%s385 + $0x78] sm:$0xff]
      %v410 = vld [vmem:[%s385 + $0x80] sm:$0xff]
      %v411 = vld [vmem:[%s385 + $0x88] sm:$0xff]
      %v412 = vld [vmem:[%s385 + $0x90] sm:$0xff]
      %v413 = vld [vmem:[%s385 + $0x98] sm:$0xff]
      %v414 = vld [vmem:[%s385 + $0xa0] sm:$0xff]
      %v415 = vld [vmem:[%s385 + $0xa8] sm:$0xff]
      %v416 = vld [vmem:[%s385 + $0xb0] sm:$0xff]
      %v417 = vld [vmem:[%s385 + $0xb8] sm:$0xff]
      %v418 = vld [vmem:[%s385 + $0xc0] sm:$0xff]
      %v419 = vld [vmem:[%s385 + $0xc8] sm:$0xff]
      %v420 = vld [vmem:[%s385 + $0xd0] sm:$0xff]
      %v421 = vld [vmem:[%s385 + $0xd8] sm:$0xff]
      %v422 = vld [vmem:[%s385 + $0xe0] sm:$0xff]
      %v423 = vld [vmem:[%s385 + $0xe8] sm:$0xff]
      %v424 = vld [vmem:[%s385 + $0xf0] sm:$0xff]
      %v425 = vld [vmem:[%s385 + $0xf8] sm:$0xff]
      %v426 = vld [vmem:[%s385 + $0x100] sm:$0xff]
      %v427 = vld [vmem:[%s385 + $0x108] sm:$0xff]
      %v428 = vld [vmem:[%s385 + $0x110] sm:$0xff]
      %v429 = vld [vmem:[%s385 + $0x118] sm:$0xff]
      %v430 = vld [vmem:[%s385 + $0x120] sm:$0xff]
      %v431 = vld [vmem:[%s385 + $0x128] sm:$0xff]
      %v432 = vld [vmem:[%s385 + $0x130] sm:$0xff]
      %v433 = vld [vmem:[%s385 + $0x138] sm:$0xff]
      %v434 = vld [vmem:[%s385 + $0x140] sm:$0xff]
      %v435 = vld [vmem:[%s385 + $0x148] sm:$0xff]
      %v436 = vld [vmem:[%s385 + $0x150] sm:$0xff]
      %v437 = vld [vmem:[%s385 + $0x158] sm:$0xff]
      %v438 = vld [vmem:[%s385 + $0x160] sm:$0xff]
      %v439 = vld [vmem:[%s385 + $0x168] sm:$0xff]
      %v440 = vld [vmem:[%s385 + $0x170] sm:$0xff]
      %v441 = vld [vmem:[%s385 + $0x178] sm:$0xff]
      %v442 = vld [vmem:[%s385 + $0x180] sm:$0xff]
      %v443 = vld [vmem:[%s385 + $0x188] sm:$0xff]
      %v444 = vld [vmem:[%s385 + $0x190] sm:$0xff]
      %v445 = vld [vmem:[%s385 + $0x198] sm:$0xff]
      %v446 = vld [vmem:[%s385 + $0x1a0] sm:$0xff]
      %v447 = vld [vmem:[%s385 + $0x1a8] sm:$0xff]
      %v448 = vld [vmem:[%s385 + $0x1b0] sm:$0xff]
      %v449 = vld [vmem:[%s385 + $0x1b8] sm:$0xff]
      %v450 = vld [vmem:[%s385 + $0x1c0] sm:$0xff]
      %v451 = vld [vmem:[%s385 + $0x1c8] sm:$0xff]
      %v452 = vld [vmem:[%s385 + $0x1d0] sm:$0xff]
      %v453 = vld [vmem:[%s385 + $0x1d8] sm:$0xff]
      %v454 = vld [vmem:[%s385 + $0x1e0] sm:$0xff]
      %v455 = vld [vmem:[%s385 + $0x1e8] sm:$0xff]
      %v456 = vld [vmem:[%s385 + $0x1f0] sm:$0xff]
      %v457 = vld [vmem:[%s385 + $0x1f8] sm:$0xff]
      %v458 = vld [vmem:[%s385 + $0x200] sm:$0xff]
      %v459 = vld [vmem:[%s385 + $0x208] sm:$0xff]
      %v460 = vld [vmem:[%s385 + $0x210] sm:$0xff]
      %v461 = vld [vmem:[%s385 + $0x218] sm:$0xff]
      %v462 = vld [vmem:[%s385 + $0x220] sm:$0xff]
      %v463 = vld [vmem:[%s385 + $0x228] sm:$0xff]
      %v464 = vld [vmem:[%s385 + $0x230] sm:$0xff]
      %v465 = vld [vmem:[%s385 + $0x238] sm:$0xff]
      %v466 = vld [vmem:[%s385 + $0x240] sm:$0xff]
      %v467 = vld [vmem:[%s385 + $0x248] sm:$0xff]
      %v468 = vld [vmem:[%s385 + $0x250] sm:$0xff]
      %v469 = vld [vmem:[%s385 + $0x258] sm:$0xff]
      %v470 = vld [vmem:[%s385 + $0x260] sm:$0xff]
      %v471 = vld [vmem:[%s385 + $0x268] sm:$0xff]
      %v472 = vld [vmem:[%s385 + $0x270] sm:$0xff]
      %v473 = vld [vmem:[%s385 + $0x278] sm:$0xff]
      %v474 = vld [vmem:[%s385 + $0x280] sm:$0xff]
      %v475 = vld [vmem:[%s385 + $0x288] sm:$0xff]
      %v476 = vld [vmem:[%s385 + $0x290] sm:$0xff]
      %v477 = vld [vmem:[%s385 + $0x298] sm:$0xff]
      %v478 = vld [vmem:[%s385 + $0x2a0] sm:$0xff]
      %v479 = vld [vmem:[%s385 + $0x2a8] sm:$0xff]
      %v480 = vld [vmem:[%s385 + $0x2b0] sm:$0xff]
      %v481 = vld [vmem:[%s385 + $0x2b8] sm:$0xff]
      %v482 = vld [vmem:[%s385 + $0x2c0] sm:$0xff]
      %v483 = vld [vmem:[%s385 + $0x2c8] sm:$0xff]
      %v484 = vld [vmem:[%s385 + $0x2d0] sm:$0xff]
      %v485 = vld [vmem:[%s385 + $0x2d8] sm:$0xff]
      %v486 = vld [vmem:[%s385 + $0x2e0] sm:$0xff]
      %v487 = vld [vmem:[%s385 + $0x2e8] sm:$0xff]
      %v488 = vld [vmem:[%s385 + $0x2f0] sm:$0xff]
      %v489 = vld [vmem:[%s385 + $0x2f8] sm:$0xff]
      %v490 = vld [vmem:[%s385 + $0x300] sm:$0xff]
      %v491 = vld [vmem:[%s385 + $0x308] sm:$0xff]
      %v492 = vld [vmem:[%s385 + $0x310] sm:$0xff]
      %v493 = vld [vmem:[%s385 + $0x318] sm:$0xff]
      %v494 = vld [vmem:[%s385 + $0x320] sm:$0xff]
      %v495 = vld [vmem:[%s385 + $0x328] sm:$0xff]
      %v496 = vld [vmem:[%s385 + $0x330] sm:$0xff]
      %v497 = vld [vmem:[%s385 + $0x338] sm:$0xff]
      %v498 = vld [vmem:[%s385 + $0x340] sm:$0xff]
      %v499 = vld [vmem:[%s385 + $0x348] sm:$0xff]
      %v500 = vld [vmem:[%s385 + $0x350] sm:$0xff]
      %v501 = vld [vmem:[%s385 + $0x358] sm:$0xff]
      %v502 = vld [vmem:[%s385 + $0x360] sm:$0xff]
      %v503 = vld [vmem:[%s385 + $0x368] sm:$0xff]
      %v504 = vld [vmem:[%s385 + $0x370] sm:$0xff]
      %v505 = vld [vmem:[%s385 + $0x378] sm:$0xff]
      %v506 = vld [vmem:[%s385 + $0x380] sm:$0xff]
      %v507 = vld [vmem:[%s385 + $0x388] sm:$0xff]
      %v508 = vld [vmem:[%s385 + $0x390] sm:$0xff]
      %v509 = vld [vmem:[%s385 + $0x398] sm:$0xff]
      %v510 = vld [vmem:[%s385 + $0x3a0] sm:$0xff]
      %v511 = vld [vmem:[%s385 + $0x3a8] sm:$0xff]
      %v512 = vld [vmem:[%s385 + $0x3b0] sm:$0xff]
      %v513 = vld [vmem:[%s385 + $0x3b8] sm:$0xff]
      %v514 = vld [vmem:[%s385 + $0x3c0] sm:$0xff]
      %v515 = vld [vmem:[%s385 + $0x3c8] sm:$0xff]
      %v516 = vld [vmem:[%s385 + $0x3d0] sm:$0xff]
      %v517 = vld [vmem:[%s385 + $0x3d8] sm:$0xff]
      %v518 = vld [vmem:[%s385 + $0x3e0] sm:$0xff]
      %v519 = vld [vmem:[%s385 + $0x3e8] sm:$0xff]
      %v520 = vld [vmem:[%s385 + $0x3f0] sm:$0xff]
      %v521 = vld [vmem:[%s385 + $0x3f8] sm:$0xff]
      %v522 = vld [vmem:[%s1] sm:$0xf]
      %v523 = vld [vmem:[%s1 + $0x4] sm:$0xf]
      %v524 = vld [vmem:[%s1 + $0x8] sm:$0xf]
      %v525 = vld [vmem:[%s1 + $0xc] sm:$0xf]
      %v526 = vld [vmem:[%s1 + $0x10] sm:$0xf]
      %v527 = vld [vmem:[%s1 + $0x14] sm:$0xf]
      %v528 = vld [vmem:[%s1 + $0x18] sm:$0xf]
      %v529 = vld [vmem:[%s1 + $0x1c] sm:$0xf]
      %v530 = vld [vmem:[%s1 + $0x20] sm:$0xf]
      %v531 = vld [vmem:[%s1 + $0x24] sm:$0xf]
      %v532 = vld [vmem:[%s1 + $0x28] sm:$0xf]
      %v533 = vld [vmem:[%s1 + $0x2c] sm:$0xf]
      %v534 = vld [vmem:[%s1 + $0x30] sm:$0xf]
      %v535 = vld [vmem:[%s1 + $0x34] sm:$0xf]
      %v536 = vld [vmem:[%s1 + $0x38] sm:$0xf]
      %v537 = vld [vmem:[%s1 + $0x3c] sm:$0xf]
      %v538 = vld [vmem:[%s1 + $0x40] sm:$0xf]
      %v539 = vld [vmem:[%s1 + $0x44] sm:$0xf]
      %v540 = vld [vmem:[%s1 + $0x48] sm:$0xf]
      %v541 = vld [vmem:[%s1 + $0x4c] sm:$0xf]
      %v542 = vld [vmem:[%s1 + $0x50] sm:$0xf]
      %v543 = vld [vmem:[%s1 + $0x54] sm:$0xf]
      %v544 = vld [vmem:[%s1 + $0x58] sm:$0xf]
      %v545 = vld [vmem:[%s1 + $0x5c] sm:$0xf]
      %v546 = vld [vmem:[%s1 + $0x60] sm:$0xf]
      %v547 = vld [vmem:[%s1 + $0x64] sm:$0xf]
      %v548 = vld [vmem:[%s1 + $0x68] sm:$0xf]
      %v549 = vld [vmem:[%s1 + $0x6c] sm:$0xf]
      %v550 = vld [vmem:[%s1 + $0x70] sm:$0xf]
      %v551 = vld [vmem:[%s1 + $0x74] sm:$0xf]
      %v552 = vld [vmem:[%s1 + $0x78] sm:$0xf]
      %v553 = vld [vmem:[%s1 + $0x7c] sm:$0xf]
      %v554 = vld [vmem:[%s2] sm:$0x1]
      %v556 = vlaneseq
      %v557 = vshrl.u32 %v556, 7
      %v558 = vsub.s32 0, %v557
      %v559 = vrot.slane %v554, %v558
      %v689 = vunpack.c.l.b16 %v394
      %v690 = vunpack.c.h.b16 %v394
      %v691 = vunpack.c.l.b16 %v395
      %v692 = vunpack.c.h.b16 %v395
      %v693 = vunpack.c.l.b16 %v396
      %v694 = vunpack.c.h.b16 %v396
      %v695 = vunpack.c.l.b16 %v397
      %v696 = vunpack.c.h.b16 %v397
      %v697 = vunpack.c.l.b16 %v398
      %v698 = vunpack.c.h.b16 %v398
      %v699 = vunpack.c.l.b16 %v399
      %v700 = vunpack.c.h.b16 %v399
      %v701 = vunpack.c.l.b16 %v400
      %v702 = vunpack.c.h.b16 %v400
      %v703 = vunpack.c.l.b16 %v401
      %v704 = vunpack.c.h.b16 %v401
      %v705 = vunpack.c.l.b16 %v402
      %v706 = vunpack.c.h.b16 %v402
      %v707 = vunpack.c.l.b16 %v403
      %v708 = vunpack.c.h.b16 %v403
      %v709 = vunpack.c.l.b16 %v404
      %v710 = vunpack.c.h.b16 %v404
      %v711 = vunpack.c.l.b16 %v405
      %v712 = vunpack.c.h.b16 %v405
      %v713 = vunpack.c.l.b16 %v406
      %v714 = vunpack.c.h.b16 %v406
      %v715 = vunpack.c.l.b16 %v407
      %v716 = vunpack.c.h.b16 %v407
      %v717 = vunpack.c.l.b16 %v408
      %v718 = vunpack.c.h.b16 %v408
      %v719 = vunpack.c.l.b16 %v409
      %v720 = vunpack.c.h.b16 %v409
      %v721 = vunpack.c.l.b16 %v410
      %v722 = vunpack.c.h.b16 %v410
      %v723 = vunpack.c.l.b16 %v411
      %v724 = vunpack.c.h.b16 %v411
      %v725 = vunpack.c.l.b16 %v412
      %v726 = vunpack.c.h.b16 %v412
      %v727 = vunpack.c.l.b16 %v413
      %v728 = vunpack.c.h.b16 %v413
      %v729 = vunpack.c.l.b16 %v414
      %v730 = vunpack.c.h.b16 %v414
      %v731 = vunpack.c.l.b16 %v415
      %v732 = vunpack.c.h.b16 %v415
      %v733 = vunpack.c.l.b16 %v416
      %v734 = vunpack.c.h.b16 %v416
      %v735 = vunpack.c.l.b16 %v417
      %v736 = vunpack.c.h.b16 %v417
      %v737 = vunpack.c.l.b16 %v418
      %v738 = vunpack.c.h.b16 %v418
      %v739 = vunpack.c.l.b16 %v419
      %v740 = vunpack.c.h.b16 %v419
      %v741 = vunpack.c.l.b16 %v420
      %v742 = vunpack.c.h.b16 %v420
      %v743 = vunpack.c.l.b16 %v421
      %v744 = vunpack.c.h.b16 %v421
      %v745 = vunpack.c.l.b16 %v422
      %v746 = vunpack.c.h.b16 %v422
      %v747 = vunpack.c.l.b16 %v423
      %v748 = vunpack.c.h.b16 %v423
      %v749 = vunpack.c.l.b16 %v424
      %v750 = vunpack.c.h.b16 %v424
      %v751 = vunpack.c.l.b16 %v425
      %v752 = vunpack.c.h.b16 %v425
      %v753 = vunpack.c.l.b16 %v426
      %v754 = vunpack.c.h.b16 %v426
      %v755 = vunpack.c.l.b16 %v427
      %v756 = vunpack.c.h.b16 %v427
      %v757 = vunpack.c.l.b16 %v428
      %v758 = vunpack.c.h.b16 %v428
      %v759 = vunpack.c.l.b16 %v429
      %v760 = vunpack.c.h.b16 %v429
      %v761 = vunpack.c.l.b16 %v430
      %v762 = vunpack.c.h.b16 %v430
      %v763 = vunpack.c.l.b16 %v431
      %v764 = vunpack.c.h.b16 %v431
      %v765 = vunpack.c.l.b16 %v432
      %v766 = vunpack.c.h.b16 %v432
      %v767 = vunpack.c.l.b16 %v433
      %v768 = vunpack.c.h.b16 %v433
      %v769 = vunpack.c.l.b16 %v434
      %v770 = vunpack.c.h.b16 %v434
      %v771 = vunpack.c.l.b16 %v435
      %v772 = vunpack.c.h.b16 %v435
      %v773 = vunpack.c.l.b16 %v436
      %v774 = vunpack.c.h.b16 %v436
      %v775 = vunpack.c.l.b16 %v437
      %v776 = vunpack.c.h.b16 %v437
      %v777 = vunpack.c.l.b16 %v438
      %v778 = vunpack.c.h.b16 %v438
      %v779 = vunpack.c.l.b16 %v439
      %v780 = vunpack.c.h.b16 %v439
      %v781 = vunpack.c.l.b16 %v440
      %v782 = vunpack.c.h.b16 %v440
      %v783 = vunpack.c.l.b16 %v441
      %v784 = vunpack.c.h.b16 %v441
      %v785 = vunpack.c.l.b16 %v442
      %v786 = vunpack.c.h.b16 %v442
      %v787 = vunpack.c.l.b16 %v443
      %v788 = vunpack.c.h.b16 %v443
      %v789 = vunpack.c.l.b16 %v444
      %v790 = vunpack.c.h.b16 %v444
      %v791 = vunpack.c.l.b16 %v445
      %v792 = vunpack.c.h.b16 %v445
      %v793 = vunpack.c.l.b16 %v446
      %v794 = vunpack.c.h.b16 %v446
      %v795 = vunpack.c.l.b16 %v447
      %v796 = vunpack.c.h.b16 %v447
      %v797 = vunpack.c.l.b16 %v448
      %v798 = vunpack.c.h.b16 %v448
      %v799 = vunpack.c.l.b16 %v449
      %v800 = vunpack.c.h.b16 %v449
      %v801 = vunpack.c.l.b16 %v450
      %v802 = vunpack.c.h.b16 %v450
      %v803 = vunpack.c.l.b16 %v451
      %v804 = vunpack.c.h.b16 %v451
      %v805 = vunpack.c.l.b16 %v452
      %v806 = vunpack.c.h.b16 %v452
      %v807 = vunpack.c.l.b16 %v453
      %v808 = vunpack.c.h.b16 %v453
      %v809 = vunpack.c.l.b16 %v454
      %v810 = vunpack.c.h.b16 %v454
      %v811 = vunpack.c.l.b16 %v455
      %v812 = vunpack.c.h.b16 %v455
      %v813 = vunpack.c.l.b16 %v456
      %v814 = vunpack.c.h.b16 %v456
      %v815 = vunpack.c.l.b16 %v457
      %v816 = vunpack.c.h.b16 %v457
      %v817 = vunpack.c.l.b16 %v458
      %v818 = vunpack.c.h.b16 %v458
      %v819 = vunpack.c.l.b16 %v459
      %v820 = vunpack.c.h.b16 %v459
      %v821 = vunpack.c.l.b16 %v460
      %v822 = vunpack.c.h.b16 %v460
      %v823 = vunpack.c.l.b16 %v461
      %v824 = vunpack.c.h.b16 %v461
      %v825 = vunpack.c.l.b16 %v462
      %v826 = vunpack.c.h.b16 %v462
      %v827 = vunpack.c.l.b16 %v463
      %v828 = vunpack.c.h.b16 %v463
      %v829 = vunpack.c.l.b16 %v464
      %v830 = vunpack.c.h.b16 %v464
      %v831 = vunpack.c.l.b16 %v465
      %v832 = vunpack.c.h.b16 %v465
      %v833 = vunpack.c.l.b16 %v466
      %v834 = vunpack.c.h.b16 %v466
      %v835 = vunpack.c.l.b16 %v467
      %v836 = vunpack.c.h.b16 %v467
      %v837 = vunpack.c.l.b16 %v468
      %v838 = vunpack.c.h.b16 %v468
      %v839 = vunpack.c.l.b16 %v469
      %v840 = vunpack.c.h.b16 %v469
      %v841 = vunpack.c.l.b16 %v470
      %v842 = vunpack.c.h.b16 %v470
      %v843 = vunpack.c.l.b16 %v471
      %v844 = vunpack.c.h.b16 %v471
      %v845 = vunpack.c.l.b16 %v472
      %v846 = vunpack.c.h.b16 %v472
      %v847 = vunpack.c.l.b16 %v473
      %v848 = vunpack.c.h.b16 %v473
      %v849 = vunpack.c.l.b16 %v474
      %v850 = vunpack.c.h.b16 %v474
      %v851 = vunpack.c.l.b16 %v475
      %v852 = vunpack.c.h.b16 %v475
      %v853 = vunpack.c.l.b16 %v476
      %v854 = vunpack.c.h.b16 %v476
      %v855 = vunpack.c.l.b16 %v477
      %v856 = vunpack.c.h.b16 %v477
      %v857 = vunpack.c.l.b16 %v478
      %v858 = vunpack.c.h.b16 %v478
      %v859 = vunpack.c.l.b16 %v479
      %v860 = vunpack.c.h.b16 %v479
      %v861 = vunpack.c.l.b16 %v480
      %v862 = vunpack.c.h.b16 %v480
      %v863 = vunpack.c.l.b16 %v481
      %v864 = vunpack.c.h.b16 %v481
      %v865 = vunpack.c.l.b16 %v482
      %v866 = vunpack.c.h.b16 %v482
      %v867 = vunpack.c.l.b16 %v483
      %v868 = vunpack.c.h.b16 %v483
      %v869 = vunpack.c.l.b16 %v484
      %v870 = vunpack.c.h.b16 %v484
      %v871 = vunpack.c.l.b16 %v485
      %v872 = vunpack.c.h.b16 %v485
      %v873 = vunpack.c.l.b16 %v486
      %v874 = vunpack.c.h.b16 %v486
      %v875 = vunpack.c.l.b16 %v487
      %v876 = vunpack.c.h.b16 %v487
      %v877 = vunpack.c.l.b16 %v488
      %v878 = vunpack.c.h.b16 %v488
      %v879 = vunpack.c.l.b16 %v489
      %v880 = vunpack.c.h.b16 %v489
      %v881 = vunpack.c.l.b16 %v490
      %v882 = vunpack.c.h.b16 %v490
      %v883 = vunpack.c.l.b16 %v491
      %v884 = vunpack.c.h.b16 %v491
      %v885 = vunpack.c.l.b16 %v492
      %v886 = vunpack.c.h.b16 %v492
      %v887 = vunpack.c.l.b16 %v493
      %v888 = vunpack.c.h.b16 %v493
      %v889 = vunpack.c.l.b16 %v494
      %v890 = vunpack.c.h.b16 %v494
      %v891 = vunpack.c.l.b16 %v495
      %v892 = vunpack.c.h.b16 %v495
      %v893 = vunpack.c.l.b16 %v496
      %v894 = vunpack.c.h.b16 %v496
      %v895 = vunpack.c.l.b16 %v497
      %v896 = vunpack.c.h.b16 %v497
      %v897 = vunpack.c.l.b16 %v498
      %v898 = vunpack.c.h.b16 %v498
      %v899 = vunpack.c.l.b16 %v499
      %v900 = vunpack.c.h.b16 %v499
      %v901 = vunpack.c.l.b16 %v500
      %v902 = vunpack.c.h.b16 %v500
      %v903 = vunpack.c.l.b16 %v501
      %v904 = vunpack.c.h.b16 %v501
      %v905 = vunpack.c.l.b16 %v502
      %v906 = vunpack.c.h.b16 %v502
      %v907 = vunpack.c.l.b16 %v503
      %v908 = vunpack.c.h.b16 %v503
      %v909 = vunpack.c.l.b16 %v504
      %v910 = vunpack.c.h.b16 %v504
      %v911 = vunpack.c.l.b16 %v505
      %v912 = vunpack.c.h.b16 %v505
      %v913 = vunpack.c.l.b16 %v506
      %v914 = vunpack.c.h.b16 %v506
      %v915 = vunpack.c.l.b16 %v507
      %v916 = vunpack.c.h.b16 %v507
      %v917 = vunpack.c.l.b16 %v508
      %v918 = vunpack.c.h.b16 %v508
      %v919 = vunpack.c.l.b16 %v509
      %v920 = vunpack.c.h.b16 %v509
      %v921 = vunpack.c.l.b16 %v510
      %v922 = vunpack.c.h.b16 %v510
      %v923 = vunpack.c.l.b16 %v511
      %v924 = vunpack.c.h.b16 %v511
      %v925 = vunpack.c.l.b16 %v512
      %v926 = vunpack.c.h.b16 %v512
      %v927 = vunpack.c.l.b16 %v513
      %v928 = vunpack.c.h.b16 %v513
      %v929 = vunpack.c.l.b16 %v514
      %v930 = vunpack.c.h.b16 %v514
      %v931 = vunpack.c.l.b16 %v515
      %v932 = vunpack.c.h.b16 %v515
      %v933 = vunpack.c.l.b16 %v516
      %v934 = vunpack.c.h.b16 %v516
      %v935 = vunpack.c.l.b16 %v517
      %v936 = vunpack.c.h.b16 %v517
      %v937 = vunpack.c.l.b16 %v518
      %v938 = vunpack.c.h.b16 %v518
      %v939 = vunpack.c.l.b16 %v519
      %v940 = vunpack.c.h.b16 %v519
      %v941 = vunpack.c.l.b16 %v520
      %v942 = vunpack.c.h.b16 %v520
      %v943 = vunpack.c.l.b16 %v521
      %v944 = vunpack.c.h.b16 %v521
      %v945 = vpack.c.b16 %v691, %v689
      %v946 = vpack.c.b16 %v692, %v690
      %v947 = vpack.c.b16 %v695, %v693
      %v948 = vpack.c.b16 %v696, %v694
      %v949 = vpack.c.b16 %v699, %v697
      %v950 = vpack.c.b16 %v700, %v698
      %v951 = vpack.c.b16 %v703, %v701
      %v952 = vpack.c.b16 %v704, %v702
      %v953 = vpack.c.b16 %v707, %v705
      %v954 = vpack.c.b16 %v708, %v706
      %v955 = vpack.c.b16 %v711, %v709
      %v956 = vpack.c.b16 %v712, %v710
      %v957 = vpack.c.b16 %v715, %v713
      %v958 = vpack.c.b16 %v716, %v714
      %v959 = vpack.c.b16 %v719, %v717
      %v960 = vpack.c.b16 %v720, %v718
      %v961 = vpack.c.b16 %v723, %v721
      %v962 = vpack.c.b16 %v724, %v722
      %v963 = vpack.c.b16 %v727, %v725
      %v964 = vpack.c.b16 %v728, %v726
      %v965 = vpack.c.b16 %v731, %v729
      %v966 = vpack.c.b16 %v732, %v730
      %v967 = vpack.c.b16 %v735, %v733
      %v968 = vpack.c.b16 %v736, %v734
      %v969 = vpack.c.b16 %v739, %v737
      %v970 = vpack.c.b16 %v740, %v738
      %v971 = vpack.c.b16 %v743, %v741
      %v972 = vpack.c.b16 %v744, %v742
      %v973 = vpack.c.b16 %v747, %v745
      %v974 = vpack.c.b16 %v748, %v746
      %v975 = vpack.c.b16 %v751, %v749
      %v976 = vpack.c.b16 %v752, %v750
      %v977 = vpack.c.b16 %v755, %v753
      %v978 = vpack.c.b16 %v756, %v754
      %v979 = vpack.c.b16 %v759, %v757
      %v980 = vpack.c.b16 %v760, %v758
      %v981 = vpack.c.b16 %v763, %v761
      %v982 = vpack.c.b16 %v764, %v762
      %v983 = vpack.c.b16 %v767, %v765
      %v984 = vpack.c.b16 %v768, %v766
      %v985 = vpack.c.b16 %v771, %v769
      %v986 = vpack.c.b16 %v772, %v770
      %v987 = vpack.c.b16 %v775, %v773
      %v988 = vpack.c.b16 %v776, %v774
      %v989 = vpack.c.b16 %v779, %v777
      %v990 = vpack.c.b16 %v780, %v778
      %v991 = vpack.c.b16 %v783, %v781
      %v992 = vpack.c.b16 %v784, %v782
      %v993 = vpack.c.b16 %v787, %v785
      %v994 = vpack.c.b16 %v788, %v786
      %v995 = vpack.c.b16 %v791, %v789
      %v996 = vpack.c.b16 %v792, %v790
      %v997 = vpack.c.b16 %v795, %v793
      %v998 = vpack.c.b16 %v796, %v794
      %v999 = vpack.c.b16 %v799, %v797
      %v1000 = vpack.c.b16 %v800, %v798
      %v1001 = vpack.c.b16 %v803, %v801
      %v1002 = vpack.c.b16 %v804, %v802
      %v1003 = vpack.c.b16 %v807, %v805
      %v1004 = vpack.c.b16 %v808, %v806
      %v1005 = vpack.c.b16 %v811, %v809
      %v1006 = vpack.c.b16 %v812, %v810
      %v1007 = vpack.c.b16 %v815, %v813
      %v1008 = vpack.c.b16 %v816, %v814
      %v1009 = vpack.c.b16 %v819, %v817
      %v1010 = vpack.c.b16 %v820, %v818
      %v1011 = vpack.c.b16 %v823, %v821
      %v1012 = vpack.c.b16 %v824, %v822
      %v1013 = vpack.c.b16 %v827, %v825
      %v1014 = vpack.c.b16 %v828, %v826
      %v1015 = vpack.c.b16 %v831, %v829
      %v1016 = vpack.c.b16 %v832, %v830
      %v1017 = vpack.c.b16 %v835, %v833
      %v1018 = vpack.c.b16 %v836, %v834
      %v1019 = vpack.c.b16 %v839, %v837
      %v1020 = vpack.c.b16 %v840, %v838
      %v1021 = vpack.c.b16 %v843, %v841
      %v1022 = vpack.c.b16 %v844, %v842
      %v1023 = vpack.c.b16 %v847, %v845
      %v1024 = vpack.c.b16 %v848, %v846
      %v1025 = vpack.c.b16 %v851, %v849
      %v1026 = vpack.c.b16 %v852, %v850
      %v1027 = vpack.c.b16 %v855, %v853
      %v1028 = vpack.c.b16 %v856, %v854
      %v1029 = vpack.c.b16 %v859, %v857
      %v1030 = vpack.c.b16 %v860, %v858
      %v1031 = vpack.c.b16 %v863, %v861
      %v1032 = vpack.c.b16 %v864, %v862
      %v1033 = vpack.c.b16 %v867, %v865
      %v1034 = vpack.c.b16 %v868, %v866
      %v1035 = vpack.c.b16 %v871, %v869
      %v1036 = vpack.c.b16 %v872, %v870
      %v1037 = vpack.c.b16 %v875, %v873
      %v1038 = vpack.c.b16 %v876, %v874
      %v1039 = vpack.c.b16 %v879, %v877
      %v1040 = vpack.c.b16 %v880, %v878
      %v1041 = vpack.c.b16 %v883, %v881
      %v1042 = vpack.c.b16 %v884, %v882
      %v1043 = vpack.c.b16 %v887, %v885
      %v1044 = vpack.c.b16 %v888, %v886
      %v1045 = vpack.c.b16 %v891, %v889
      %v1046 = vpack.c.b16 %v892, %v890
      %v1047 = vpack.c.b16 %v895, %v893
      %v1048 = vpack.c.b16 %v896, %v894
      %v1049 = vpack.c.b16 %v899, %v897
      %v1050 = vpack.c.b16 %v900, %v898
      %v1051 = vpack.c.b16 %v903, %v901
      %v1052 = vpack.c.b16 %v904, %v902
      %v1053 = vpack.c.b16 %v907, %v905
      %v1054 = vpack.c.b16 %v908, %v906
      %v1055 = vpack.c.b16 %v911, %v909
      %v1056 = vpack.c.b16 %v912, %v910
      %v1057 = vpack.c.b16 %v915, %v913
      %v1058 = vpack.c.b16 %v916, %v914
      %v1059 = vpack.c.b16 %v919, %v917
      %v1060 = vpack.c.b16 %v920, %v918
      %v1061 = vpack.c.b16 %v923, %v921
      %v1062 = vpack.c.b16 %v924, %v922
      %v1063 = vpack.c.b16 %v927, %v925
      %v1064 = vpack.c.b16 %v928, %v926
      %v1065 = vpack.c.b16 %v931, %v929
      %v1066 = vpack.c.b16 %v932, %v930
      %v1067 = vpack.c.b16 %v935, %v933
      %v1068 = vpack.c.b16 %v936, %v934
      %v1069 = vpack.c.b16 %v939, %v937
      %v1070 = vpack.c.b16 %v940, %v938
      %v1071 = vpack.c.b16 %v943, %v941
      %v1072 = vpack.c.b16 %v944, %v942
      %v1233 = vunpack.c.l.b16 %v522
      %v1234 = vunpack.c.l.b16 %v523
      %v1235 = vunpack.c.l.b16 %v524
      %v1236 = vunpack.c.l.b16 %v525
      %v1237 = vunpack.c.l.b16 %v526
      %v1238 = vunpack.c.l.b16 %v527
      %v1239 = vunpack.c.l.b16 %v528
      %v1240 = vunpack.c.l.b16 %v529
      %v1241 = vunpack.c.l.b16 %v530
      %v1242 = vunpack.c.l.b16 %v531
      %v1243 = vunpack.c.l.b16 %v532
      %v1244 = vunpack.c.l.b16 %v533
      %v1245 = vunpack.c.l.b16 %v534
      %v1246 = vunpack.c.l.b16 %v535
      %v1247 = vunpack.c.l.b16 %v536
      %v1248 = vunpack.c.l.b16 %v537
      %v1249 = vunpack.c.l.b16 %v538
      %v1250 = vunpack.c.l.b16 %v539
      %v1251 = vunpack.c.l.b16 %v540
      %v1252 = vunpack.c.l.b16 %v541
      %v1253 = vunpack.c.l.b16 %v542
      %v1254 = vunpack.c.l.b16 %v543
      %v1255 = vunpack.c.l.b16 %v544
      %v1256 = vunpack.c.l.b16 %v545
      %v1257 = vunpack.c.l.b16 %v546
      %v1258 = vunpack.c.l.b16 %v547
      %v1259 = vunpack.c.l.b16 %v548
      %v1260 = vunpack.c.l.b16 %v549
      %v1261 = vunpack.c.l.b16 %v550
      %v1262 = vunpack.c.l.b16 %v551
      %v1263 = vunpack.c.l.b16 %v552
      %v1264 = vunpack.c.l.b16 %v553
      %v1265 = vpack.c.b16 %v1234, %v1233
      %v1266 = vpack.c.b16 %v1236, %v1235
      %v1267 = vpack.c.b16 %v1238, %v1237
      %v1268 = vpack.c.b16 %v1240, %v1239
      %v1269 = vpack.c.b16 %v1242, %v1241
      %v1270 = vpack.c.b16 %v1244, %v1243
      %v1271 = vpack.c.b16 %v1246, %v1245
      %v1272 = vpack.c.b16 %v1248, %v1247
      %v1273 = vpack.c.b16 %v1250, %v1249
      %v1274 = vpack.c.b16 %v1252, %v1251
      %v1275 = vpack.c.b16 %v1254, %v1253
      %v1276 = vpack.c.b16 %v1256, %v1255
      %v1277 = vpack.c.b16 %v1258, %v1257
      %v1278 = vpack.c.b16 %v1260, %v1259
      %v1279 = vpack.c.b16 %v1262, %v1261
      %v1280 = vpack.c.b16 %v1264, %v1263
      %1297 = vmatprep.subr.bf16.mxu0 0
      %1298 = vmatpush1.bf16.msra.mxu0 %v1265
      %1299 = vmatprep.subr.bf16.mxu0 0
      %1300 = vmatpush1.bf16.msra.mxu0 %v1266
      %1301 = vmatprep.subr.bf16.mxu0 0
      %1302 = vmatpush1.bf16.msra.mxu0 %v1267
      %1303 = vmatprep.subr.bf16.mxu0 0
      %1304 = vmatpush1.bf16.msra.mxu0 %v1268
      %1305 = vmatprep.subr.bf16.mxu0 0
      %1306 = vmatpush1.bf16.msra.mxu0 %v1269
      %1307 = vmatprep.subr.bf16.mxu0 0
      %1308 = vmatpush1.bf16.msra.mxu0 %v1270
      %1309 = vmatprep.subr.bf16.mxu0 0
      %1310 = vmatpush1.bf16.msra.mxu0 %v1271
      %1311 = vmatprep.subr.bf16.mxu0 0
      %1312 = vmatpush1.bf16.msra.mxu0 %v1272
      %1313 = vmatprep.subr.bf16.mxu0 0
      %1314 = vmatpush1.bf16.msra.mxu0 %v1273
      %1315 = vmatprep.subr.bf16.mxu0 0
      %1316 = vmatpush1.bf16.msra.mxu0 %v1274
      %1317 = vmatprep.subr.bf16.mxu0 0
      %1318 = vmatpush1.bf16.msra.mxu0 %v1275
      %1319 = vmatprep.subr.bf16.mxu0 0
      %1320 = vmatpush1.bf16.msra.mxu0 %v1276
      %1321 = vmatprep.subr.bf16.mxu0 0
      %1322 = vmatpush1.bf16.msra.mxu0 %v1277
      %1323 = vmatprep.subr.bf16.mxu0 0
      %1324 = vmatpush1.bf16.msra.mxu0 %v1278
      %1325 = vmatprep.subr.bf16.mxu0 0
      %1326 = vmatpush1.bf16.msra.mxu0 %v1279
      %1327 = vmatprep.subr.bf16.mxu0 0
      %1328 = vmatpush1.bf16.msra.mxu0 %v1280
      %1329 = vmatprep.mubr.bf16.mxu0 %v946
      %1330 = vmatmul.mubr.bf16.gmra.mrb[0].mxu0 %v945
      %v1331 = vpop.f32.mrb[0].mxu0
      %v1332 = vadd.f32 %v559, %v1331
      %v1333 = vpop.f32.mrb[0].mxu0
      %v1334 = vpop.f32.mrb[0].mxu0
      %v1335 = vadd.f32 %v559, %v1334
      %v1336 = vpop.f32.mrb[0].mxu0
      %1337 = vmatprep.mubr.bf16.mxu0 %v948
      %1338 = vmatmul.mubr.bf16.gmra.mrb[0].mxu0 %v947
      %v1339 = vpop.f32.mrb[0].mxu0
      %v1340 = vadd.f32 %v559, %v1339
      %v1341 = vpop.f32.mrb[0].mxu0
      %v1342 = vpop.f32.mrb[0].mxu0
      %v1343 = vadd.f32 %v559, %v1342
      %v1344 = vpop.f32.mrb[0].mxu0
      %1345 = vmatprep.mubr.bf16.mxu0 %v950
      %1346 = vmatmul.mubr.bf16.gmra.mrb[0].mxu0 %v949
      %v1347 = vpop.f32.mrb[0].mxu0
      %v1348 = vadd.f32 %v559, %v1347
      %v1349 = vpop.f32.mrb[0].mxu0
      %v1350 = vpop.f32.mrb[0].mxu0
      %v1351 = vadd.f32 %v559, %v1350
      %v1352 = vpop.f32.mrb[0].mxu0
      %1353 = vmatprep.mubr.bf16.mxu0 %v952
      %1354 = vmatmul.mubr.bf16.gmra.mrb[0].mxu0 %v951
      %v1355 = vpop.f32.mrb[0].mxu0
      %v1356 = vadd.f32 %v559, %v1355
      %v1357 = vpop.f32.mrb[0].mxu0
      %v1358 = vpop.f32.mrb[0].mxu0
      %v1359 = vadd.f32 %v559, %v1358
      %v1360 = vpop.f32.mrb[0].mxu0
      %1361 = vmatprep.mubr.bf16.mxu0 %v954
      %1362 = vmatmul.mubr.bf16.gmra.mrb[0].mxu0 %v953
      %v1363 = vpop.f32.mrb[0].mxu0
      %v1364 = vadd.f32 %v559, %v1363
      %v1365 = vpop.f32.mrb[0].mxu0
      %v1366 = vpop.f32.mrb[0].mxu0
      %v1367 = vadd.f32 %v559, %v1366
      %v1368 = vpop.f32.mrb[0].mxu0
      %1369 = vmatprep.mubr.bf16.mxu0 %v956
      %1370 = vmatmul.mubr.bf16.gmra.mrb[0].mxu0 %v955
      %v1371 = vpop.f32.mrb[0].mxu0
      %v1372 = vadd.f32 %v559, %v1371
      %v1373 = vpop.f32.mrb[0].mxu0
      %v1374 = vpop.f32.mrb[0].mxu0
      %v1375 = vadd.f32 %v559, %v1374
      %v1376 = vpop.f32.mrb[0].mxu0
      %1377 = vmatprep.mubr.bf16.mxu0 %v958
      %1378 = vmatmul.mubr.bf16.gmra.mrb[0].mxu0 %v957
      %v1379 = vpop.f32.mrb[0].mxu0
      %v1380 = vadd.f32 %v559, %v1379
      %v1381 = vpop.f32.mrb[0].mxu0
      %v1382 = vpop.f32.mrb[0].mxu0
      %v1383 = vadd.f32 %v559, %v1382
      %v1384 = vpop.f32.mrb[0].mxu0
      %1385 = vmatprep.mubr.bf16.mxu0 %v960
      %1386 = vmatmul.mubr.bf16.gmra.mrb[0].mxu0 %v959
      %v1387 = vpop.f32.mrb[0].mxu0
      %v1388 = vadd.f32 %v559, %v1387
      %v1389 = vpop.f32.mrb[0].mxu0
      %v1390 = vpop.f32.mrb[0].mxu0
      %v1391 = vadd.f32 %v559, %v1390
      %v1392 = vpop.f32.mrb[0].mxu0
      %1393 = vmatprep.mubr.bf16.mxu0 %v962
      %1394 = vmatmul.mubr.bf16.gmra.mrb[0].mxu0 %v961
      %v1395 = vpop.f32.mrb[0].mxu0
      %v1396 = vadd.f32 %v559, %v1395
      %v1397 = vpop.f32.mrb[0].mxu0
      %v1398 = vpop.f32.mrb[0].mxu0
      %v1399 = vadd.f32 %v559, %v1398
      %v1400 = vpop.f32.mrb[0].mxu0
      %1401 = vmatprep.mubr.bf16.mxu0 %v964
      %1402 = vmatmul.mubr.bf16.gmra.mrb[0].mxu0 %v963
      %v1403 = vpop.f32.mrb[0].mxu0
      %v1404 = vadd.f32 %v559, %v1403
      %v1405 = vpop.f32.mrb[0].mxu0
      %v1406 = vpop.f32.mrb[0].mxu0
      %v1407 = vadd.f32 %v559, %v1406
      %v1408 = vpop.f32.mrb[0].mxu0
      %1409 = vmatprep.mubr.bf16.mxu0 %v966
      %1410 = vmatmul.mubr.bf16.gmra.mrb[0].mxu0 %v965
      %v1411 = vpop.f32.mrb[0].mxu0
      %v1412 = vadd.f32 %v559, %v1411
      %v1413 = vpop.f32.mrb[0].mxu0
      %v1414 = vpop.f32.mrb[0].mxu0
      %v1415 = vadd.f32 %v559, %v1414
      %v1416 = vpop.f32.mrb[0].mxu0
      %1417 = vmatprep.mubr.bf16.mxu0 %v968
      %1418 = vmatmul.mubr.bf16.gmra.mrb[0].mxu0 %v967
      %v1419 = vpop.f32.mrb[0].mxu0
      %v1420 = vadd.f32 %v559, %v1419
      %v1421 = vpop.f32.mrb[0].mxu0
      %v1422 = vpop.f32.mrb[0].mxu0
      %v1423 = vadd.f32 %v559, %v1422
      %v1424 = vpop.f32.mrb[0].mxu0
      %1425 = vmatprep.mubr.bf16.mxu0 %v970
      %1426 = vmatmul.mubr.bf16.gmra.mrb[0].mxu0 %v969
      %v1427 = vpop.f32.mrb[0].mxu0
      %v1428 = vadd.f32 %v559, %v1427
      %v1429 = vpop.f32.mrb[0].mxu0
      %v1430 = vpop.f32.mrb[0].mxu0
      %v1431 = vadd.f32 %v559, %v1430
      %v1432 = vpop.f32.mrb[0].mxu0
      %1433 = vmatprep.mubr.bf16.mxu0 %v972
      %1434 = vmatmul.mubr.bf16.gmra.mrb[0].mxu0 %v971
      %v1435 = vpop.f32.mrb[0].mxu0
      %v1436 = vadd.f32 %v559, %v1435
      %v1437 = vpop.f32.mrb[0].mxu0
      %v1438 = vpop.f32.mrb[0].mxu0
      %v1439 = vadd.f32 %v559, %v1438
      %v1440 = vpop.f32.mrb[0].mxu0
      %1441 = vmatprep.mubr.bf16.mxu0 %v974
      %1442 = vmatmul.mubr.bf16.gmra.mrb[0].mxu0 %v973
      %v1443 = vpop.f32.mrb[0].mxu0
      %v1444 = vadd.f32 %v559, %v1443
      %v1445 = vpop.f32.mrb[0].mxu0
      %v1446 = vpop.f32.mrb[0].mxu0
      %v1447 = vadd.f32 %v559, %v1446
      %v1448 = vpop.f32.mrb[0].mxu0
      %1449 = vmatprep.mubr.bf16.mxu0 %v976
      %1450 = vmatmul.mubr.bf16.gmra.mrb[0].mxu0 %v975
      %v1451 = vpop.f32.mrb[0].mxu0
      %v1452 = vadd.f32 %v559, %v1451
      %v1453 = vpop.f32.mrb[0].mxu0
      %v1454 = vpop.f32.mrb[0].mxu0
      %v1455 = vadd.f32 %v559, %v1454
      %v1456 = vpop.f32.mrb[0].mxu0
      %1457 = vmatprep.mubr.bf16.mxu0 %v978
      %1458 = vmatmul.mubr.bf16.gmra.mrb[0].mxu0 %v977
      %v1459 = vpop.f32.mrb[0].mxu0
      %v1460 = vadd.f32 %v559, %v1459
      %v1461 = vpop.f32.mrb[0].mxu0
      %v1462 = vpop.f32.mrb[0].mxu0
      %v1463 = vadd.f32 %v559, %v1462
      %v1464 = vpop.f32.mrb[0].mxu0
      %1465 = vmatprep.mubr.bf16.mxu0 %v980
      %1466 = vmatmul.mubr.bf16.gmra.mrb[0].mxu0 %v979
      %v1467 = vpop.f32.mrb[0].mxu0
      %v1468 = vadd.f32 %v559, %v1467
      %v1469 = vpop.f32.mrb[0].mxu0
      %v1470 = vpop.f32.mrb[0].mxu0
      %v1471 = vadd.f32 %v559, %v1470
      %v1472 = vpop.f32.mrb[0].mxu0
      %1473 = vmatprep.mubr.bf16.mxu0 %v982
      %1474 = vmatmul.mubr.bf16.gmra.mrb[0].mxu0 %v981
      %v1475 = vpop.f32.mrb[0].mxu0
      %v1476 = vadd.f32 %v559, %v1475
      %v1477 = vpop.f32.mrb[0].mxu0
      %v1478 = vpop.f32.mrb[0].mxu0
      %v1479 = vadd.f32 %v559, %v1478
      %v1480 = vpop.f32.mrb[0].mxu0
      %1481 = vmatprep.mubr.bf16.mxu0 %v984
      %1482 = vmatmul.mubr.bf16.gmra.mrb[0].mxu0 %v983
      %v1483 = vpop.f32.mrb[0].mxu0
      %v1484 = vadd.f32 %v559, %v1483
      %v1485 = vpop.f32.mrb[0].mxu0
      %v1486 = vpop.f32.mrb[0].mxu0
      %v1487 = vadd.f32 %v559, %v1486
      %v1488 = vpop.f32.mrb[0].mxu0
      %1489 = vmatprep.mubr.bf16.mxu0 %v986
      %1490 = vmatmul.mubr.bf16.gmra.mrb[0].mxu0 %v985
      %v1491 = vpop.f32.mrb[0].mxu0
      %v1492 = vadd.f32 %v559, %v1491
      %v1493 = vpop.f32.mrb[0].mxu0
      %v1494 = vpop.f32.mrb[0].mxu0
      %v1495 = vadd.f32 %v559, %v1494
      %v1496 = vpop.f32.mrb[0].mxu0
      %1497 = vmatprep.mubr.bf16.mxu0 %v988
      %1498 = vmatmul.mubr.bf16.gmra.mrb[0].mxu0 %v987
      %v1499 = vpop.f32.mrb[0].mxu0
      %v1500 = vadd.f32 %v559, %v1499
      %v1501 = vpop.f32.mrb[0].mxu0
      %v1502 = vpop.f32.mrb[0].mxu0
      %v1503 = vadd.f32 %v559, %v1502
      %v1504 = vpop.f32.mrb[0].mxu0
      %1505 = vmatprep.mubr.bf16.mxu0 %v990
      %1506 = vmatmul.mubr.bf16.gmra.mrb[0].mxu0 %v989
      %v1507 = vpop.f32.mrb[0].mxu0
      %v1508 = vadd.f32 %v559, %v1507
      %v1509 = vpop.f32.mrb[0].mxu0
      %v1510 = vpop.f32.mrb[0].mxu0
      %v1511 = vadd.f32 %v559, %v1510
      %v1512 = vpop.f32.mrb[0].mxu0
      %1513 = vmatprep.mubr.bf16.mxu0 %v992
      %1514 = vmatmul.mubr.bf16.gmra.mrb[0].mxu0 %v991
      %v1515 = vpop.f32.mrb[0].mxu0
      %v1516 = vadd.f32 %v559, %v1515
      %v1517 = vpop.f32.mrb[0].mxu0
      %v1518 = vpop.f32.mrb[0].mxu0
      %v1519 = vadd.f32 %v559, %v1518
      %v1520 = vpop.f32.mrb[0].mxu0
      %1521 = vmatprep.mubr.bf16.mxu0 %v994
      %1522 = vmatmul.mubr.bf16.gmra.mrb[0].mxu0 %v993
      %v1523 = vpop.f32.mrb[0].mxu0
      %v1524 = vadd.f32 %v559, %v1523
      %v1525 = vpop.f32.mrb[0].mxu0
      %v1526 = vpop.f32.mrb[0].mxu0
      %v1527 = vadd.f32 %v559, %v1526
      %v1528 = vpop.f32.mrb[0].mxu0
      %1529 = vmatprep.mubr.bf16.mxu0 %v996
      %1530 = vmatmul.mubr.bf16.gmra.mrb[0].mxu0 %v995
      %v1531 = vpop.f32.mrb[0].mxu0
      %v1532 = vadd.f32 %v559, %v1531
      %v1533 = vpop.f32.mrb[0].mxu0
      %v1534 = vpop.f32.mrb[0].mxu0
      %v1535 = vadd.f32 %v559, %v1534
      %v1536 = vpop.f32.mrb[0].mxu0
      %1537 = vmatprep.mubr.bf16.mxu0 %v998
      %1538 = vmatmul.mubr.bf16.gmra.mrb[0].mxu0 %v997
      %v1539 = vpop.f32.mrb[0].mxu0
      %v1540 = vadd.f32 %v559, %v1539
      %v1541 = vpop.f32.mrb[0].mxu0
      %v1542 = vpop.f32.mrb[0].mxu0
      %v1543 = vadd.f32 %v559, %v1542
      %v1544 = vpop.f32.mrb[0].mxu0
      %1545 = vmatprep.mubr.bf16.mxu0 %v1000
      %1546 = vmatmul.mubr.bf16.gmra.mrb[0].mxu0 %v999
      %v1547 = vpop.f32.mrb[0].mxu0
      %v1548 = vadd.f32 %v559, %v1547
      %v1549 = vpop.f32.mrb[0].mxu0
      %v1550 = vpop.f32.mrb[0].mxu0
      %v1551 = vadd.f32 %v559, %v1550
      %v1552 = vpop.f32.mrb[0].mxu0
      %1553 = vmatprep.mubr.bf16.mxu0 %v1002
      %1554 = vmatmul.mubr.bf16.gmra.mrb[0].mxu0 %v1001
      %v1555 = vpop.f32.mrb[0].mxu0
      %v1556 = vadd.f32 %v559, %v1555
      %v1557 = vpop.f32.mrb[0].mxu0
      %v1558 = vpop.f32.mrb[0].mxu0
      %v1559 = vadd.f32 %v559, %v1558
      %v1560 = vpop.f32.mrb[0].mxu0
      %1561 = vmatprep.mubr.bf16.mxu0 %v1004
      %1562 = vmatmul.mubr.bf16.gmra.mrb[0].mxu0 %v1003
      %v1563 = vpop.f32.mrb[0].mxu0
      %v1564 = vadd.f32 %v559, %v1563
      %v1565 = vpop.f32.mrb[0].mxu0
      %v1566 = vpop.f32.mrb[0].mxu0
      %v1567 = vadd.f32 %v559, %v1566
      %v1568 = vpop.f32.mrb[0].mxu0
      %1569 = vmatprep.mubr.bf16.mxu0 %v1006
      %1570 = vmatmul.mubr.bf16.gmra.mrb[0].mxu0 %v1005
      %v1571 = vpop.f32.mrb[0].mxu0
      %v1572 = vadd.f32 %v559, %v1571
      %v1573 = vpop.f32.mrb[0].mxu0
      %v1574 = vpop.f32.mrb[0].mxu0
      %v1575 = vadd.f32 %v559, %v1574
      %v1576 = vpop.f32.mrb[0].mxu0
      %1577 = vmatprep.mubr.bf16.mxu0 %v1008
      %1578 = vmatmul.mubr.bf16.gmra.mrb[0].mxu0 %v1007
      %v1579 = vpop.f32.mrb[0].mxu0
      %v1580 = vadd.f32 %v559, %v1579
      %v1581 = vpop.f32.mrb[0].mxu0
      %v1582 = vpop.f32.mrb[0].mxu0
      %v1583 = vadd.f32 %v559, %v1582
      %v1584 = vpop.f32.mrb[0].mxu0
      %1585 = vmatprep.mubr.bf16.mxu0 %v1010
      %1586 = vmatmul.mubr.bf16.gmra.mrb[0].mxu0 %v1009
      %v1587 = vpop.f32.mrb[0].mxu0
      %v1588 = vadd.f32 %v559, %v1587
      %v1589 = vpop.f32.mrb[0].mxu0
      %v1590 = vpop.f32.mrb[0].mxu0
      %v1591 = vadd.f32 %v559, %v1590
      %v1592 = vpop.f32.mrb[0].mxu0
      %1593 = vmatprep.mubr.bf16.mxu0 %v1012
      %1594 = vmatmul.mubr.bf16.gmra.mrb[0].mxu0 %v1011
      %v1595 = vpop.f32.mrb[0].mxu0
      %v1596 = vadd.f32 %v559, %v1595
      %v1597 = vpop.f32.mrb[0].mxu0
      %v1598 = vpop.f32.mrb[0].mxu0
      %v1599 = vadd.f32 %v559, %v1598
      %v1600 = vpop.f32.mrb[0].mxu0
      %1601 = vmatprep.mubr.bf16.mxu0 %v1014
      %1602 = vmatmul.mubr.bf16.gmra.mrb[0].mxu0 %v1013
      %v1603 = vpop.f32.mrb[0].mxu0
      %v1604 = vadd.f32 %v559, %v1603
      %v1605 = vpop.f32.mrb[0].mxu0
      %v1606 = vpop.f32.mrb[0].mxu0
      %v1607 = vadd.f32 %v559, %v1606
      %v1608 = vpop.f32.mrb[0].mxu0
      %1609 = vmatprep.mubr.bf16.mxu0 %v1016
      %1610 = vmatmul.mubr.bf16.gmra.mrb[0].mxu0 %v1015
      %v1611 = vpop.f32.mrb[0].mxu0
      %v1612 = vadd.f32 %v559, %v1611
      %v1613 = vpop.f32.mrb[0].mxu0
      %v1614 = vpop.f32.mrb[0].mxu0
      %v1615 = vadd.f32 %v559, %v1614
      %v1616 = vpop.f32.mrb[0].mxu0
      %1617 = vmatprep.mubr.bf16.mxu0 %v1018
      %1618 = vmatmul.mubr.bf16.gmra.mrb[0].mxu0 %v1017
      %v1619 = vpop.f32.mrb[0].mxu0
      %v1620 = vadd.f32 %v559, %v1619
      %v1621 = vpop.f32.mrb[0].mxu0
      %v1622 = vpop.f32.mrb[0].mxu0
      %v1623 = vadd.f32 %v559, %v1622
      %v1624 = vpop.f32.mrb[0].mxu0
      %1625 = vmatprep.mubr.bf16.mxu0 %v1020
      %1626 = vmatmul.mubr.bf16.gmra.mrb[0].mxu0 %v1019
      %v1627 = vpop.f32.mrb[0].mxu0
      %v1628 = vadd.f32 %v559, %v1627
      %v1629 = vpop.f32.mrb[0].mxu0
      %v1630 = vpop.f32.mrb[0].mxu0
      %v1631 = vadd.f32 %v559, %v1630
      %v1632 = vpop.f32.mrb[0].mxu0
      %1633 = vmatprep.mubr.bf16.mxu0 %v1022
      %1634 = vmatmul.mubr.bf16.gmra.mrb[0].mxu0 %v1021
      %v1635 = vpop.f32.mrb[0].mxu0
      %v1636 = vadd.f32 %v559, %v1635
      %v1637 = vpop.f32.mrb[0].mxu0
      %v1638 = vpop.f32.mrb[0].mxu0
      %v1639 = vadd.f32 %v559, %v1638
      %v1640 = vpop.f32.mrb[0].mxu0
      %1641 = vmatprep.mubr.bf16.mxu0 %v1024
      %1642 = vmatmul.mubr.bf16.gmra.mrb[0].mxu0 %v1023
      %v1643 = vpop.f32.mrb[0].mxu0
      %v1644 = vadd.f32 %v559, %v1643
      %v1645 = vpop.f32.mrb[0].mxu0
      %v1646 = vpop.f32.mrb[0].mxu0
      %v1647 = vadd.f32 %v559, %v1646
      %v1648 = vpop.f32.mrb[0].mxu0
      %1649 = vmatprep.mubr.bf16.mxu0 %v1026
      %1650 = vmatmul.mubr.bf16.gmra.mrb[0].mxu0 %v1025
      %v1651 = vpop.f32.mrb[0].mxu0
      %v1652 = vadd.f32 %v559, %v1651
      %v1653 = vpop.f32.mrb[0].mxu0
      %v1654 = vpop.f32.mrb[0].mxu0
      %v1655 = vadd.f32 %v559, %v1654
      %v1656 = vpop.f32.mrb[0].mxu0
      %1657 = vmatprep.mubr.bf16.mxu0 %v1028
      %1658 = vmatmul.mubr.bf16.gmra.mrb[0].mxu0 %v1027
      %v1659 = vpop.f32.mrb[0].mxu0
      %v1660 = vadd.f32 %v559, %v1659
      %v1661 = vpop.f32.mrb[0].mxu0
      %v1662 = vpop.f32.mrb[0].mxu0
      %v1663 = vadd.f32 %v559, %v1662
      %v1664 = vpop.f32.mrb[0].mxu0
      %1665 = vmatprep.mubr.bf16.mxu0 %v1030
      %1666 = vmatmul.mubr.bf16.gmra.mrb[0].mxu0 %v1029
      %v1667 = vpop.f32.mrb[0].mxu0
      %v1668 = vadd.f32 %v559, %v1667
      %v1669 = vpop.f32.mrb[0].mxu0
      %v1670 = vpop.f32.mrb[0].mxu0
      %v1671 = vadd.f32 %v559, %v1670
      %v1672 = vpop.f32.mrb[0].mxu0
      %1673 = vmatprep.mubr.bf16.mxu0 %v1032
      %1674 = vmatmul.mubr.bf16.gmra.mrb[0].mxu0 %v1031
      %v1675 = vpop.f32.mrb[0].mxu0
      %v1676 = vadd.f32 %v559, %v1675
      %v1677 = vpop.f32.mrb[0].mxu0
      %v1678 = vpop.f32.mrb[0].mxu0
      %v1679 = vadd.f32 %v559, %v1678
      %v1680 = vpop.f32.mrb[0].mxu0
      %1681 = vmatprep.mubr.bf16.mxu0 %v1034
      %1682 = vmatmul.mubr.bf16.gmra.mrb[0].mxu0 %v1033
      %v1683 = vpop.f32.mrb[0].mxu0
      %v1684 = vadd.f32 %v559, %v1683
      %v1685 = vpop.f32.mrb[0].mxu0
      %v1686 = vpop.f32.mrb[0].mxu0
      %v1687 = vadd.f32 %v559, %v1686
      %v1688 = vpop.f32.mrb[0].mxu0
      %1689 = vmatprep.mubr.bf16.mxu0 %v1036
      %1690 = vmatmul.mubr.bf16.gmra.mrb[0].mxu0 %v1035
      %v1691 = vpop.f32.mrb[0].mxu0
      %v1692 = vadd.f32 %v559, %v1691
      %v1693 = vpop.f32.mrb[0].mxu0
      %v1694 = vpop.f32.mrb[0].mxu0
      %v1695 = vadd.f32 %v559, %v1694
      %v1696 = vpop.f32.mrb[0].mxu0
      %1697 = vmatprep.mubr.bf16.mxu0 %v1038
      %1698 = vmatmul.mubr.bf16.gmra.mrb[0].mxu0 %v1037
      %v1699 = vpop.f32.mrb[0].mxu0
      %v1700 = vadd.f32 %v559, %v1699
      %v1701 = vpop.f32.mrb[0].mxu0
      %v1702 = vpop.f32.mrb[0].mxu0
      %v1703 = vadd.f32 %v559, %v1702
      %v1704 = vpop.f32.mrb[0].mxu0
      %1705 = vmatprep.mubr.bf16.mxu0 %v1040
      %1706 = vmatmul.mubr.bf16.gmra.mrb[0].mxu0 %v1039
      %v1707 = vpop.f32.mrb[0].mxu0
      %v1708 = vadd.f32 %v559, %v1707
      %v1709 = vpop.f32.mrb[0].mxu0
      %v1710 = vpop.f32.mrb[0].mxu0
      %v1711 = vadd.f32 %v559, %v1710
      %v1712 = vpop.f32.mrb[0].mxu0
      %1713 = vmatprep.mubr.bf16.mxu0 %v1042
      %1714 = vmatmul.mubr.bf16.gmra.mrb[0].mxu0 %v1041
      %v1715 = vpop.f32.mrb[0].mxu0
      %v1716 = vadd.f32 %v559, %v1715
      %v1717 = vpop.f32.mrb[0].mxu0
      %v1718 = vpop.f32.mrb[0].mxu0
      %v1719 = vadd.f32 %v559, %v1718
      %v1720 = vpop.f32.mrb[0].mxu0
      %1721 = vmatprep.mubr.bf16.mxu0 %v1044
      %1722 = vmatmul.mubr.bf16.gmra.mrb[0].mxu0 %v1043
      %v1723 = vpop.f32.mrb[0].mxu0
      %v1724 = vadd.f32 %v559, %v1723
      %v1725 = vpop.f32.mrb[0].mxu0
      %v1726 = vpop.f32.mrb[0].mxu0
      %v1727 = vadd.f32 %v559, %v1726
      %v1728 = vpop.f32.mrb[0].mxu0
      %1729 = vmatprep.mubr.bf16.mxu0 %v1046
      %1730 = vmatmul.mubr.bf16.gmra.mrb[0].mxu0 %v1045
      %v1731 = vpop.f32.mrb[0].mxu0
      %v1732 = vadd.f32 %v559, %v1731
      %v1733 = vpop.f32.mrb[0].mxu0
      %v1734 = vpop.f32.mrb[0].mxu0
      %v1735 = vadd.f32 %v559, %v1734
      %v1736 = vpop.f32.mrb[0].mxu0
      %1737 = vmatprep.mubr.bf16.mxu0 %v1048
      %1738 = vmatmul.mubr.bf16.gmra.mrb[0].mxu0 %v1047
      %v1739 = vpop.f32.mrb[0].mxu0
      %v1740 = vadd.f32 %v559, %v1739
      %v1741 = vpop.f32.mrb[0].mxu0
      %v1742 = vpop.f32.mrb[0].mxu0
      %v1743 = vadd.f32 %v559, %v1742
      %v1744 = vpop.f32.mrb[0].mxu0
      %1745 = vmatprep.mubr.bf16.mxu0 %v1050
      %1746 = vmatmul.mubr.bf16.gmra.mrb[0].mxu0 %v1049
      %v1747 = vpop.f32.mrb[0].mxu0
      %v1748 = vadd.f32 %v559, %v1747
      %v1749 = vpop.f32.mrb[0].mxu0
      %v1750 = vpop.f32.mrb[0].mxu0
      %v1751 = vadd.f32 %v559, %v1750
      %v1752 = vpop.f32.mrb[0].mxu0
      %1753 = vmatprep.mubr.bf16.mxu0 %v1052
      %1754 = vmatmul.mubr.bf16.gmra.mrb[0].mxu0 %v1051
      %v1755 = vpop.f32.mrb[0].mxu0
      %v1756 = vadd.f32 %v559, %v1755
      %v1757 = vpop.f32.mrb[0].mxu0
      %v1758 = vpop.f32.mrb[0].mxu0
      %v1759 = vadd.f32 %v559, %v1758
      %v1760 = vpop.f32.mrb[0].mxu0
      %1761 = vmatprep.mubr.bf16.mxu0 %v1054
      %1762 = vmatmul.mubr.bf16.gmra.mrb[0].mxu0 %v1053
      %v1763 = vpop.f32.mrb[0].mxu0
      %v1764 = vadd.f32 %v559, %v1763
      %v1765 = vpop.f32.mrb[0].mxu0
      %v1766 = vpop.f32.mrb[0].mxu0
      %v1767 = vadd.f32 %v559, %v1766
      %v1768 = vpop.f32.mrb[0].mxu0
      %1769 = vmatprep.mubr.bf16.mxu0 %v1056
      %1770 = vmatmul.mubr.bf16.gmra.mrb[0].mxu0 %v1055
      %v1771 = vpop.f32.mrb[0].mxu0
      %v1772 = vadd.f32 %v559, %v1771
      %v1773 = vpop.f32.mrb[0].mxu0
      %v1774 = vpop.f32.mrb[0].mxu0
      %v1775 = vadd.f32 %v559, %v1774
      %v1776 = vpop.f32.mrb[0].mxu0
      %1777 = vmatprep.mubr.bf16.mxu0 %v1058
      %1778 = vmatmul.mubr.bf16.gmra.mrb[0].mxu0 %v1057
      %v1779 = vpop.f32.mrb[0].mxu0
      %v1780 = vadd.f32 %v559, %v1779
      %v1781 = vpop.f32.mrb[0].mxu0
      %v1782 = vpop.f32.mrb[0].mxu0
      %v1783 = vadd.f32 %v559, %v1782
      %v1784 = vpop.f32.mrb[0].mxu0
      %1785 = vmatprep.mubr.bf16.mxu0 %v1060
      %1786 = vmatmul.mubr.bf16.gmra.mrb[0].mxu0 %v1059
      %v1787 = vpop.f32.mrb[0].mxu0
      %v1788 = vadd.f32 %v559, %v1787
      %v1789 = vpop.f32.mrb[0].mxu0
      %v1790 = vpop.f32.mrb[0].mxu0
      %v1791 = vadd.f32 %v559, %v1790
      %v1792 = vpop.f32.mrb[0].mxu0
      %1793 = vmatprep.mubr.bf16.mxu0 %v1062
      %1794 = vmatmul.mubr.bf16.gmra.mrb[0].mxu0 %v1061
      %v1795 = vpop.f32.mrb[0].mxu0
      %v1796 = vadd.f32 %v559, %v1795
      %v1797 = vpop.f32.mrb[0].mxu0
      %v1798 = vpop.f32.mrb[0].mxu0
      %v1799 = vadd.f32 %v559, %v1798
      %v1800 = vpop.f32.mrb[0].mxu0
      %1801 = vmatprep.mubr.bf16.mxu0 %v1064
      %1802 = vmatmul.mubr.bf16.gmra.mrb[0].mxu0 %v1063
      %v1803 = vpop.f32.mrb[0].mxu0
      %v1804 = vadd.f32 %v559, %v1803
      %v1805 = vpop.f32.mrb[0].mxu0
      %v1806 = vpop.f32.mrb[0].mxu0
      %v1807 = vadd.f32 %v559, %v1806
      %v1808 = vpop.f32.mrb[0].mxu0
      %1809 = vmatprep.mubr.bf16.mxu0 %v1066
      %1810 = vmatmul.mubr.bf16.gmra.mrb[0].mxu0 %v1065
      %v1811 = vpop.f32.mrb[0].mxu0
      %v1812 = vadd.f32 %v559, %v1811
      %v1813 = vpop.f32.mrb[0].mxu0
      %v1814 = vpop.f32.mrb[0].mxu0
      %v1815 = vadd.f32 %v559, %v1814
      %v1816 = vpop.f32.mrb[0].mxu0
      %1817 = vmatprep.mubr.bf16.mxu0 %v1068
      %1818 = vmatmul.mubr.bf16.gmra.mrb[0].mxu0 %v1067
      %v1819 = vpop.f32.mrb[0].mxu0
      %v1820 = vadd.f32 %v559, %v1819
      %v1821 = vpop.f32.mrb[0].mxu0
      %v1822 = vpop.f32.mrb[0].mxu0
      %v1823 = vadd.f32 %v559, %v1822
      %v1824 = vpop.f32.mrb[0].mxu0
      %1825 = vmatprep.mubr.bf16.mxu0 %v1070
      %1826 = vmatmul.mubr.bf16.gmra.mrb[0].mxu0 %v1069
      %v1827 = vpop.f32.mrb[0].mxu0
      %v1828 = vadd.f32 %v559, %v1827
      %v1829 = vpop.f32.mrb[0].mxu0
      %v1830 = vpop.f32.mrb[0].mxu0
      %v1831 = vadd.f32 %v559, %v1830
      %v1832 = vpop.f32.mrb[0].mxu0
      %1833 = vmatprep.mubr.bf16.mxu0 %v1072
      %1834 = vmatmul.mubr.bf16.gmra.mrb[0].mxu0 %v1071
      %v1835 = vpop.f32.mrb[0].mxu0
      %v1836 = vadd.f32 %v559, %v1835
      %v1837 = vpop.f32.mrb[0].mxu0
      %v1838 = vpop.f32.mrb[0].mxu0
      %v1839 = vadd.f32 %v559, %v1838
      %v1840 = vpop.f32.mrb[0].mxu0
      %1841 = vdwg.mxu0
      %v1842 = vmax.f32 %v1332, 0.0
      %v1843 = vmax.f32 %v1335, 0.0
      %v1844 = vmax.f32 %v1340, 0.0
      %v1845 = vmax.f32 %v1343, 0.0
      %v1846 = vmax.f32 %v1348, 0.0
      %v1847 = vmax.f32 %v1351, 0.0
      %v1848 = vmax.f32 %v1356, 0.0
      %v1849 = vmax.f32 %v1359, 0.0
      %v1850 = vmax.f32 %v1364, 0.0
      %v1851 = vmax.f32 %v1367, 0.0
      %v1852 = vmax.f32 %v1372, 0.0
      %v1853 = vmax.f32 %v1375, 0.0
      %v1854 = vmax.f32 %v1380, 0.0
      %v1855 = vmax.f32 %v1383, 0.0
      %v1856 = vmax.f32 %v1388, 0.0
      %v1857 = vmax.f32 %v1391, 0.0
      %v1858 = vmax.f32 %v1396, 0.0
      %v1859 = vmax.f32 %v1399, 0.0
      %v1860 = vmax.f32 %v1404, 0.0
      %v1861 = vmax.f32 %v1407, 0.0
      %v1862 = vmax.f32 %v1412, 0.0
      %v1863 = vmax.f32 %v1415, 0.0
      %v1864 = vmax.f32 %v1420, 0.0
      %v1865 = vmax.f32 %v1423, 0.0
      %v1866 = vmax.f32 %v1428, 0.0
      %v1867 = vmax.f32 %v1431, 0.0
      %v1868 = vmax.f32 %v1436, 0.0
      %v1869 = vmax.f32 %v1439, 0.0
      %v1870 = vmax.f32 %v1444, 0.0
      %v1871 = vmax.f32 %v1447, 0.0
      %v1872 = vmax.f32 %v1452, 0.0
      %v1873 = vmax.f32 %v1455, 0.0
      %v1874 = vmax.f32 %v1460, 0.0
      %v1875 = vmax.f32 %v1463, 0.0
      %v1876 = vmax.f32 %v1468, 0.0
      %v1877 = vmax.f32 %v1471, 0.0
      %v1878 = vmax.f32 %v1476, 0.0
      %v1879 = vmax.f32 %v1479, 0.0
      %v1880 = vmax.f32 %v1484, 0.0
      %v1881 = vmax.f32 %v1487, 0.0
      %v1882 = vmax.f32 %v1492, 0.0
      %v1883 = vmax.f32 %v1495, 0.0
      %v1884 = vmax.f32 %v1500, 0.0
      %v1885 = vmax.f32 %v1503, 0.0
      %v1886 = vmax.f32 %v1508, 0.0
      %v1887 = vmax.f32 %v1511, 0.0
      %v1888 = vmax.f32 %v1516, 0.0
      %v1889 = vmax.f32 %v1519, 0.0
      %v1890 = vmax.f32 %v1524, 0.0
      %v1891 = vmax.f32 %v1527, 0.0
      %v1892 = vmax.f32 %v1532, 0.0
      %v1893 = vmax.f32 %v1535, 0.0
      %v1894 = vmax.f32 %v1540, 0.0
      %v1895 = vmax.f32 %v1543, 0.0
      %v1896 = vmax.f32 %v1548, 0.0
      %v1897 = vmax.f32 %v1551, 0.0
      %v1898 = vmax.f32 %v1556, 0.0
      %v1899 = vmax.f32 %v1559, 0.0
      %v1900 = vmax.f32 %v1564, 0.0
      %v1901 = vmax.f32 %v1567, 0.0
      %v1902 = vmax.f32 %v1572, 0.0
      %v1903 = vmax.f32 %v1575, 0.0
      %v1904 = vmax.f32 %v1580, 0.0
      %v1905 = vmax.f32 %v1583, 0.0
      %v1906 = vmax.f32 %v1588, 0.0
      %v1907 = vmax.f32 %v1591, 0.0
      %v1908 = vmax.f32 %v1596, 0.0
      %v1909 = vmax.f32 %v1599, 0.0
      %v1910 = vmax.f32 %v1604, 0.0
      %v1911 = vmax.f32 %v1607, 0.0
      %v1912 = vmax.f32 %v1612, 0.0
      %v1913 = vmax.f32 %v1615, 0.0
      %v1914 = vmax.f32 %v1620, 0.0
      %v1915 = vmax.f32 %v1623, 0.0
      %v1916 = vmax.f32 %v1628, 0.0
      %v1917 = vmax.f32 %v1631, 0.0
      %v1918 = vmax.f32 %v1636, 0.0
      %v1919 = vmax.f32 %v1639, 0.0
      %v1920 = vmax.f32 %v1644, 0.0
      %v1921 = vmax.f32 %v1647, 0.0
      %v1922 = vmax.f32 %v1652, 0.0
      %v1923 = vmax.f32 %v1655, 0.0
      %v1924 = vmax.f32 %v1660, 0.0
      %v1925 = vmax.f32 %v1663, 0.0
      %v1926 = vmax.f32 %v1668, 0.0
      %v1927 = vmax.f32 %v1671, 0.0
      %v1928 = vmax.f32 %v1676, 0.0
      %v1929 = vmax.f32 %v1679, 0.0
      %v1930 = vmax.f32 %v1684, 0.0
      %v1931 = vmax.f32 %v1687, 0.0
      %v1932 = vmax.f32 %v1692, 0.0
      %v1933 = vmax.f32 %v1695, 0.0
      %v1934 = vmax.f32 %v1700, 0.0
      %v1935 = vmax.f32 %v1703, 0.0
      %v1936 = vmax.f32 %v1708, 0.0
      %v1937 = vmax.f32 %v1711, 0.0
      %v1938 = vmax.f32 %v1716, 0.0
      %v1939 = vmax.f32 %v1719, 0.0
      %v1940 = vmax.f32 %v1724, 0.0
      %v1941 = vmax.f32 %v1727, 0.0
      %v1942 = vmax.f32 %v1732, 0.0
      %v1943 = vmax.f32 %v1735, 0.0
      %v1944 = vmax.f32 %v1740, 0.0
      %v1945 = vmax.f32 %v1743, 0.0
      %v1946 = vmax.f32 %v1748, 0.0
      %v1947 = vmax.f32 %v1751, 0.0
      %v1948 = vmax.f32 %v1756, 0.0
      %v1949 = vmax.f32 %v1759, 0.0
      %v1950 = vmax.f32 %v1764, 0.0
      %v1951 = vmax.f32 %v1767, 0.0
      %v1952 = vmax.f32 %v1772, 0.0
      %v1953 = vmax.f32 %v1775, 0.0
      %v1954 = vmax.f32 %v1780, 0.0
      %v1955 = vmax.f32 %v1783, 0.0
      %v1956 = vmax.f32 %v1788, 0.0
      %v1957 = vmax.f32 %v1791, 0.0
      %v1958 = vmax.f32 %v1796, 0.0
      %v1959 = vmax.f32 %v1799, 0.0
      %v1960 = vmax.f32 %v1804, 0.0
      %v1961 = vmax.f32 %v1807, 0.0
      %v1962 = vmax.f32 %v1812, 0.0
      %v1963 = vmax.f32 %v1815, 0.0
      %v1964 = vmax.f32 %v1820, 0.0
      %v1965 = vmax.f32 %v1823, 0.0
      %v1966 = vmax.f32 %v1828, 0.0
      %v1967 = vmax.f32 %v1831, 0.0
      %v1968 = vmax.f32 %v1836, 0.0
      %v1969 = vmax.f32 %v1839, 0.0
      %vm1970 = vcmask 261120
      %1971 = vst.msk [vmem:[#allocation2] sm:$0xff] %vm1970, %v1842
      %1972 = vst.msk [vmem:[#allocation2 + $0x8] sm:$0xff] %vm1970, %v1843
      %1973 = vst.msk [vmem:[#allocation2 + $0x10] sm:$0xff] %vm1970, %v1844
      %1974 = vst.msk [vmem:[#allocation2 + $0x18] sm:$0xff] %vm1970, %v1845
      %1975 = vst.msk [vmem:[#allocation2 + $0x20] sm:$0xff] %vm1970, %v1846
      %1976 = vst.msk [vmem:[#allocation2 + $0x28] sm:$0xff] %vm1970, %v1847
      %1977 = vst.msk [vmem:[#allocation2 + $0x30] sm:$0xff] %vm1970, %v1848
      %1978 = vst.msk [vmem:[#allocation2 + $0x38] sm:$0xff] %vm1970, %v1849
      %1979 = vst.msk [vmem:[#allocation2 + $0x40] sm:$0xff] %vm1970, %v1850
      %1980 = vst.msk [vmem:[#allocation2 + $0x48] sm:$0xff] %vm1970, %v1851
      %1981 = vst.msk [vmem:[#allocation2 + $0x50] sm:$0xff] %vm1970, %v1852
      %1982 = vst.msk [vmem:[#allocation2 + $0x58] sm:$0xff] %vm1970, %v1853
      %1983 = vst.msk [vmem:[#allocation2 + $0x60] sm:$0xff] %vm1970, %v1854
      %1984 = vst.msk [vmem:[#allocation2 + $0x68] sm:$0xff] %vm1970, %v1855
      %1985 = vst.msk [vmem:[#allocation2 + $0x70] sm:$0xff] %vm1970, %v1856
      %1986 = vst.msk [vmem:[#allocation2 + $0x78] sm:$0xff] %vm1970, %v1857
      %1987 = vst.msk [vmem:[#allocation2 + $0x80] sm:$0xff] %vm1970, %v1858
      %1988 = vst.msk [vmem:[#allocation2 + $0x88] sm:$0xff] %vm1970, %v1859
      %1989 = vst.msk [vmem:[#allocation2 + $0x90] sm:$0xff] %vm1970, %v1860
      %1990 = vst.msk [vmem:[#allocation2 + $0x98] sm:$0xff] %vm1970, %v1861
      %1991 = vst.msk [vmem:[#allocation2 + $0xa0] sm:$0xff] %vm1970, %v1862
      %1992 = vst.msk [vmem:[#allocation2 + $0xa8] sm:$0xff] %vm1970, %v1863
      %1993 = vst.msk [vmem:[#allocation2 + $0xb0] sm:$0xff] %vm1970, %v1864
      %1994 = vst.msk [vmem:[#allocation2 + $0xb8] sm:$0xff] %vm1970, %v1865
      %1995 = vst.msk [vmem:[#allocation2 + $0xc0] sm:$0xff] %vm1970, %v1866
      %1996 = vst.msk [vmem:[#allocation2 + $0xc8] sm:$0xff] %vm1970, %v1867
      %1997 = vst.msk [vmem:[#allocation2 + $0xd0] sm:$0xff] %vm1970, %v1868
      %1998 = vst.msk [vmem:[#allocation2 + $0xd8] sm:$0xff] %vm1970, %v1869
      %1999 = vst.msk [vmem:[#allocation2 + $0xe0] sm:$0xff] %vm1970, %v1870
      %2000 = vst.msk [vmem:[#allocation2 + $0xe8] sm:$0xff] %vm1970, %v1871
      %2001 = vst.msk [vmem:[#allocation2 + $0xf0] sm:$0xff] %vm1970, %v1872
      %2002 = vst.msk [vmem:[#allocation2 + $0xf8] sm:$0xff] %vm1970, %v1873
      %2003 = vst.msk [vmem:[#allocation2 + $0x100] sm:$0xff] %vm1970, %v1874
      %2004 = vst.msk [vmem:[#allocation2 + $0x108] sm:$0xff] %vm1970, %v1875
      %2005 = vst.msk [vmem:[#allocation2 + $0x110] sm:$0xff] %vm1970, %v1876
      %2006 = vst.msk [vmem:[#allocation2 + $0x118] sm:$0xff] %vm1970, %v1877
      %2007 = vst.msk [vmem:[#allocation2 + $0x120] sm:$0xff] %vm1970, %v1878
      %2008 = vst.msk [vmem:[#allocation2 + $0x128] sm:$0xff] %vm1970, %v1879
      %2009 = vst.msk [vmem:[#allocation2 + $0x130] sm:$0xff] %vm1970, %v1880
      %2010 = vst.msk [vmem:[#allocation2 + $0x138] sm:$0xff] %vm1970, %v1881
      %2011 = vst.msk [vmem:[#allocation2 + $0x140] sm:$0xff] %vm1970, %v1882
      %2012 = vst.msk [vmem:[#allocation2 + $0x148] sm:$0xff] %vm1970, %v1883
      %2013 = vst.msk [vmem:[#allocation2 + $0x150] sm:$0xff] %vm1970, %v1884
      %2014 = vst.msk [vmem:[#allocation2 + $0x158] sm:$0xff] %vm1970, %v1885
      %2015 = vst.msk [vmem:[#allocation2 + $0x160] sm:$0xff] %vm1970, %v1886
      %2016 = vst.msk [vmem:[#allocation2 + $0x168] sm:$0xff] %vm1970, %v1887
      %2017 = vst.msk [vmem:[#allocation2 + $0x170] sm:$0xff] %vm1970, %v1888
      %2018 = vst.msk [vmem:[#allocation2 + $0x178] sm:$0xff] %vm1970, %v1889
      %2019 = vst.msk [vmem:[#allocation2 + $0x180] sm:$0xff] %vm1970, %v1890
      %2020 = vst.msk [vmem:[#allocation2 + $0x188] sm:$0xff] %vm1970, %v1891
      %2021 = vst.msk [vmem:[#allocation2 + $0x190] sm:$0xff] %vm1970, %v1892
      %2022 = vst.msk [vmem:[#allocation2 + $0x198] sm:$0xff] %vm1970, %v1893
      %2023 = vst.msk [vmem:[#allocation2 + $0x1a0] sm:$0xff] %vm1970, %v1894
      %2024 = vst.msk [vmem:[#allocation2 + $0x1a8] sm:$0xff] %vm1970, %v1895
      %2025 = vst.msk [vmem:[#allocation2 + $0x1b0] sm:$0xff] %vm1970, %v1896
      %2026 = vst.msk [vmem:[#allocation2 + $0x1b8] sm:$0xff] %vm1970, %v1897
      %2027 = vst.msk [vmem:[#allocation2 + $0x1c0] sm:$0xff] %vm1970, %v1898
      %2028 = vst.msk [vmem:[#allocation2 + $0x1c8] sm:$0xff] %vm1970, %v1899
      %2029 = vst.msk [vmem:[#allocation2 + $0x1d0] sm:$0xff] %vm1970, %v1900
      %2030 = vst.msk [vmem:[#allocation2 + $0x1d8] sm:$0xff] %vm1970, %v1901
      %2031 = vst.msk [vmem:[#allocation2 + $0x1e0] sm:$0xff] %vm1970, %v1902
      %2032 = vst.msk [vmem:[#allocation2 + $0x1e8] sm:$0xff] %vm1970, %v1903
      %2033 = vst.msk [vmem:[#allocation2 + $0x1f0] sm:$0xff] %vm1970, %v1904
      %2034 = vst.msk [vmem:[#allocation2 + $0x1f8] sm:$0xff] %vm1970, %v1905
      %2035 = vst.msk [vmem:[#allocation2 + $0x200] sm:$0xff] %vm1970, %v1906
      %2036 = vst.msk [vmem:[#allocation2 + $0x208] sm:$0xff] %vm1970, %v1907
      %2037 = vst.msk [vmem:[#allocation2 + $0x210] sm:$0xff] %vm1970, %v1908
      %2038 = vst.msk [vmem:[#allocation2 + $0x218] sm:$0xff] %vm1970, %v1909
      %2039 = vst.msk [vmem:[#allocation2 + $0x220] sm:$0xff] %vm1970, %v1910
      %2040 = vst.msk [vmem:[#allocation2 + $0x228] sm:$0xff] %vm1970, %v1911
      %2041 = vst.msk [vmem:[#allocation2 + $0x230] sm:$0xff] %vm1970, %v1912
      %2042 = vst.msk [vmem:[#allocation2 + $0x238] sm:$0xff] %vm1970, %v1913
      %2043 = vst.msk [vmem:[#allocation2 + $0x240] sm:$0xff] %vm1970, %v1914
      %2044 = vst.msk [vmem:[#allocation2 + $0x248] sm:$0xff] %vm1970, %v1915
      %2045 = vst.msk [vmem:[#allocation2 + $0x250] sm:$0xff] %vm1970, %v1916
      %2046 = vst.msk [vmem:[#allocation2 + $0x258] sm:$0xff] %vm1970, %v1917
      %2047 = vst.msk [vmem:[#allocation2 + $0x260] sm:$0xff] %vm1970, %v1918
      %2048 = vst.msk [vmem:[#allocation2 + $0x268] sm:$0xff] %vm1970, %v1919
      %2049 = vst.msk [vmem:[#allocation2 + $0x270] sm:$0xff] %vm1970, %v1920
      %2050 = vst.msk [vmem:[#allocation2 + $0x278] sm:$0xff] %vm1970, %v1921
      %2051 = vst.msk [vmem:[#allocation2 + $0x280] sm:$0xff] %vm1970, %v1922
      %2052 = vst.msk [vmem:[#allocation2 + $0x288] sm:$0xff] %vm1970, %v1923
      %2053 = vst.msk [vmem:[#allocation2 + $0x290] sm:$0xff] %vm1970, %v1924
      %2054 = vst.msk [vmem:[#allocation2 + $0x298] sm:$0xff] %vm1970, %v1925
      %2055 = vst.msk [vmem:[#allocation2 + $0x2a0] sm:$0xff] %vm1970, %v1926
      %2056 = vst.msk [vmem:[#allocation2 + $0x2a8] sm:$0xff] %vm1970, %v1927
      %2057 = vst.msk [vmem:[#allocation2 + $0x2b0] sm:$0xff] %vm1970, %v1928
      %2058 = vst.msk [vmem:[#allocation2 + $0x2b8] sm:$0xff] %vm1970, %v1929
      %2059 = vst.msk [vmem:[#allocation2 + $0x2c0] sm:$0xff] %vm1970, %v1930
      %2060 = vst.msk [vmem:[#allocation2 + $0x2c8] sm:$0xff] %vm1970, %v1931
      %2061 = vst.msk [vmem:[#allocation2 + $0x2d0] sm:$0xff] %vm1970, %v1932
      %2062 = vst.msk [vmem:[#allocation2 + $0x2d8] sm:$0xff] %vm1970, %v1933
      %2063 = vst.msk [vmem:[#allocation2 + $0x2e0] sm:$0xff] %vm1970, %v1934
      %2064 = vst.msk [vmem:[#allocation2 + $0x2e8] sm:$0xff] %vm1970, %v1935
      %2065 = vst.msk [vmem:[#allocation2 + $0x2f0] sm:$0xff] %vm1970, %v1936
      %2066 = vst.msk [vmem:[#allocation2 + $0x2f8] sm:$0xff] %vm1970, %v1937
      %2067 = vst.msk [vmem:[#allocation2 + $0x300] sm:$0xff] %vm1970, %v1938
      %2068 = vst.msk [vmem:[#allocation2 + $0x308] sm:$0xff] %vm1970, %v1939
      %2069 = vst.msk [vmem:[#allocation2 + $0x310] sm:$0xff] %vm1970, %v1940
      %2070 = vst.msk [vmem:[#allocation2 + $0x318] sm:$0xff] %vm1970, %v1941
      %2071 = vst.msk [vmem:[#allocation2 + $0x320] sm:$0xff] %vm1970, %v1942
      %2072 = vst.msk [vmem:[#allocation2 + $0x328] sm:$0xff] %vm1970, %v1943
      %2073 = vst.msk [vmem:[#allocation2 + $0x330] sm:$0xff] %vm1970, %v1944
      %2074 = vst.msk [vmem:[#allocation2 + $0x338] sm:$0xff] %vm1970, %v1945
      %2075 = vst.msk [vmem:[#allocation2 + $0x340] sm:$0xff] %vm1970, %v1946
      %2076 = vst.msk [vmem:[#allocation2 + $0x348] sm:$0xff] %vm1970, %v1947
      %2077 = vst.msk [vmem:[#allocation2 + $0x350] sm:$0xff] %vm1970, %v1948
      %2078 = vst.msk [vmem:[#allocation2 + $0x358] sm:$0xff] %vm1970, %v1949
      %2079 = vst.msk [vmem:[#allocation2 + $0x360] sm:$0xff] %vm1970, %v1950
      %2080 = vst.msk [vmem:[#allocation2 + $0x368] sm:$0xff] %vm1970, %v1951
      %2081 = vst.msk [vmem:[#allocation2 + $0x370] sm:$0xff] %vm1970, %v1952
      %2082 = vst.msk [vmem:[#allocation2 + $0x378] sm:$0xff] %vm1970, %v1953
      %2083 = vst.msk [vmem:[#allocation2 + $0x380] sm:$0xff] %vm1970, %v1954
      %2084 = vst.msk [vmem:[#allocation2 + $0x388] sm:$0xff] %vm1970, %v1955
      %2085 = vst.msk [vmem:[#allocation2 + $0x390] sm:$0xff] %vm1970, %v1956
      %2086 = vst.msk [vmem:[#allocation2 + $0x398] sm:$0xff] %vm1970, %v1957
      %2087 = vst.msk [vmem:[#allocation2 + $0x3a0] sm:$0xff] %vm1970, %v1958
      %2088 = vst.msk [vmem:[#allocation2 + $0x3a8] sm:$0xff] %vm1970, %v1959
      %2089 = vst.msk [vmem:[#allocation2 + $0x3b0] sm:$0xff] %vm1970, %v1960
      %2090 = vst.msk [vmem:[#allocation2 + $0x3b8] sm:$0xff] %vm1970, %v1961
      %2091 = vst.msk [vmem:[#allocation2 + $0x3c0] sm:$0xff] %vm1970, %v1962
      %2092 = vst.msk [vmem:[#allocation2 + $0x3c8] sm:$0xff] %vm1970, %v1963
      %2093 = vst.msk [vmem:[#allocation2 + $0x3d0] sm:$0xff] %vm1970, %v1964
      %2094 = vst.msk [vmem:[#allocation2 + $0x3d8] sm:$0xff] %vm1970, %v1965
      %2095 = vst.msk [vmem:[#allocation2 + $0x3e0] sm:$0xff] %vm1970, %v1966
      %2096 = vst.msk [vmem:[#allocation2 + $0x3e8] sm:$0xff] %vm1970, %v1967
      %2097 = vst.msk [vmem:[#allocation2 + $0x3f0] sm:$0xff] %vm1970, %v1968
      %2098 = vst.msk [vmem:[#allocation2 + $0x3f8] sm:$0xff] %vm1970, %v1969
      loop: start=0, step=1, limit=3
      $region65: #{_lambda_.1} parent=63 // loop_pre_header
        _
      $region66: #{_lambda_.1} parent=63 // loop_header
        %s2100 = sphi 0, %s2104
        %p2101 = scmp.ge.s32.totalorder %s2100, 3
      $region67: #{_lambda_.1} parent=63 // loop_header_branch
        %2103 = sbr.rel (%p2101) target = $region71
      $region68: #{_lambda_.1} parent=63 // loop_body
        %s2105 = smul.u32 %s2100, 256
        %s2106 = scalar_lea.vmem [#allocation2], %s2105
        %v2107 = vld [vmem:[%s2106] sm:$0xff]
        %v2108 = vld [vmem:[%s2106 + $0x8] sm:$0xff]
        %v2109 = vld [vmem:[%s2106 + $0x10] sm:$0xff]
        %v2110 = vld [vmem:[%s2106 + $0x18] sm:$0xff]
        %v2111 = vld [vmem:[%s2106 + $0x20] sm:$0xff]
        %v2112 = vld [vmem:[%s2106 + $0x28] sm:$0xff]
        %v2113 = vpack.c.bf16 %v2108, %v2107
        %v2114 = vpack.c.bf16 %v2110, %v2109
        %v2115 = vpack.c.bf16 %v2112, %v2111
        %s2116 = smul.u32 %s2100, 48
        %s2117 = sshra.s32 %s2116, 4
        %s2118 = sand.u32 %s2116, 15
        %s2119 = smul.u32 %s2117, 4
        %s2120 = smul.addr %s2119, 8
        %s2121 = scalar_lea.vmem [#allocation3], %s2120
        %2122 = vst.msk [vmem:[%s2121] sm:$0xff] %vm1970, %v2113
        %2123 = vst.msk [vmem:[%s2121 + $0x20] sm:$0xff] %vm1970, %v2114
        %2124 = vst.msk [vmem:[%s2121 + $0x40] sm:$0xff] %vm1970, %v2115
        %s2125 = smul.u32 %s2100, 16
        %s2126 = sadd.s32 %s2125, 4
        %s2127 = smul.u32 %s2126, 16
        %s2128 = scalar_lea.vmem [#allocation2], %s2127
        %v2129 = vld [vmem:[%s2128] sm:$0xff]
        %v2130 = vld [vmem:[%s2128 + $0x8] sm:$0xff]
        %v2131 = vld [vmem:[%s2128 + $0x10] sm:$0xff]
        %v2132 = vld [vmem:[%s2128 + $0x18] sm:$0xff]
        %v2133 = vld [vmem:[%s2128 + $0x20] sm:$0xff]
        %v2134 = vld [vmem:[%s2128 + $0x28] sm:$0xff]
        %v2135 = vpack.c.bf16 %v2130, %v2129
        %v2136 = vpack.c.bf16 %v2132, %v2131
        %v2137 = vpack.c.bf16 %v2134, %v2133
        %2141 = vrot.lane.b32.xlu0 %v2135, 32
        %v2142 = vpop.permute.xlu0 %2141
        %2143 = vrot.lane.b32.xlu0 %v2136, 32
        %v2144 = vpop.permute.xlu0 %2143
        %2145 = vrot.lane.b32.xlu0 %v2137, 32
        %v2146 = vpop.permute.xlu0 %2145
        %vm2150 = vcmask 523520
        %2151 = vst.msk [vmem:[%s2121] sm:$0xff] %vm2150, %v2142
        %2152 = vst.msk [vmem:[%s2121 + $0x20] sm:$0xff] %vm2150, %v2144
        %2153 = vst.msk [vmem:[%s2121 + $0x40] sm:$0xff] %vm2150, %v2146
        %s2154 = sadd.s32 %s2125, 1
        %s2155 = smul.u32 %s2154, 16
        %s2156 = scalar_lea.vmem [#allocation2], %s2155
        %v2157 = vld [vmem:[%s2156] sm:$0xff]
        %v2158 = vld [vmem:[%s2156 + $0x8] sm:$0xff]
        %v2159 = vld [vmem:[%s2156 + $0x10] sm:$0xff]
        %v2160 = vld [vmem:[%s2156 + $0x18] sm:$0xff]
        %v2161 = vld [vmem:[%s2156 + $0x20] sm:$0xff]
        %v2162 = vld [vmem:[%s2156 + $0x28] sm:$0xff]
        %v2163 = vpack.c.bf16 %v2158, %v2157
        %v2164 = vpack.c.bf16 %v2160, %v2159
        %v2165 = vpack.c.bf16 %v2162, %v2161
        %2169 = vrot.lane.b32.xlu0 %v2163, 64
        %v2170 = vpop.permute.xlu0 %2169
        %2171 = vrot.lane.b32.xlu0 %v2164, 64
        %v2172 = vpop.permute.xlu0 %2171
        %2173 = vrot.lane.b32.xlu0 %v2165, 64
        %v2174 = vpop.permute.xlu0 %2173
        %vm2178 = vcmask 785920
        %2179 = vst.msk [vmem:[%s2121] sm:$0xff] %vm2178, %v2170
        %2180 = vst.msk [vmem:[%s2121 + $0x20] sm:$0xff] %vm2178, %v2172
        %2181 = vst.msk [vmem:[%s2121 + $0x40] sm:$0xff] %vm2178, %v2174
        %s2182 = sadd.s32 %s2125, 5
        %s2183 = smul.u32 %s2182, 16
        %s2184 = scalar_lea.vmem [#allocation2], %s2183
        %v2185 = vld [vmem:[%s2184] sm:$0xff]
        %v2186 = vld [vmem:[%s2184 + $0x8] sm:$0xff]
        %v2187 = vld [vmem:[%s2184 + $0x10] sm:$0xff]
        %v2188 = vld [vmem:[%s2184 + $0x18] sm:$0xff]
        %v2189 = vld [vmem:[%s2184 + $0x20] sm:$0xff]
        %v2190 = vld [vmem:[%s2184 + $0x28] sm:$0xff]
        %v2191 = vpack.c.bf16 %v2186, %v2185
        %v2192 = vpack.c.bf16 %v2188, %v2187
        %v2193 = vpack.c.bf16 %v2190, %v2189
        %2197 = vrot.lane.b32.xlu0 %v2191, 96
        %v2198 = vpop.permute.xlu0 %2197
        %2199 = vrot.lane.b32.xlu0 %v2192, 96
        %v2200 = vpop.permute.xlu0 %2199
        %2201 = vrot.lane.b32.xlu0 %v2193, 96
        %v2202 = vpop.permute.xlu0 %2201
        %vm2206 = vcmask 1048320
        %2207 = vst.msk [vmem:[%s2121] sm:$0xff] %vm2206, %v2198
        %2208 = vst.msk [vmem:[%s2121 + $0x20] sm:$0xff] %vm2206, %v2200
        %2209 = vst.msk [vmem:[%s2121 + $0x40] sm:$0xff] %vm2206, %v2202
        %s2210 = smul.u32 %s2100, 2
        %s2211 = sadd.s32 %s2210, 1
        %s2212 = smul.u32 %s2211, 128
        %s2213 = scalar_lea.vmem [#allocation2], %s2212
        %v2214 = vld [vmem:[%s2213] sm:$0xff]
        %v2215 = vld [vmem:[%s2213 + $0x8] sm:$0xff]
        %v2216 = vld [vmem:[%s2213 + $0x10] sm:$0xff]
        %v2217 = vld [vmem:[%s2213 + $0x18] sm:$0xff]
        %v2218 = vld [vmem:[%s2213 + $0x20] sm:$0xff]
        %v2219 = vld [vmem:[%s2213 + $0x28] sm:$0xff]
        %v2220 = vpack.c.bf16 %v2215, %v2214
        %v2221 = vpack.c.bf16 %v2217, %v2216
        %v2222 = vpack.c.bf16 %v2219, %v2218
        %2223 = vst.msk [vmem:[%s2121 + $0x8] sm:$0xff] %vm1970, %v2220
        %2224 = vst.msk [vmem:[%s2121 + $0x28] sm:$0xff] %vm1970, %v2221
        %2225 = vst.msk [vmem:[%s2121 + $0x48] sm:$0xff] %vm1970, %v2222
        %s2226 = smul.u32 %s2211, 8
        %s2227 = sadd.s32 %s2226, 4
        %s2228 = smul.u32 %s2227, 16
        %s2229 = scalar_lea.vmem [#allocation2], %s2228
        %v2230 = vld [vmem:[%s2229] sm:$0xff]
        %v2231 = vld [vmem:[%s2229 + $0x8] sm:$0xff]
        %v2232 = vld [vmem:[%s2229 + $0x10] sm:$0xff]
        %v2233 = vld [vmem:[%s2229 + $0x18] sm:$0xff]
        %v2234 = vld [vmem:[%s2229 + $0x20] sm:$0xff]
        %v2235 = vld [vmem:[%s2229 + $0x28] sm:$0xff]
        %v2236 = vpack.c.bf16 %v2231, %v2230
        %v2237 = vpack.c.bf16 %v2233, %v2232
        %v2238 = vpack.c.bf16 %v2235, %v2234
        %2242 = vrot.lane.b32.xlu0 %v2236, 32
        %v2243 = vpop.permute.xlu0 %2242
        %2244 = vrot.lane.b32.xlu0 %v2237, 32
        %v2245 = vpop.permute.xlu0 %2244
        %2246 = vrot.lane.b32.xlu0 %v2238, 32
        %v2247 = vpop.permute.xlu0 %2246
        %2251 = vst.msk [vmem:[%s2121 + $0x8] sm:$0xff] %vm2150, %v2243
        %2252 = vst.msk [vmem:[%s2121 + $0x28] sm:$0xff] %vm2150, %v2245
        %2253 = vst.msk [vmem:[%s2121 + $0x48] sm:$0xff] %vm2150, %v2247
        %s2254 = sadd.s32 %s2226, 1
        %s2255 = smul.u32 %s2254, 16
        %s2256 = scalar_lea.vmem [#allocation2], %s2255
        %v2257 = vld [vmem:[%s2256] sm:$0xff]
        %v2258 = vld [vmem:[%s2256 + $0x8] sm:$0xff]
        %v2259 = vld [vmem:[%s2256 + $0x10] sm:$0xff]
        %v2260 = vld [vmem:[%s2256 + $0x18] sm:$0xff]
        %v2261 = vld [vmem:[%s2256 + $0x20] sm:$0xff]
        %v2262 = vld [vmem:[%s2256 + $0x28] sm:$0xff]
        %v2263 = vpack.c.bf16 %v2258, %v2257
        %v2264 = vpack.c.bf16 %v2260, %v2259
        %v2265 = vpack.c.bf16 %v2262, %v2261
        %2269 = vrot.lane.b32.xlu0 %v2263, 64
        %v2270 = vpop.permute.xlu0 %2269
        %2271 = vrot.lane.b32.xlu0 %v2264, 64
        %v2272 = vpop.permute.xlu0 %2271
        %2273 = vrot.lane.b32.xlu0 %v2265, 64
        %v2274 = vpop.permute.xlu0 %2273
        %2278 = vst.msk [vmem:[%s2121 + $0x8] sm:$0xff] %vm2178, %v2270
        %2279 = vst.msk [vmem:[%s2121 + $0x28] sm:$0xff] %vm2178, %v2272
        %2280 = vst.msk [vmem:[%s2121 + $0x48] sm:$0xff] %vm2178, %v2274
        %s2281 = sadd.s32 %s2226, 5
        %s2282 = smul.u32 %s2281, 16
        %s2283 = scalar_lea.vmem [#allocation2], %s2282
        %v2284 = vld [vmem:[%s2283] sm:$0xff]
        %v2285 = vld [vmem:[%s2283 + $0x8] sm:$0xff]
        %v2286 = vld [vmem:[%s2283 + $0x10] sm:$0xff]
        %v2287 = vld [vmem:[%s2283 + $0x18] sm:$0xff]
        %v2288 = vld [vmem:[%s2283 + $0x20] sm:$0xff]
        %v2289 = vld [vmem:[%s2283 + $0x28] sm:$0xff]
        %v2290 = vpack.c.bf16 %v2285, %v2284
        %v2291 = vpack.c.bf16 %v2287, %v2286
        %v2292 = vpack.c.bf16 %v2289, %v2288
        %2296 = vrot.lane.b32.xlu0 %v2290, 96
        %v2297 = vpop.permute.xlu0 %2296
        %2298 = vrot.lane.b32.xlu0 %v2291, 96
        %v2299 = vpop.permute.xlu0 %2298
        %2300 = vrot.lane.b32.xlu0 %v2292, 96
        %v2301 = vpop.permute.xlu0 %2300
        %2305 = vst.msk [vmem:[%s2121 + $0x8] sm:$0xff] %vm2206, %v2297
        %2306 = vst.msk [vmem:[%s2121 + $0x28] sm:$0xff] %vm2206, %v2299
        %2307 = vst.msk [vmem:[%s2121 + $0x48] sm:$0xff] %vm2206, %v2301
        %s2308 = sadd.s32 %s2210, 2
        %s2309 = smul.u32 %s2308, 128
        %s2310 = scalar_lea.vmem [#allocation2], %s2309
        %v2311 = vld [vmem:[%s2310] sm:$0xff]
        %v2312 = vld [vmem:[%s2310 + $0x8] sm:$0xff]
        %v2313 = vld [vmem:[%s2310 + $0x10] sm:$0xff]
        %v2314 = vld [vmem:[%s2310 + $0x18] sm:$0xff]
        %v2315 = vld [vmem:[%s2310 + $0x20] sm:$0xff]
        %v2316 = vld [vmem:[%s2310 + $0x28] sm:$0xff]
        %v2317 = vpack.c.bf16 %v2312, %v2311
        %v2318 = vpack.c.bf16 %v2314, %v2313
        %v2319 = vpack.c.bf16 %v2316, %v2315
        %2320 = vst.msk [vmem:[%s2121 + $0x10] sm:$0xff] %vm1970, %v2317
        %2321 = vst.msk [vmem:[%s2121 + $0x30] sm:$0xff] %vm1970, %v2318
        %2322 = vst.msk [vmem:[%s2121 + $0x50] sm:$0xff] %vm1970, %v2319
        %s2323 = smul.u32 %s2308, 8
        %s2324 = sadd.s32 %s2323, 4
        %s2325 = smul.u32 %s2324, 16
        %s2326 = scalar_lea.vmem [#allocation2], %s2325
        %v2327 = vld [vmem:[%s2326] sm:$0xff]
        %v2328 = vld [vmem:[%s2326 + $0x8] sm:$0xff]
        %v2329 = vld [vmem:[%s2326 + $0x10] sm:$0xff]
        %v2330 = vld [vmem:[%s2326 + $0x18] sm:$0xff]
        %v2331 = vld [vmem:[%s2326 + $0x20] sm:$0xff]
        %v2332 = vld [vmem:[%s2326 + $0x28] sm:$0xff]
        %v2333 = vpack.c.bf16 %v2328, %v2327
        %v2334 = vpack.c.bf16 %v2330, %v2329
        %v2335 = vpack.c.bf16 %v2332, %v2331
        %2339 = vrot.lane.b32.xlu0 %v2333, 32
        %v2340 = vpop.permute.xlu0 %2339
        %2341 = vrot.lane.b32.xlu0 %v2334, 32
        %v2342 = vpop.permute.xlu0 %2341
        %2343 = vrot.lane.b32.xlu0 %v2335, 32
        %v2344 = vpop.permute.xlu0 %2343
        %2348 = vst.msk [vmem:[%s2121 + $0x10] sm:$0xff] %vm2150, %v2340
        %2349 = vst.msk [vmem:[%s2121 + $0x30] sm:$0xff] %vm2150, %v2342
        %2350 = vst.msk [vmem:[%s2121 + $0x50] sm:$0xff] %vm2150, %v2344
        %s2351 = sadd.s32 %s2323, 1
        %s2352 = smul.u32 %s2351, 16
        %s2353 = scalar_lea.vmem [#allocation2], %s2352
        %v2354 = vld [vmem:[%s2353] sm:$0xff]
        %v2355 = vld [vmem:[%s2353 + $0x8] sm:$0xff]
        %v2356 = vld [vmem:[%s2353 + $0x10] sm:$0xff]
        %v2357 = vld [vmem:[%s2353 + $0x18] sm:$0xff]
        %v2358 = vld [vmem:[%s2353 + $0x20] sm:$0xff]
        %v2359 = vld [vmem:[%s2353 + $0x28] sm:$0xff]
        %v2360 = vpack.c.bf16 %v2355, %v2354
        %v2361 = vpack.c.bf16 %v2357, %v2356
        %v2362 = vpack.c.bf16 %v2359, %v2358
        %2366 = vrot.lane.b32.xlu0 %v2360, 64
        %v2367 = vpop.permute.xlu0 %2366
        %2368 = vrot.lane.b32.xlu0 %v2361, 64
        %v2369 = vpop.permute.xlu0 %2368
        %2370 = vrot.lane.b32.xlu0 %v2362, 64
        %v2371 = vpop.permute.xlu0 %2370
        %2375 = vst.msk [vmem:[%s2121 + $0x10] sm:$0xff] %vm2178, %v2367
        %2376 = vst.msk [vmem:[%s2121 + $0x30] sm:$0xff] %vm2178, %v2369
        %2377 = vst.msk [vmem:[%s2121 + $0x50] sm:$0xff] %vm2178, %v2371
        %s2378 = sadd.s32 %s2323, 5
        %s2379 = smul.u32 %s2378, 16
        %s2380 = scalar_lea.vmem [#allocation2], %s2379
        %v2381 = vld [vmem:[%s2380] sm:$0xff]
        %v2382 = vld [vmem:[%s2380 + $0x8] sm:$0xff]
        %v2383 = vld [vmem:[%s2380 + $0x10] sm:$0xff]
        %v2384 = vld [vmem:[%s2380 + $0x18] sm:$0xff]
        %v2385 = vld [vmem:[%s2380 + $0x20] sm:$0xff]
        %v2386 = vld [vmem:[%s2380 + $0x28] sm:$0xff]
        %v2387 = vpack.c.bf16 %v2382, %v2381
        %v2388 = vpack.c.bf16 %v2384, %v2383
        %v2389 = vpack.c.bf16 %v2386, %v2385
        %2393 = vrot.lane.b32.xlu0 %v2387, 96
        %v2394 = vpop.permute.xlu0 %2393
        %2395 = vrot.lane.b32.xlu0 %v2388, 96
        %v2396 = vpop.permute.xlu0 %2395
        %2397 = vrot.lane.b32.xlu0 %v2389, 96
        %v2398 = vpop.permute.xlu0 %2397
        %2402 = vst.msk [vmem:[%s2121 + $0x10] sm:$0xff] %vm2206, %v2394
        %2403 = vst.msk [vmem:[%s2121 + $0x30] sm:$0xff] %vm2206, %v2396
        %2404 = vst.msk [vmem:[%s2121 + $0x50] sm:$0xff] %vm2206, %v2398
        %s2405 = sadd.s32 %s2210, 3
        %s2406 = smul.u32 %s2405, 128
        %s2407 = scalar_lea.vmem [#allocation2], %s2406
        %v2408 = vld [vmem:[%s2407] sm:$0xff]
        %v2409 = vld [vmem:[%s2407 + $0x8] sm:$0xff]
        %v2410 = vld [vmem:[%s2407 + $0x10] sm:$0xff]
        %v2411 = vld [vmem:[%s2407 + $0x18] sm:$0xff]
        %v2412 = vld [vmem:[%s2407 + $0x20] sm:$0xff]
        %v2413 = vld [vmem:[%s2407 + $0x28] sm:$0xff]
        %v2414 = vpack.c.bf16 %v2409, %v2408
        %v2415 = vpack.c.bf16 %v2411, %v2410
        %v2416 = vpack.c.bf16 %v2413, %v2412
        %2417 = vst.msk [vmem:[%s2121 + $0x18] sm:$0xff] %vm1970, %v2414
        %2418 = vst.msk [vmem:[%s2121 + $0x38] sm:$0xff] %vm1970, %v2415
        %2419 = vst.msk [vmem:[%s2121 + $0x58] sm:$0xff] %vm1970, %v2416
        %s2420 = smul.u32 %s2405, 8
        %s2421 = sadd.s32 %s2420, 4
        %s2422 = smul.u32 %s2421, 16
        %s2423 = scalar_lea.vmem [#allocation2], %s2422
        %v2424 = vld [vmem:[%s2423] sm:$0xff]
        %v2425 = vld [vmem:[%s2423 + $0x8] sm:$0xff]
        %v2426 = vld [vmem:[%s2423 + $0x10] sm:$0xff]
        %v2427 = vld [vmem:[%s2423 + $0x18] sm:$0xff]
        %v2428 = vld [vmem:[%s2423 + $0x20] sm:$0xff]
        %v2429 = vld [vmem:[%s2423 + $0x28] sm:$0xff]
        %v2430 = vpack.c.bf16 %v2425, %v2424
        %v2431 = vpack.c.bf16 %v2427, %v2426
        %v2432 = vpack.c.bf16 %v2429, %v2428
        %2436 = vrot.lane.b32.xlu0 %v2430, 32
        %v2437 = vpop.permute.xlu0 %2436
        %2438 = vrot.lane.b32.xlu0 %v2431, 32
        %v2439 = vpop.permute.xlu0 %2438
        %2440 = vrot.lane.b32.xlu0 %v2432, 32
        %v2441 = vpop.permute.xlu0 %2440
        %2445 = vst.msk [vmem:[%s2121 + $0x18] sm:$0xff] %vm2150, %v2437
        %2446 = vst.msk [vmem:[%s2121 + $0x38] sm:$0xff] %vm2150, %v2439
        %2447 = vst.msk [vmem:[%s2121 + $0x58] sm:$0xff] %vm2150, %v2441
        %s2448 = sadd.s32 %s2420, 1
        %s2449 = smul.u32 %s2448, 16
        %s2450 = scalar_lea.vmem [#allocation2], %s2449
        %v2451 = vld [vmem:[%s2450] sm:$0xff]
        %v2452 = vld [vmem:[%s2450 + $0x8] sm:$0xff]
        %v2453 = vld [vmem:[%s2450 + $0x10] sm:$0xff]
        %v2454 = vld [vmem:[%s2450 + $0x18] sm:$0xff]
        %v2455 = vld [vmem:[%s2450 + $0x20] sm:$0xff]
        %v2456 = vld [vmem:[%s2450 + $0x28] sm:$0xff]
        %v2457 = vpack.c.bf16 %v2452, %v2451
        %v2458 = vpack.c.bf16 %v2454, %v2453
        %v2459 = vpack.c.bf16 %v2456, %v2455
        %2463 = vrot.lane.b32.xlu0 %v2457, 64
        %v2464 = vpop.permute.xlu0 %2463
        %2465 = vrot.lane.b32.xlu0 %v2458, 64
        %v2466 = vpop.permute.xlu0 %2465
        %2467 = vrot.lane.b32.xlu0 %v2459, 64
        %v2468 = vpop.permute.xlu0 %2467
        %2472 = vst.msk [vmem:[%s2121 + $0x18] sm:$0xff] %vm2178, %v2464
        %2473 = vst.msk [vmem:[%s2121 + $0x38] sm:$0xff] %vm2178, %v2466
        %2474 = vst.msk [vmem:[%s2121 + $0x58] sm:$0xff] %vm2178, %v2468
        %s2475 = sadd.s32 %s2420, 5
        %s2476 = smul.u32 %s2475, 16
        %s2477 = scalar_lea.vmem [#allocation2], %s2476
        %v2478 = vld [vmem:[%s2477] sm:$0xff]
        %v2479 = vld [vmem:[%s2477 + $0x8] sm:$0xff]
        %v2480 = vld [vmem:[%s2477 + $0x10] sm:$0xff]
        %v2481 = vld [vmem:[%s2477 + $0x18] sm:$0xff]
        %v2482 = vld [vmem:[%s2477 + $0x20] sm:$0xff]
        %v2483 = vld [vmem:[%s2477 + $0x28] sm:$0xff]
        %v2484 = vpack.c.bf16 %v2479, %v2478
        %v2485 = vpack.c.bf16 %v2481, %v2480
        %v2486 = vpack.c.bf16 %v2483, %v2482
        %2490 = vrot.lane.b32.xlu0 %v2484, 96
        %v2491 = vpop.permute.xlu0 %2490
        %2492 = vrot.lane.b32.xlu0 %v2485, 96
        %v2493 = vpop.permute.xlu0 %2492
        %2494 = vrot.lane.b32.xlu0 %v2486, 96
        %v2495 = vpop.permute.xlu0 %2494
        %2499 = vst.msk [vmem:[%s2121 + $0x18] sm:$0xff] %vm2206, %v2491
        %2500 = vst.msk [vmem:[%s2121 + $0x38] sm:$0xff] %vm2206, %v2493
        %2501 = vst.msk [vmem:[%s2121 + $0x58] sm:$0xff] %vm2206, %v2495
      $region69: #{_lambda_.1} parent=63 // loop_footer
        %s2104 = sadd.s32 1, %s2100
      $region70: #{_lambda_.1} parent=63 // loop_footer_branch
        %2099 = sbr.rel target = $region66
      $region71: #{_lambda_.1} parent=63 // loop_exit
        _
      %v2502 = vld [vmem:[#allocation3] sm:$0xff]
      %v2503 = vld [vmem:[#allocation3 + $0x8] sm:$0xff]
      %v2504 = vld [vmem:[#allocation3 + $0x10] sm:$0xff]
      %v2505 = vld [vmem:[#allocation3 + $0x18] sm:$0xff]
      %v2506 = vld [vmem:[#allocation3 + $0x20] sm:$0xff]
      %v2507 = vld [vmem:[#allocation3 + $0x28] sm:$0xff]
      %v2508 = vld [vmem:[#allocation3 + $0x30] sm:$0xff]
      %v2509 = vld [vmem:[#allocation3 + $0x38] sm:$0xff]
      %v2510 = vld [vmem:[#allocation3 + $0x40] sm:$0xff]
      %v2511 = vld [vmem:[#allocation3 + $0x48] sm:$0xff]
      %v2512 = vld [vmem:[#allocation3 + $0x50] sm:$0xff]
      %v2513 = vld [vmem:[#allocation3 + $0x58] sm:$0xff]
      %v2514 = vld [vmem:[#allocation3 + $0x60] sm:$0xff]
      %v2515 = vld [vmem:[#allocation3 + $0x68] sm:$0xff]
      %v2516 = vld [vmem:[#allocation3 + $0x70] sm:$0xff]
      %v2517 = vld [vmem:[#allocation3 + $0x78] sm:$0xff]
      %v2518 = vld [vmem:[#allocation3 + $0x80] sm:$0xff]
      %v2519 = vld [vmem:[#allocation3 + $0x88] sm:$0xff]
      %v2520 = vld [vmem:[#allocation3 + $0x90] sm:$0xff]
      %v2521 = vld [vmem:[#allocation3 + $0x98] sm:$0xff]
      %v2522 = vld [vmem:[#allocation3 + $0xa0] sm:$0xff]
      %v2523 = vld [vmem:[#allocation3 + $0xa8] sm:$0xff]
      %v2524 = vld [vmem:[#allocation3 + $0xb0] sm:$0xff]
      %v2525 = vld [vmem:[#allocation3 + $0xb8] sm:$0xff]
      %v2526 = vld [vmem:[#allocation3 + $0xc0] sm:$0xff]
      %v2527 = vld [vmem:[#allocation3 + $0xc8] sm:$0xff]
      %v2528 = vld [vmem:[#allocation3 + $0xd0] sm:$0xff]
      %v2529 = vld [vmem:[#allocation3 + $0xd8] sm:$0xff]
      %v2530 = vld [vmem:[#allocation3 + $0xe0] sm:$0xff]
      %v2531 = vld [vmem:[#allocation3 + $0xe8] sm:$0xff]
      %v2532 = vld [vmem:[#allocation3 + $0xf0] sm:$0xff]
      %v2533 = vld [vmem:[#allocation3 + $0xf8] sm:$0xff]
      %v2534 = vld [vmem:[#allocation3 + $0x100] sm:$0xff]
      %v2535 = vld [vmem:[#allocation3 + $0x108] sm:$0xff]
      %v2536 = vld [vmem:[#allocation3 + $0x110] sm:$0xff]
      %v2537 = vld [vmem:[#allocation3 + $0x118] sm:$0xff]
      %v2538 = vld [vmem:[%s3] sm:$0xf]
      %v2539 = vld [vmem:[%s3 + $0x4] sm:$0xf]
      %v2540 = vld [vmem:[%s3 + $0x8] sm:$0xf]
      %v2541 = vld [vmem:[%s3 + $0xc] sm:$0xf]
      %v2542 = vld [vmem:[%s3 + $0x10] sm:$0xf]
      %v2543 = vld [vmem:[%s3 + $0x14] sm:$0xf]
      %v2544 = vld [vmem:[%s3 + $0x18] sm:$0xf]
      %v2545 = vld [vmem:[%s3 + $0x1c] sm:$0xf]
      %v2546 = vld [vmem:[%s3 + $0x20] sm:$0xf]
      %v2547 = vld [vmem:[%s3 + $0x24] sm:$0xf]
      %v2548 = vld [vmem:[%s3 + $0x28] sm:$0xf]
      %v2549 = vld [vmem:[%s3 + $0x2c] sm:$0xf]
      %v2550 = vld [vmem:[%s3 + $0x30] sm:$0xf]
      %v2551 = vld [vmem:[%s3 + $0x34] sm:$0xf]
      %v2552 = vld [vmem:[%s3 + $0x38] sm:$0xf]
      %v2553 = vld [vmem:[%s3 + $0x3c] sm:$0xf]
      %v2554 = vld [vmem:[%s3 + $0x40] sm:$0xf]
      %v2555 = vld [vmem:[%s3 + $0x44] sm:$0xf]
      %v2556 = vld [vmem:[%s3 + $0x48] sm:$0xf]
      %v2557 = vld [vmem:[%s3 + $0x4c] sm:$0xf]
      %v2558 = vld [vmem:[%s3 + $0x50] sm:$0xf]
      %v2559 = vld [vmem:[%s3 + $0x54] sm:$0xf]
      %v2560 = vld [vmem:[%s3 + $0x58] sm:$0xf]
      %v2561 = vld [vmem:[%s3 + $0x5c] sm:$0xf]
      %v2562 = vld [vmem:[%s3 + $0x60] sm:$0xf]
      %v2563 = vld [vmem:[%s3 + $0x64] sm:$0xf]
      %v2564 = vld [vmem:[%s3 + $0x68] sm:$0xf]
      %v2565 = vld [vmem:[%s3 + $0x6c] sm:$0xf]
      %v2566 = vld [vmem:[%s3 + $0x70] sm:$0xf]
      %v2567 = vld [vmem:[%s3 + $0x74] sm:$0xf]
      %v2568 = vld [vmem:[%s3 + $0x78] sm:$0xf]
      %v2569 = vld [vmem:[%s3 + $0x7c] sm:$0xf]
      %v2570 = vld [vmem:[%s3 + $0x80] sm:$0xf]
      %v2571 = vld [vmem:[%s3 + $0x84] sm:$0xf]
      %v2572 = vld [vmem:[%s3 + $0x88] sm:$0xf]
      %v2573 = vld [vmem:[%s3 + $0x8c] sm:$0xf]
      %v2574 = vld [vmem:[%s3 + $0x90] sm:$0xf]
      %v2575 = vld [vmem:[%s3 + $0x94] sm:$0xf]
      %v2576 = vld [vmem:[%s3 + $0x98] sm:$0xf]
      %v2577 = vld [vmem:[%s3 + $0x9c] sm:$0xf]
      %v2578 = vld [vmem:[%s3 + $0xa0] sm:$0xf]
      %v2579 = vld [vmem:[%s3 + $0xa4] sm:$0xf]
      %v2580 = vld [vmem:[%s3 + $0xa8] sm:$0xf]
      %v2581 = vld [vmem:[%s3 + $0xac] sm:$0xf]
      %v2582 = vld [vmem:[%s3 + $0xb0] sm:$0xf]
      %v2583 = vld [vmem:[%s3 + $0xb4] sm:$0xf]
      %v2584 = vld [vmem:[%s3 + $0xb8] sm:$0xf]
      %v2585 = vld [vmem:[%s3 + $0xbc] sm:$0xf]
      %v2586 = vld [vmem:[%s3 + $0xc0] sm:$0xf]
      %v2587 = vld [vmem:[%s3 + $0xc4] sm:$0xf]
      %v2588 = vld [vmem:[%s3 + $0xc8] sm:$0xf]
      %v2589 = vld [vmem:[%s3 + $0xcc] sm:$0xf]
      %v2590 = vld [vmem:[%s3 + $0xd0] sm:$0xf]
      %v2591 = vld [vmem:[%s3 + $0xd4] sm:$0xf]
      %v2592 = vld [vmem:[%s3 + $0xd8] sm:$0xf]
      %v2593 = vld [vmem:[%s3 + $0xdc] sm:$0xf]
      %v2594 = vld [vmem:[%s3 + $0xe0] sm:$0xf]
      %v2595 = vld [vmem:[%s3 + $0xe4] sm:$0xf]
      %v2596 = vld [vmem:[%s3 + $0xe8] sm:$0xf]
      %v2597 = vld [vmem:[%s3 + $0xec] sm:$0xf]
      %v2598 = vld [vmem:[%s3 + $0xf0] sm:$0xf]
      %v2599 = vld [vmem:[%s3 + $0xf4] sm:$0xf]
      %v2600 = vld [vmem:[%s3 + $0xf8] sm:$0xf]
      %v2601 = vld [vmem:[%s3 + $0xfc] sm:$0xf]
      %v2602 = vld [vmem:[%s4] sm:$0x1]
      %v2604 = vlaneseq
      %v2605 = vshrl.u32 %v2604, 7
      %v2606 = vsub.s32 0, %v2605
      %v2607 = vrot.slane %v2602, %v2606
      %v2673 = vunpack.c.l.b16 %v2538
      %v2674 = vunpack.c.l.b16 %v2539
      %v2675 = vunpack.c.l.b16 %v2540
      %v2676 = vunpack.c.l.b16 %v2541
      %v2677 = vunpack.c.l.b16 %v2542
      %v2678 = vunpack.c.l.b16 %v2543
      %v2679 = vunpack.c.l.b16 %v2544
      %v2680 = vunpack.c.l.b16 %v2545
      %v2681 = vunpack.c.l.b16 %v2546
      %v2682 = vunpack.c.l.b16 %v2547
      %v2683 = vunpack.c.l.b16 %v2548
      %v2684 = vunpack.c.l.b16 %v2549
      %v2685 = vunpack.c.l.b16 %v2550
      %v2686 = vunpack.c.l.b16 %v2551
      %v2687 = vunpack.c.l.b16 %v2552
      %v2688 = vunpack.c.l.b16 %v2553
      %v2689 = vunpack.c.l.b16 %v2554
      %v2690 = vunpack.c.l.b16 %v2555
      %v2691 = vunpack.c.l.b16 %v2556
      %v2692 = vunpack.c.l.b16 %v2557
      %v2693 = vunpack.c.l.b16 %v2558
      %v2694 = vunpack.c.l.b16 %v2559
      %v2695 = vunpack.c.l.b16 %v2560
      %v2696 = vunpack.c.l.b16 %v2561
      %v2697 = vunpack.c.l.b16 %v2562
      %v2698 = vunpack.c.l.b16 %v2563
      %v2699 = vunpack.c.l.b16 %v2564
      %v2700 = vunpack.c.l.b16 %v2565
      %v2701 = vunpack.c.l.b16 %v2566
      %v2702 = vunpack.c.l.b16 %v2567
      %v2703 = vunpack.c.l.b16 %v2568
      %v2704 = vunpack.c.l.b16 %v2569
      %v2705 = vunpack.c.l.b16 %v2570
      %v2706 = vunpack.c.l.b16 %v2571
      %v2707 = vunpack.c.l.b16 %v2572
      %v2708 = vunpack.c.l.b16 %v2573
      %v2709 = vunpack.c.l.b16 %v2574
      %v2710 = vunpack.c.l.b16 %v2575
      %v2711 = vunpack.c.l.b16 %v2576
      %v2712 = vunpack.c.l.b16 %v2577
      %v2713 = vunpack.c.l.b16 %v2578
      %v2714 = vunpack.c.l.b16 %v2579
      %v2715 = vunpack.c.l.b16 %v2580
      %v2716 = vunpack.c.l.b16 %v2581
      %v2717 = vunpack.c.l.b16 %v2582
      %v2718 = vunpack.c.l.b16 %v2583
      %v2719 = vunpack.c.l.b16 %v2584
      %v2720 = vunpack.c.l.b16 %v2585
      %v2721 = vunpack.c.l.b16 %v2586
      %v2722 = vunpack.c.l.b16 %v2587
      %v2723 = vunpack.c.l.b16 %v2588
      %v2724 = vunpack.c.l.b16 %v2589
      %v2725 = vunpack.c.l.b16 %v2590
      %v2726 = vunpack.c.l.b16 %v2591
      %v2727 = vunpack.c.l.b16 %v2592
      %v2728 = vunpack.c.l.b16 %v2593
      %v2729 = vunpack.c.l.b16 %v2594
      %v2730 = vunpack.c.l.b16 %v2595
      %v2731 = vunpack.c.l.b16 %v2596
      %v2732 = vunpack.c.l.b16 %v2597
      %v2733 = vunpack.c.l.b16 %v2598
      %v2734 = vunpack.c.l.b16 %v2599
      %v2735 = vunpack.c.l.b16 %v2600
      %v2736 = vunpack.c.l.b16 %v2601
      %v2737 = vpack.c.b16 %v2674, %v2673
      %v2738 = vpack.c.b16 %v2676, %v2675
      %v2739 = vpack.c.b16 %v2678, %v2677
      %v2740 = vpack.c.b16 %v2680, %v2679
      %v2741 = vpack.c.b16 %v2682, %v2681
      %v2742 = vpack.c.b16 %v2684, %v2683
      %v2743 = vpack.c.b16 %v2686, %v2685
      %v2744 = vpack.c.b16 %v2688, %v2687
      %v2745 = vpack.c.b16 %v2690, %v2689
      %v2746 = vpack.c.b16 %v2692, %v2691
      %v2747 = vpack.c.b16 %v2694, %v2693
      %v2748 = vpack.c.b16 %v2696, %v2695
      %v2749 = vpack.c.b16 %v2698, %v2697
      %v2750 = vpack.c.b16 %v2700, %v2699
      %v2751 = vpack.c.b16 %v2702, %v2701
      %v2752 = vpack.c.b16 %v2704, %v2703
      %v2753 = vpack.c.b16 %v2706, %v2705
      %v2754 = vpack.c.b16 %v2708, %v2707
      %v2755 = vpack.c.b16 %v2710, %v2709
      %v2756 = vpack.c.b16 %v2712, %v2711
      %v2757 = vpack.c.b16 %v2714, %v2713
      %v2758 = vpack.c.b16 %v2716, %v2715
      %v2759 = vpack.c.b16 %v2718, %v2717
      %v2760 = vpack.c.b16 %v2720, %v2719
      %v2761 = vpack.c.b16 %v2722, %v2721
      %v2762 = vpack.c.b16 %v2724, %v2723
      %v2763 = vpack.c.b16 %v2726, %v2725
      %v2764 = vpack.c.b16 %v2728, %v2727
      %v2765 = vpack.c.b16 %v2730, %v2729
      %v2766 = vpack.c.b16 %v2732, %v2731
      %v2767 = vpack.c.b16 %v2734, %v2733
      %v2768 = vpack.c.b16 %v2736, %v2735
      %2801 = vmatprep.subr.bf16.mxu0 0
      %2802 = vmatpush1.bf16.msra.mxu0 %v2737
      %2803 = vmatprep.subr.bf16.mxu0 0
      %2804 = vmatpush1.bf16.msra.mxu0 %v2738
      %2805 = vmatprep.subr.bf16.mxu0 0
      %2806 = vmatpush1.bf16.msra.mxu0 %v2739
      %2807 = vmatprep.subr.bf16.mxu0 0
      %2808 = vmatpush1.bf16.msra.mxu0 %v2740
      %2809 = vmatprep.subr.bf16.mxu0 0
      %2810 = vmatpush1.bf16.msra.mxu0 %v2741
      %2811 = vmatprep.subr.bf16.mxu0 0
      %2812 = vmatpush1.bf16.msra.mxu0 %v2742
      %2813 = vmatprep.subr.bf16.mxu0 0
      %2814 = vmatpush1.bf16.msra.mxu0 %v2743
      %2815 = vmatprep.subr.bf16.mxu0 0
      %2816 = vmatpush1.bf16.msra.mxu0 %v2744
      %2817 = vmatprep.subr.bf16.mxu0 0
      %2818 = vmatpush1.bf16.msra.mxu0 %v2745
      %2819 = vmatprep.subr.bf16.mxu0 0
      %2820 = vmatpush1.bf16.msra.mxu0 %v2746
      %2821 = vmatprep.subr.bf16.mxu0 0
      %2822 = vmatpush1.bf16.msra.mxu0 %v2747
      %2823 = vmatprep.subr.bf16.mxu0 0
      %2824 = vmatpush1.bf16.msra.mxu0 %v2748
      %2825 = vmatprep.subr.bf16.mxu0 0
      %2826 = vmatpush1.bf16.msra.mxu0 %v2749
      %2827 = vmatprep.subr.bf16.mxu0 0
      %2828 = vmatpush1.bf16.msra.mxu0 %v2750
      %2829 = vmatprep.subr.bf16.mxu0 0
      %2830 = vmatpush1.bf16.msra.mxu0 %v2751
      %2831 = vmatprep.subr.bf16.mxu0 0
      %2832 = vmatpush1.bf16.msra.mxu0 %v2752
      %2833 = vmatprep.mubr.bf16.mxu0 %v2503
      %2834 = vmatmul.mubr.bf16.gmra.mrb[0].mxu0 %v2502
      %v2835 = vpop.f32.mrb[0].mxu0
      %v2836 = vadd.f32 %v2607, %v2835
      %v2837 = vpop.f32.mrb[0].mxu0
      %v2838 = vpop.f32.mrb[0].mxu0
      %v2839 = vadd.f32 %v2607, %v2838
      %v2840 = vpop.f32.mrb[0].mxu0
      %2841 = vmatprep.mubr.bf16.mxu0 %v2507
      %2842 = vmatmul.mubr.bf16.gmra.mrb[0].mxu0 %v2506
      %v2843 = vpop.f32.mrb[0].mxu0
      %v2844 = vadd.f32 %v2607, %v2843
      %v2845 = vpop.f32.mrb[0].mxu0
      %v2846 = vpop.f32.mrb[0].mxu0
      %v2847 = vadd.f32 %v2607, %v2846
      %v2848 = vpop.f32.mrb[0].mxu0
      %2849 = vmatprep.mubr.bf16.mxu0 %v2511
      %2850 = vmatmul.mubr.bf16.gmra.mrb[0].mxu0 %v2510
      %v2851 = vpop.f32.mrb[0].mxu0
      %v2852 = vadd.f32 %v2607, %v2851
      %v2853 = vpop.f32.mrb[0].mxu0
      %v2854 = vpop.f32.mrb[0].mxu0
      %v2855 = vadd.f32 %v2607, %v2854
      %v2856 = vpop.f32.mrb[0].mxu0
      %2857 = vmatprep.mubr.bf16.mxu0 %v2515
      %2858 = vmatmul.mubr.bf16.gmra.mrb[0].mxu0 %v2514
      %v2859 = vpop.f32.mrb[0].mxu0
      %v2860 = vadd.f32 %v2607, %v2859
      %v2861 = vpop.f32.mrb[0].mxu0
      %v2862 = vpop.f32.mrb[0].mxu0
      %v2863 = vadd.f32 %v2607, %v2862
      %v2864 = vpop.f32.mrb[0].mxu0
      %2865 = vmatprep.mubr.bf16.mxu0 %v2519
      %2866 = vmatmul.mubr.bf16.gmra.mrb[0].mxu0 %v2518
      %v2867 = vpop.f32.mrb[0].mxu0
      %v2868 = vadd.f32 %v2607, %v2867
      %v2869 = vpop.f32.mrb[0].mxu0
      %v2870 = vpop.f32.mrb[0].mxu0
      %v2871 = vadd.f32 %v2607, %v2870
      %v2872 = vpop.f32.mrb[0].mxu0
      %2873 = vmatprep.mubr.bf16.mxu0 %v2523
      %2874 = vmatmul.mubr.bf16.gmra.mrb[0].mxu0 %v2522
      %v2875 = vpop.f32.mrb[0].mxu0
      %v2876 = vadd.f32 %v2607, %v2875
      %v2877 = vpop.f32.mrb[0].mxu0
      %v2878 = vpop.f32.mrb[0].mxu0
      %v2879 = vadd.f32 %v2607, %v2878
      %v2880 = vpop.f32.mrb[0].mxu0
      %2881 = vmatprep.mubr.bf16.mxu0 %v2527
      %2882 = vmatmul.mubr.bf16.gmra.mrb[0].mxu0 %v2526
      %v2883 = vpop.f32.mrb[0].mxu0
      %v2884 = vadd.f32 %v2607, %v2883
      %v2885 = vpop.f32.mrb[0].mxu0
      %v2886 = vpop.f32.mrb[0].mxu0
      %v2887 = vadd.f32 %v2607, %v2886
      %v2888 = vpop.f32.mrb[0].mxu0
      %2889 = vmatprep.mubr.bf16.mxu0 %v2531
      %2890 = vmatmul.mubr.bf16.gmra.mrb[0].mxu0 %v2530
      %v2891 = vpop.f32.mrb[0].mxu0
      %v2892 = vadd.f32 %v2607, %v2891
      %v2893 = vpop.f32.mrb[0].mxu0
      %v2894 = vpop.f32.mrb[0].mxu0
      %v2895 = vadd.f32 %v2607, %v2894
      %v2896 = vpop.f32.mrb[0].mxu0
      %2897 = vmatprep.mubr.bf16.mxu0 %v2535
      %2898 = vmatmul.mubr.bf16.gmra.mrb[0].mxu0 %v2534
      %v2899 = vpop.f32.mrb[0].mxu0
      %v2900 = vadd.f32 %v2607, %v2899
      %v2901 = vpop.f32.mrb[0].mxu0
      %v2902 = vpop.f32.mrb[0].mxu0
      %v2903 = vadd.f32 %v2607, %v2902
      %v2904 = vpop.f32.mrb[0].mxu0
      %2905 = vdwg.mxu0
      %2906 = vmatprep.subr.bf16.mxu0 0
      %2907 = vmatpush1.bf16.msra.mxu0 %v2753
      %2908 = vmatprep.subr.bf16.mxu0 0
      %2909 = vmatpush1.bf16.msra.mxu0 %v2754
      %2910 = vmatprep.subr.bf16.mxu0 0
      %2911 = vmatpush1.bf16.msra.mxu0 %v2755
      %2912 = vmatprep.subr.bf16.mxu0 0
      %2913 = vmatpush1.bf16.msra.mxu0 %v2756
      %2914 = vmatprep.subr.bf16.mxu0 0
      %2915 = vmatpush1.bf16.msra.mxu0 %v2757
      %2916 = vmatprep.subr.bf16.mxu0 0
      %2917 = vmatpush1.bf16.msra.mxu0 %v2758
      %2918 = vmatprep.subr.bf16.mxu0 0
      %2919 = vmatpush1.bf16.msra.mxu0 %v2759
      %2920 = vmatprep.subr.bf16.mxu0 0
      %2921 = vmatpush1.bf16.msra.mxu0 %v2760
      %2922 = vmatprep.subr.bf16.mxu0 0
      %2923 = vmatpush1.bf16.msra.mxu0 %v2761
      %2924 = vmatprep.subr.bf16.mxu0 0
      %2925 = vmatpush1.bf16.msra.mxu0 %v2762
      %2926 = vmatprep.subr.bf16.mxu0 0
      %2927 = vmatpush1.bf16.msra.mxu0 %v2763
      %2928 = vmatprep.subr.bf16.mxu0 0
      %2929 = vmatpush1.bf16.msra.mxu0 %v2764
      %2930 = vmatprep.subr.bf16.mxu0 0
      %2931 = vmatpush1.bf16.msra.mxu0 %v2765
      %2932 = vmatprep.subr.bf16.mxu0 0
      %2933 = vmatpush1.bf16.msra.mxu0 %v2766
      %2934 = vmatprep.subr.bf16.mxu0 0
      %2935 = vmatpush1.bf16.msra.mxu0 %v2767
      %2936 = vmatprep.subr.bf16.mxu0 0
      %2937 = vmatpush1.bf16.msra.mxu0 %v2768
      %2938 = vmatprep.mubr.bf16.mxu0 %v2505
      %2939 = vmatmul.mubr.bf16.gmra.mrb[0].mxu0 %v2504
      %v2940 = vpop.f32.mrb[0].mxu0
      %v2941 = vadd.f32 %v2836, %v2940
      %v2942 = vpop.f32.mrb[0].mxu0
      %v2943 = vpop.f32.mrb[0].mxu0
      %v2944 = vadd.f32 %v2839, %v2943
      %v2945 = vpop.f32.mrb[0].mxu0
      %2946 = vmatprep.mubr.bf16.mxu0 %v2509
      %2947 = vmatmul.mubr.bf16.gmra.mrb[0].mxu0 %v2508
      %v2948 = vpop.f32.mrb[0].mxu0
      %v2949 = vadd.f32 %v2844, %v2948
      %v2950 = vpop.f32.mrb[0].mxu0
      %v2951 = vpop.f32.mrb[0].mxu0
      %v2952 = vadd.f32 %v2847, %v2951
      %v2953 = vpop.f32.mrb[0].mxu0
      %2954 = vmatprep.mubr.bf16.mxu0 %v2513
      %2955 = vmatmul.mubr.bf16.gmra.mrb[0].mxu0 %v2512
      %v2956 = vpop.f32.mrb[0].mxu0
      %v2957 = vadd.f32 %v2852, %v2956
      %v2958 = vpop.f32.mrb[0].mxu0
      %v2959 = vpop.f32.mrb[0].mxu0
      %v2960 = vadd.f32 %v2855, %v2959
      %v2961 = vpop.f32.mrb[0].mxu0
      %2962 = vmatprep.mubr.bf16.mxu0 %v2517
      %2963 = vmatmul.mubr.bf16.gmra.mrb[0].mxu0 %v2516
      %v2964 = vpop.f32.mrb[0].mxu0
      %v2965 = vadd.f32 %v2860, %v2964
      %v2966 = vpop.f32.mrb[0].mxu0
      %v2967 = vpop.f32.mrb[0].mxu0
      %v2968 = vadd.f32 %v2863, %v2967
      %v2969 = vpop.f32.mrb[0].mxu0
      %2970 = vmatprep.mubr.bf16.mxu0 %v2521
      %2971 = vmatmul.mubr.bf16.gmra.mrb[0].mxu0 %v2520
      %v2972 = vpop.f32.mrb[0].mxu0
      %v2973 = vadd.f32 %v2868, %v2972
      %v2974 = vpop.f32.mrb[0].mxu0
      %v2975 = vpop.f32.mrb[0].mxu0
      %v2976 = vadd.f32 %v2871, %v2975
      %v2977 = vpop.f32.mrb[0].mxu0
      %2978 = vmatprep.mubr.bf16.mxu0 %v2525
      %2979 = vmatmul.mubr.bf16.gmra.mrb[0].mxu0 %v2524
      %v2980 = vpop.f32.mrb[0].mxu0
      %v2981 = vadd.f32 %v2876, %v2980
      %v2982 = vpop.f32.mrb[0].mxu0
      %v2983 = vpop.f32.mrb[0].mxu0
      %v2984 = vadd.f32 %v2879, %v2983
      %v2985 = vpop.f32.mrb[0].mxu0
      %2986 = vmatprep.mubr.bf16.mxu0 %v2529
      %2987 = vmatmul.mubr.bf16.gmra.mrb[0].mxu0 %v2528
      %v2988 = vpop.f32.mrb[0].mxu0
      %v2989 = vadd.f32 %v2884, %v2988
      %v2990 = vpop.f32.mrb[0].mxu0
      %v2991 = vpop.f32.mrb[0].mxu0
      %v2992 = vadd.f32 %v2887, %v2991
      %v2993 = vpop.f32.mrb[0].mxu0
      %2994 = vmatprep.mubr.bf16.mxu0 %v2533
      %2995 = vmatmul.mubr.bf16.gmra.mrb[0].mxu0 %v2532
      %v2996 = vpop.f32.mrb[0].mxu0
      %v2997 = vadd.f32 %v2892, %v2996
      %v2998 = vpop.f32.mrb[0].mxu0
      %v2999 = vpop.f32.mrb[0].mxu0
      %v3000 = vadd.f32 %v2895, %v2999
      %v3001 = vpop.f32.mrb[0].mxu0
      %3002 = vmatprep.mubr.bf16.mxu0 %v2537
      %3003 = vmatmul.mubr.bf16.gmra.mrb[0].mxu0 %v2536
      %v3004 = vpop.f32.mrb[0].mxu0
      %v3005 = vadd.f32 %v2900, %v3004
      %v3006 = vpop.f32.mrb[0].mxu0
      %v3007 = vpop.f32.mrb[0].mxu0
      %v3008 = vadd.f32 %v2903, %v3007
      %v3009 = vpop.f32.mrb[0].mxu0
      %3010 = vdwg.mxu0
      %v3011 = vmax.f32 %v2941, 0.0
      %v3012 = vmax.f32 %v2944, 0.0
      %v3013 = vmax.f32 %v2949, 0.0
      %v3014 = vmax.f32 %v2952, 0.0
      %v3015 = vmax.f32 %v2957, 0.0
      %v3016 = vmax.f32 %v2960, 0.0
      %v3017 = vmax.f32 %v2965, 0.0
      %v3018 = vmax.f32 %v2968, 0.0
      %v3019 = vmax.f32 %v2973, 0.0
      %v3020 = vmax.f32 %v2976, 0.0
      %v3021 = vmax.f32 %v2981, 0.0
      %v3022 = vmax.f32 %v2984, 0.0
      %v3023 = vmax.f32 %v2989, 0.0
      %v3024 = vmax.f32 %v2992, 0.0
      %v3025 = vmax.f32 %v2997, 0.0
      %v3026 = vmax.f32 %v3000, 0.0
      %v3027 = vmax.f32 %v3005, 0.0
      %v3028 = vmax.f32 %v3008, 0.0
      %vm3029 = vcmask 523264
      %3030 = vst.msk [vmem:[#allocation4] sm:$0xff] %vm3029, %v3011
      %3031 = vst.msk [vmem:[#allocation4 + $0x8] sm:$0xff] %vm3029, %v3012
      %3032 = vst.msk [vmem:[#allocation4 + $0x10] sm:$0xff] %vm3029, %v3013
      %3033 = vst.msk [vmem:[#allocation4 + $0x18] sm:$0xff] %vm3029, %v3014
      %3034 = vst.msk [vmem:[#allocation4 + $0x20] sm:$0xff] %vm3029, %v3015
      %3035 = vst.msk [vmem:[#allocation4 + $0x28] sm:$0xff] %vm3029, %v3016
      %3036 = vst.msk [vmem:[#allocation4 + $0x30] sm:$0xff] %vm3029, %v3017
      %3037 = vst.msk [vmem:[#allocation4 + $0x38] sm:$0xff] %vm3029, %v3018
      %3038 = vst.msk [vmem:[#allocation4 + $0x40] sm:$0xff] %vm3029, %v3019
      %3039 = vst.msk [vmem:[#allocation4 + $0x48] sm:$0xff] %vm3029, %v3020
      %3040 = vst.msk [vmem:[#allocation4 + $0x50] sm:$0xff] %vm3029, %v3021
      %3041 = vst.msk [vmem:[#allocation4 + $0x58] sm:$0xff] %vm3029, %v3022
      %3042 = vst.msk [vmem:[#allocation4 + $0x60] sm:$0xff] %vm3029, %v3023
      %3043 = vst.msk [vmem:[#allocation4 + $0x68] sm:$0xff] %vm3029, %v3024
      %3044 = vst.msk [vmem:[#allocation4 + $0x70] sm:$0xff] %vm3029, %v3025
      %3045 = vst.msk [vmem:[#allocation4 + $0x78] sm:$0xff] %vm3029, %v3026
      %3046 = vst.msk [vmem:[#allocation4 + $0x80] sm:$0xff] %vm3029, %v3027
      %3047 = vst.msk [vmem:[#allocation4 + $0x88] sm:$0xff] %vm3029, %v3028
      %v3048 = vld [vmem:[#allocation4] sm:$0xff]
      %v3049 = vld [vmem:[#allocation4 + $0x8] sm:$0xff]
      %v3050 = vpack.c.bf16 %v3049, %v3048
      %3051 = vst.msk [vmem:[#allocation5] sm:$0xff] %vm3029, %v3050
      %v3052 = vld [vmem:[#allocation4 + $0x10] sm:$0xff]
      %v3053 = vld [vmem:[#allocation4 + $0x18] sm:$0xff]
      %v3054 = vpack.c.bf16 %v3053, %v3052
      %3056 = vrot.lane.b32.xlu0 %v3054, 64
      %v3057 = vpop.permute.xlu0 %3056
      %vm3059 = vcmask 1048064
      %3060 = vst.msk [vmem:[#allocation5] sm:$0xff] %vm3059, %v3057
      %v3061 = vld [vmem:[#allocation4 + $0x20] sm:$0xff]
      %v3062 = vld [vmem:[#allocation4 + $0x28] sm:$0xff]
      %v3063 = vpack.c.bf16 %v3062, %v3061
      %3064 = vst.msk [vmem:[#allocation5 + $0x8] sm:$0xff] %vm3029, %v3063
      %v3065 = vld [vmem:[#allocation4 + $0x30] sm:$0xff]
      %v3066 = vld [vmem:[#allocation4 + $0x38] sm:$0xff]
      %v3067 = vpack.c.bf16 %v3066, %v3065
      %3069 = vrot.lane.b32.xlu0 %v3067, 64
      %v3070 = vpop.permute.xlu0 %3069
      %3072 = vst.msk [vmem:[#allocation5 + $0x8] sm:$0xff] %vm3059, %v3070
      %v3073 = vld [vmem:[#allocation4 + $0x40] sm:$0xff]
      %v3074 = vld [vmem:[#allocation4 + $0x48] sm:$0xff]
      %v3075 = vpack.c.bf16 %v3074, %v3073
      %3076 = vst.msk [vmem:[#allocation5 + $0x10] sm:$0xff] %vm3029, %v3075
      %v3077 = vld [vmem:[#allocation4 + $0x50] sm:$0xff]
      %v3078 = vld [vmem:[#allocation4 + $0x58] sm:$0xff]
      %v3079 = vpack.c.bf16 %v3078, %v3077
      %3081 = vrot.lane.b32.xlu0 %v3079, 64
      %v3082 = vpop.permute.xlu0 %3081
      %3084 = vst.msk [vmem:[#allocation5 + $0x10] sm:$0xff] %vm3059, %v3082
      %v3085 = vld [vmem:[#allocation4 + $0x60] sm:$0xff]
      %v3086 = vld [vmem:[#allocation4 + $0x68] sm:$0xff]
      %v3087 = vpack.c.bf16 %v3086, %v3085
      %3088 = vst.msk [vmem:[#allocation5 + $0x18] sm:$0xff] %vm3029, %v3087
      %v3089 = vld [vmem:[#allocation4 + $0x70] sm:$0xff]
      %v3090 = vld [vmem:[#allocation4 + $0x78] sm:$0xff]
      %v3091 = vpack.c.bf16 %v3090, %v3089
      %3093 = vrot.lane.b32.xlu0 %v3091, 64
      %v3094 = vpop.permute.xlu0 %3093
      %3096 = vst.msk [vmem:[#allocation5 + $0x18] sm:$0xff] %vm3059, %v3094
      %v3097 = vld [vmem:[#allocation4 + $0x80] sm:$0xff]
      %v3098 = vld [vmem:[#allocation4 + $0x88] sm:$0xff]
      %v3099 = vpack.c.bf16 %v3098, %v3097
      %3100 = vst.msk [vmem:[#allocation5 + $0x20] sm:$0xff] %vm3029, %v3099
      %v3101 = vld [vmem:[#allocation5] sm:$0xff]
      %v3102 = vld [vmem:[#allocation5 + $0x8] sm:$0xff]
      %v3103 = vld [vmem:[#allocation5 + $0x10] sm:$0xff]
      %v3104 = vld [vmem:[#allocation5 + $0x18] sm:$0xff]
      %v3105 = vld [vmem:[#allocation5 + $0x20] sm:$0xff]
      %v3106 = vld [vmem:[%s5] sm:$0xf]
      %v3107 = vld [vmem:[%s5 + $0x4] sm:$0xf]
      %v3108 = vld [vmem:[%s5 + $0x8] sm:$0xf]
      %v3109 = vld [vmem:[%s5 + $0xc] sm:$0xf]
      %v3110 = vld [vmem:[%s5 + $0x10] sm:$0xf]
      %v3111 = vld [vmem:[%s5 + $0x14] sm:$0xf]
      %v3112 = vld [vmem:[%s5 + $0x18] sm:$0xf]
      %v3113 = vld [vmem:[%s5 + $0x1c] sm:$0xf]
      %v3114 = vld [vmem:[%s5 + $0x20] sm:$0xf]
      %v3115 = vld [vmem:[%s5 + $0x24] sm:$0xf]
      %v3116 = vld [vmem:[%s5 + $0x28] sm:$0xf]
      %v3117 = vld [vmem:[%s5 + $0x2c] sm:$0xf]
      %v3118 = vld [vmem:[%s5 + $0x30] sm:$0xf]
      %v3119 = vld [vmem:[%s5 + $0x34] sm:$0xf]
      %v3120 = vld [vmem:[%s5 + $0x38] sm:$0xf]
      %v3121 = vld [vmem:[%s5 + $0x3c] sm:$0xf]
      %v3122 = vld [vmem:[%s5 + $0x40] sm:$0xf]
      %v3123 = vld [vmem:[%s5 + $0x44] sm:$0xf]
      %v3124 = vld [vmem:[%s5 + $0x48] sm:$0xf]
      %v3125 = vld [vmem:[%s5 + $0x4c] sm:$0xf]
      %v3126 = vld [vmem:[%s5 + $0x50] sm:$0xf]
      %v3127 = vld [vmem:[%s5 + $0x54] sm:$0xf]
      %v3128 = vld [vmem:[%s5 + $0x58] sm:$0xf]
      %v3129 = vld [vmem:[%s5 + $0x5c] sm:$0xf]
      %v3130 = vld [vmem:[%s5 + $0x60] sm:$0xf]
      %v3131 = vld [vmem:[%s5 + $0x64] sm:$0xf]
      %v3132 = vld [vmem:[%s5 + $0x68] sm:$0xf]
      %v3133 = vld [vmem:[%s5 + $0x6c] sm:$0xf]
      %v3134 = vld [vmem:[%s5 + $0x70] sm:$0xf]
      %v3135 = vld [vmem:[%s5 + $0x74] sm:$0xf]
      %v3136 = vld [vmem:[%s5 + $0x78] sm:$0xf]
      %v3137 = vld [vmem:[%s5 + $0x7c] sm:$0xf]
      %v3138 = vld [vmem:[%s5 + $0x80] sm:$0xf]
      %v3139 = vld [vmem:[%s5 + $0x84] sm:$0xf]
      %v3140 = vld [vmem:[%s5 + $0x88] sm:$0xf]
      %v3141 = vld [vmem:[%s5 + $0x8c] sm:$0xf]
      %v3142 = vld [vmem:[%s5 + $0x90] sm:$0xf]
      %v3143 = vld [vmem:[%s5 + $0x94] sm:$0xf]
      %v3144 = vld [vmem:[%s5 + $0x98] sm:$0xf]
      %v3145 = vld [vmem:[%s5 + $0x9c] sm:$0xf]
      %v3146 = vld [vmem:[%s5 + $0xa0] sm:$0xf]
      %v3147 = vld [vmem:[%s5 + $0xa4] sm:$0xf]
      %v3148 = vld [vmem:[%s5 + $0xa8] sm:$0xf]
      %v3149 = vld [vmem:[%s5 + $0xac] sm:$0xf]
      %v3150 = vld [vmem:[%s5 + $0xb0] sm:$0xf]
      %v3151 = vld [vmem:[%s5 + $0xb4] sm:$0xf]
      %v3152 = vld [vmem:[%s5 + $0xb8] sm:$0xf]
      %v3153 = vld [vmem:[%s5 + $0xbc] sm:$0xf]
      %v3154 = vld [vmem:[%s5 + $0xc0] sm:$0xf]
      %v3155 = vld [vmem:[%s5 + $0xc4] sm:$0xf]
      %v3156 = vld [vmem:[%s5 + $0xc8] sm:$0xf]
      %v3157 = vld [vmem:[%s5 + $0xcc] sm:$0xf]
      %v3158 = vld [vmem:[%s5 + $0xd0] sm:$0xf]
      %v3159 = vld [vmem:[%s5 + $0xd4] sm:$0xf]
      %v3160 = vld [vmem:[%s5 + $0xd8] sm:$0xf]
      %v3161 = vld [vmem:[%s5 + $0xdc] sm:$0xf]
      %v3162 = vld [vmem:[%s5 + $0xe0] sm:$0xf]
      %v3163 = vld [vmem:[%s5 + $0xe4] sm:$0xf]
      %v3164 = vld [vmem:[%s5 + $0xe8] sm:$0xf]
      %v3165 = vld [vmem:[%s5 + $0xec] sm:$0xf]
      %v3166 = vld [vmem:[%s5 + $0xf0] sm:$0xf]
      %v3167 = vld [vmem:[%s5 + $0xf4] sm:$0xf]
      %v3168 = vld [vmem:[%s5 + $0xf8] sm:$0xf]
      %v3169 = vld [vmem:[%s5 + $0xfc] sm:$0xf]
      %v3170 = vld [vmem:[%s5 + $0x100] sm:$0xf]
      %v3171 = vld [vmem:[%s5 + $0x104] sm:$0xf]
      %v3172 = vld [vmem:[%s5 + $0x108] sm:$0xf]
      %v3173 = vld [vmem:[%s5 + $0x10c] sm:$0xf]
      %v3174 = vld [vmem:[%s5 + $0x110] sm:$0xf]
      %v3175 = vld [vmem:[%s5 + $0x114] sm:$0xf]
      %v3176 = vld [vmem:[%s5 + $0x118] sm:$0xf]
      %v3177 = vld [vmem:[%s5 + $0x11c] sm:$0xf]
      %v3178 = vld [vmem:[%s6] sm:$0x1]
      %v3180 = vlaneseq
      %v3181 = vshrl.u32 %v3180, 7
      %v3182 = vsub.s32 0, %v3181
      %v3183 = vrot.slane %v3178, %v3182
      %v3257 = vunpack.c.l.b16 %v3106
      %v3258 = vunpack.c.l.b16 %v3107
      %v3259 = vunpack.c.l.b16 %v3108
      %v3260 = vunpack.c.l.b16 %v3109
      %v3261 = vunpack.c.l.b16 %v3110
      %v3262 = vunpack.c.l.b16 %v3111
      %v3263 = vunpack.c.l.b16 %v3112
      %v3264 = vunpack.c.l.b16 %v3113
      %v3265 = vunpack.c.l.b16 %v3114
      %v3266 = vunpack.c.l.b16 %v3115
      %v3267 = vunpack.c.l.b16 %v3116
      %v3268 = vunpack.c.l.b16 %v3117
      %v3269 = vunpack.c.l.b16 %v3118
      %v3270 = vunpack.c.l.b16 %v3119
      %v3271 = vunpack.c.l.b16 %v3120
      %v3272 = vunpack.c.l.b16 %v3121
      %v3273 = vunpack.c.l.b16 %v3122
      %v3274 = vunpack.c.l.b16 %v3123
      %v3275 = vunpack.c.l.b16 %v3124
      %v3276 = vunpack.c.l.b16 %v3125
      %v3277 = vunpack.c.l.b16 %v3126
      %v3278 = vunpack.c.l.b16 %v3127
      %v3279 = vunpack.c.l.b16 %v3128
      %v3280 = vunpack.c.l.b16 %v3129
      %v3281 = vunpack.c.l.b16 %v3130
      %v3282 = vunpack.c.l.b16 %v3131
      %v3283 = vunpack.c.l.b16 %v3132
      %v3284 = vunpack.c.l.b16 %v3133
      %v3285 = vunpack.c.l.b16 %v3134
      %v3286 = vunpack.c.l.b16 %v3135
      %v3287 = vunpack.c.l.b16 %v3136
      %v3288 = vunpack.c.l.b16 %v3137
      %v3289 = vunpack.c.l.b16 %v3138
      %v3290 = vunpack.c.l.b16 %v3139
      %v3291 = vunpack.c.l.b16 %v3140
      %v3292 = vunpack.c.l.b16 %v3141
      %v3293 = vunpack.c.l.b16 %v3142
      %v3294 = vunpack.c.l.b16 %v3143
      %v3295 = vunpack.c.l.b16 %v3144
      %v3296 = vunpack.c.l.b16 %v3145
      %v3297 = vunpack.c.l.b16 %v3146
      %v3298 = vunpack.c.l.b16 %v3147
      %v3299 = vunpack.c.l.b16 %v3148
      %v3300 = vunpack.c.l.b16 %v3149
      %v3301 = vunpack.c.l.b16 %v3150
      %v3302 = vunpack.c.l.b16 %v3151
      %v3303 = vunpack.c.l.b16 %v3152
      %v3304 = vunpack.c.l.b16 %v3153
      %v3305 = vunpack.c.l.b16 %v3154
      %v3306 = vunpack.c.l.b16 %v3155
      %v3307 = vunpack.c.l.b16 %v3156
      %v3308 = vunpack.c.l.b16 %v3157
      %v3309 = vunpack.c.l.b16 %v3158
      %v3310 = vunpack.c.l.b16 %v3159
      %v3311 = vunpack.c.l.b16 %v3160
      %v3312 = vunpack.c.l.b16 %v3161
      %v3313 = vunpack.c.l.b16 %v3162
      %v3314 = vunpack.c.l.b16 %v3163
      %v3315 = vunpack.c.l.b16 %v3164
      %v3316 = vunpack.c.l.b16 %v3165
      %v3317 = vunpack.c.l.b16 %v3166
      %v3318 = vunpack.c.l.b16 %v3167
      %v3319 = vunpack.c.l.b16 %v3168
      %v3320 = vunpack.c.l.b16 %v3169
      %v3321 = vunpack.c.l.b16 %v3170
      %v3322 = vunpack.c.l.b16 %v3171
      %v3323 = vunpack.c.l.b16 %v3172
      %v3324 = vunpack.c.l.b16 %v3173
      %v3325 = vunpack.c.l.b16 %v3174
      %v3326 = vunpack.c.l.b16 %v3175
      %v3327 = vunpack.c.l.b16 %v3176
      %v3328 = vunpack.c.l.b16 %v3177
      %v3329 = vpack.c.b16 %v3258, %v3257
      %v3330 = vpack.c.b16 %v3260, %v3259
      %v3331 = vpack.c.b16 %v3262, %v3261
      %v3332 = vpack.c.b16 %v3264, %v3263
      %v3333 = vpack.c.b16 %v3266, %v3265
      %v3334 = vpack.c.b16 %v3268, %v3267
      %v3335 = vpack.c.b16 %v3270, %v3269
      %v3336 = vpack.c.b16 %v3272, %v3271
      %v3337 = vpack.c.b16 %v3274, %v3273
      %v3338 = vpack.c.b16 %v3276, %v3275
      %v3339 = vpack.c.b16 %v3278, %v3277
      %v3340 = vpack.c.b16 %v3280, %v3279
      %v3341 = vpack.c.b16 %v3282, %v3281
      %v3342 = vpack.c.b16 %v3284, %v3283
      %v3343 = vpack.c.b16 %v3286, %v3285
      %v3344 = vpack.c.b16 %v3288, %v3287
      %v3345 = vpack.c.b16 %v3290, %v3289
      %v3346 = vpack.c.b16 %v3292, %v3291
      %v3347 = vpack.c.b16 %v3294, %v3293
      %v3348 = vpack.c.b16 %v3296, %v3295
      %v3349 = vpack.c.b16 %v3298, %v3297
      %v3350 = vpack.c.b16 %v3300, %v3299
      %v3351 = vpack.c.b16 %v3302, %v3301
      %v3352 = vpack.c.b16 %v3304, %v3303
      %v3353 = vpack.c.b16 %v3306, %v3305
      %v3354 = vpack.c.b16 %v3308, %v3307
      %v3355 = vpack.c.b16 %v3310, %v3309
      %v3356 = vpack.c.b16 %v3312, %v3311
      %v3357 = vpack.c.b16 %v3314, %v3313
      %v3358 = vpack.c.b16 %v3316, %v3315
      %v3359 = vpack.c.b16 %v3318, %v3317
      %v3360 = vpack.c.b16 %v3320, %v3319
      %v3361 = vpack.c.b16 %v3322, %v3321
      %v3362 = vpack.c.b16 %v3324, %v3323
      %v3363 = vpack.c.b16 %v3326, %v3325
      %v3364 = vpack.c.b16 %v3328, %v3327
      %v3402 = vsel %vm3029, %v3105, 0
      %3404 = vmatprep.subr.bf16.mxu0 0
      %3405 = vmatpush1.bf16.msra.mxu0 %v3329
      %3406 = vmatprep.subr.bf16.mxu0 0
      %3407 = vmatpush1.bf16.msra.mxu0 %v3330
      %3408 = vmatprep.subr.bf16.mxu0 0
      %3409 = vmatpush1.bf16.msra.mxu0 %v3331
      %3410 = vmatprep.subr.bf16.mxu0 0
      %3411 = vmatpush1.bf16.msra.mxu0 %v3332
      %3412 = vmatprep.subr.bf16.mxu0 0
      %3413 = vmatpush1.bf16.msra.mxu0 %v3333
      %3414 = vmatprep.subr.bf16.mxu0 0
      %3415 = vmatpush1.bf16.msra.mxu0 %v3334
      %3416 = vmatprep.subr.bf16.mxu0 0
      %3417 = vmatpush1.bf16.msra.mxu0 %v3335
      %3418 = vmatprep.subr.bf16.mxu0 0
      %3419 = vmatpush1.bf16.msra.mxu0 %v3336
      %3420 = vmatprep.subr.bf16.mxu0 0
      %3421 = vmatpush1.bf16.msra.mxu0 %v3337
      %3422 = vmatprep.subr.bf16.mxu0 0
      %3423 = vmatpush1.bf16.msra.mxu0 %v3338
      %3424 = vmatprep.subr.bf16.mxu0 0
      %3425 = vmatpush1.bf16.msra.mxu0 %v3339
      %3426 = vmatprep.subr.bf16.mxu0 0
      %3427 = vmatpush1.bf16.msra.mxu0 %v3340
      %3428 = vmatprep.subr.bf16.mxu0 0
      %3429 = vmatpush1.bf16.msra.mxu0 %v3341
      %3430 = vmatprep.subr.bf16.mxu0 0
      %3431 = vmatpush1.bf16.msra.mxu0 %v3342
      %3432 = vmatprep.subr.bf16.mxu0 0
      %3433 = vmatpush1.bf16.msra.mxu0 %v3343
      %3434 = vmatprep.subr.bf16.mxu0 0
      %3435 = vmatpush1.bf16.msra.mxu0 %v3344
      %3436 = vmatprep.mubr.bf16.mxu0 %v3102
      %3437 = vmatmul.mubr.bf16.gmra.mrb[0].mxu0 %v3101
      %v3438 = vpop.f32.mrb[0].mxu0
      %v3439 = vadd.f32 %v3183, %v3438
      %v3440 = vpop.f32.mrb[0].mxu0
      %v3441 = vpop.f32.mrb[0].mxu0
      %v3442 = vadd.f32 %v3183, %v3441
      %v3443 = vpop.f32.mrb[0].mxu0
      %3444 = vdwg.mxu0
      %3445 = vmatprep.subr.bf16.mxu0 0
      %3446 = vmatpush1.bf16.msra.mxu0 %v3345
      %3447 = vmatprep.subr.bf16.mxu0 0
      %3448 = vmatpush1.bf16.msra.mxu0 %v3346
      %3449 = vmatprep.subr.bf16.mxu0 0
      %3450 = vmatpush1.bf16.msra.mxu0 %v3347
      %3451 = vmatprep.subr.bf16.mxu0 0
      %3452 = vmatpush1.bf16.msra.mxu0 %v3348
      %3453 = vmatprep.subr.bf16.mxu0 0
      %3454 = vmatpush1.bf16.msra.mxu0 %v3349
      %3455 = vmatprep.subr.bf16.mxu0 0
      %3456 = vmatpush1.bf16.msra.mxu0 %v3350
      %3457 = vmatprep.subr.bf16.mxu0 0
      %3458 = vmatpush1.bf16.msra.mxu0 %v3351
      %3459 = vmatprep.subr.bf16.mxu0 0
      %3460 = vmatpush1.bf16.msra.mxu0 %v3352
      %3461 = vmatprep.subr.bf16.mxu0 0
      %3462 = vmatpush1.bf16.msra.mxu0 %v3353
      %3463 = vmatprep.subr.bf16.mxu0 0
      %3464 = vmatpush1.bf16.msra.mxu0 %v3354
      %3465 = vmatprep.subr.bf16.mxu0 0
      %3466 = vmatpush1.bf16.msra.mxu0 %v3355
      %3467 = vmatprep.subr.bf16.mxu0 0
      %3468 = vmatpush1.bf16.msra.mxu0 %v3356
      %3469 = vmatprep.subr.bf16.mxu0 0
      %3470 = vmatpush1.bf16.msra.mxu0 %v3357
      %3471 = vmatprep.subr.bf16.mxu0 0
      %3472 = vmatpush1.bf16.msra.mxu0 %v3358
      %3473 = vmatprep.subr.bf16.mxu0 0
      %3474 = vmatpush1.bf16.msra.mxu0 %v3359
      %3475 = vmatprep.subr.bf16.mxu0 0
      %3476 = vmatpush1.bf16.msra.mxu0 %v3360
      %3477 = vmatprep.mubr.bf16.mxu0 %v3104
      %3478 = vmatmul.mubr.bf16.gmra.mrb[0].mxu0 %v3103
      %v3479 = vpop.f32.mrb[0].mxu0
      %v3480 = vadd.f32 %v3439, %v3479
      %v3481 = vpop.f32.mrb[0].mxu0
      %v3482 = vpop.f32.mrb[0].mxu0
      %v3483 = vadd.f32 %v3442, %v3482
      %v3484 = vpop.f32.mrb[0].mxu0
      %3485 = vdwg.mxu0
      %3486 = vmatprep.subr.bf16.mxu0 0
      %3487 = vmatpush1.bf16.msra.mxu0 %v3361
      %3488 = vmatprep.subr.bf16.mxu0 0
      %3489 = vmatpush1.bf16.msra.mxu0 %v3362
      %3490 = vmatprep.subr.bf16.mxu0 0
      %3491 = vmatpush1.bf16.msra.mxu0 %v3363
      %3492 = vmatprep.subr.bf16.mxu0 0
      %3493 = vmatpush1.bf16.msra.mxu0 %v3364
      %3494 = vmatprep.subr.bf16.mxu0 0
      %3495 = vmatpush1.bf16.msra.mxu0 0
      %3496 = vmatprep.subr.bf16.mxu0 0
      %3497 = vmatpush1.bf16.msra.mxu0 0
      %3498 = vmatprep.subr.bf16.mxu0 0
      %3499 = vmatpush1.bf16.msra.mxu0 0
      %3500 = vmatprep.subr.bf16.mxu0 0
      %3501 = vmatpush1.bf16.msra.mxu0 0
      %3502 = vmatprep.subr.bf16.mxu0 0
      %3503 = vmatpush1.bf16.msra.mxu0 0
      %3504 = vmatprep.subr.bf16.mxu0 0
      %3505 = vmatpush1.bf16.msra.mxu0 0
      %3506 = vmatprep.subr.bf16.mxu0 0
      %3507 = vmatpush1.bf16.msra.mxu0 0
      %3508 = vmatprep.subr.bf16.mxu0 0
      %3509 = vmatpush1.bf16.msra.mxu0 0
      %3510 = vmatprep.subr.bf16.mxu0 0
      %3511 = vmatpush1.bf16.msra.mxu0 0
      %3512 = vmatprep.subr.bf16.mxu0 0
      %3513 = vmatpush1.bf16.msra.mxu0 0
      %3514 = vmatprep.subr.bf16.mxu0 0
      %3515 = vmatpush1.bf16.msra.mxu0 0
      %3516 = vmatprep.subr.bf16.mxu0 0
      %3517 = vmatpush1.bf16.msra.mxu0 0
      %3518 = vmatprep.mubr.bf16.mxu0 0
      %3519 = vmatmul.mubr.bf16.gmra.mrb[0].mxu0 %v3402
      %v3520 = vpop.f32.mrb[0].mxu0
      %v3521 = vadd.f32 %v3480, %v3520
      %v3522 = vpop.f32.mrb[0].mxu0
      %v3523 = vpop.f32.mrb[0].mxu0
      %v3524 = vadd.f32 %v3483, %v3523
      %v3525 = vpop.f32.mrb[0].mxu0
      %3526 = vdwg.mxu0
      %v3527 = vmax.f32 %v3521, 0.0
      %v3528 = vmax.f32 %v3524, 0.0
      %3529 = vst.msk [vmem:[#allocation6] sm:$0xff] %vm3029, %v3527
      %3530 = vst.msk [vmem:[#allocation6 + $0x8] sm:$0xff] %vm3029, %v3528
      %v3531 = vld [vmem:[#allocation6] sm:$0xff]
      %v3532 = vld [vmem:[#allocation6 + $0x8] sm:$0xff]
      %v3533 = vpack.c.bf16 %v3532, %v3531
      %3534 = vst.msk [vmem:[#allocation7] sm:$0xff] %vm3029, %v3533
      %v3535 = vld [vmem:[#allocation7] sm:$0xff]
      %v3536 = vld [vmem:[%s7] sm:$0xff]
      %v3537 = vld [vmem:[%s7 + $0x8] sm:$0xff]
      %v3538 = vld [vmem:[%s7 + $0x10] sm:$0xff]
      %v3539 = vld [vmem:[%s7 + $0x18] sm:$0xff]
      %v3540 = vld [vmem:[%s7 + $0x20] sm:$0xff]
      %v3541 = vld [vmem:[%s7 + $0x28] sm:$0xff]
      %v3542 = vld [vmem:[%s7 + $0x30] sm:$0xff]
      %v3543 = vld [vmem:[%s7 + $0x38] sm:$0xff]
      %v3544 = vld [vmem:[%s7 + $0x40] sm:$0xff]
      %v3545 = vld [vmem:[%s7 + $0x48] sm:$0xff]
      %v3546 = vld [vmem:[%s7 + $0x50] sm:$0xff]
      %v3547 = vld [vmem:[%s7 + $0x58] sm:$0xff]
      %v3548 = vld [vmem:[%s7 + $0x60] sm:$0xff]
      %v3549 = vld [vmem:[%s7 + $0x68] sm:$0xff]
      %v3550 = vld [vmem:[%s7 + $0x70] sm:$0xff]
      %v3551 = vld [vmem:[%s7 + $0x78] sm:$0xff]
      %v3552 = vld [vmem:[%s7 + $0x80] sm:$0xff]
      %v3553 = vld [vmem:[%s7 + $0x88] sm:$0xff]
      %v3554 = vld [vmem:[%s7 + $0x90] sm:$0xff]
      %v3555 = vld [vmem:[%s7 + $0x98] sm:$0xff]
      %v3556 = vld [vmem:[%s7 + $0xa0] sm:$0xff]
      %v3557 = vld [vmem:[%s7 + $0xa8] sm:$0xff]
      %v3558 = vld [vmem:[%s7 + $0xb0] sm:$0xff]
      %v3559 = vld [vmem:[%s7 + $0xb8] sm:$0xff]
      %v3560 = vld [vmem:[%s7 + $0xc0] sm:$0xff]
      %v3561 = vld [vmem:[%s7 + $0xc8] sm:$0xff]
      %v3562 = vld [vmem:[%s7 + $0xd0] sm:$0xff]
      %v3563 = vld [vmem:[%s7 + $0xd8] sm:$0xff]
      %v3564 = vld [vmem:[%s7 + $0xe0] sm:$0xff]
      %v3565 = vld [vmem:[%s7 + $0xe8] sm:$0xff]
      %v3566 = vld [vmem:[%s7 + $0xf0] sm:$0xff]
      %v3567 = vld [vmem:[%s7 + $0xf8] sm:$0xff]
      %v3568 = vld [vmem:[%s8] sm:$0xff]
      %v3570 = vlaneseq
      %v3571 = vshrl.u32 %v3570, 7
      %v3572 = vsub.s32 0, %v3571
      %v3573 = vrot.slane %v3568, %v3572
      %v3574 = vlaneseq
      %v3575 = vshrl.u32 %v3574, 7
      %v3576 = vsub.s32 1, %v3575
      %v3577 = vrot.slane %v3568, %v3576
      %v3578 = vlaneseq
      %v3579 = vshrl.u32 %v3578, 7
      %v3580 = vsub.s32 2, %v3579
      %v3581 = vrot.slane %v3568, %v3580
      %v3582 = vlaneseq
      %v3583 = vshrl.u32 %v3582, 7
      %v3584 = vsub.s32 3, %v3583
      %v3585 = vrot.slane %v3568, %v3584
      %v3586 = vlaneseq
      %v3587 = vshrl.u32 %v3586, 7
      %v3588 = vsub.s32 4, %v3587
      %v3589 = vrot.slane %v3568, %v3588
      %v3590 = vlaneseq
      %v3591 = vshrl.u32 %v3590, 7
      %v3592 = vsub.s32 5, %v3591
      %v3593 = vrot.slane %v3568, %v3592
      %v3594 = vlaneseq
      %v3595 = vshrl.u32 %v3594, 7
      %v3596 = vsub.s32 6, %v3595
      %v3597 = vrot.slane %v3568, %v3596
      %v3598 = vlaneseq
      %v3599 = vshrl.u32 %v3598, 7
      %v3600 = vsub.s32 7, %v3599
      %v3601 = vrot.slane %v3568, %v3600
      %v3642 = vunpack.c.l.b16 %v3536
      %v3643 = vunpack.c.h.b16 %v3536
      %v3644 = vunpack.c.l.b16 %v3537
      %v3645 = vunpack.c.h.b16 %v3537
      %v3646 = vunpack.c.l.b16 %v3538
      %v3647 = vunpack.c.h.b16 %v3538
      %v3648 = vunpack.c.l.b16 %v3539
      %v3649 = vunpack.c.h.b16 %v3539
      %v3650 = vunpack.c.l.b16 %v3540
      %v3651 = vunpack.c.h.b16 %v3540
      %v3652 = vunpack.c.l.b16 %v3541
      %v3653 = vunpack.c.h.b16 %v3541
      %v3654 = vunpack.c.l.b16 %v3542
      %v3655 = vunpack.c.h.b16 %v3542
      %v3656 = vunpack.c.l.b16 %v3543
      %v3657 = vunpack.c.h.b16 %v3543
      %v3658 = vunpack.c.l.b16 %v3544
      %v3659 = vunpack.c.h.b16 %v3544
      %v3660 = vunpack.c.l.b16 %v3545
      %v3661 = vunpack.c.h.b16 %v3545
      %v3662 = vunpack.c.l.b16 %v3546
      %v3663 = vunpack.c.h.b16 %v3546
      %v3664 = vunpack.c.l.b16 %v3547
      %v3665 = vunpack.c.h.b16 %v3547
      %v3666 = vunpack.c.l.b16 %v3548
      %v3667 = vunpack.c.h.b16 %v3548
      %v3668 = vunpack.c.l.b16 %v3549
      %v3669 = vunpack.c.h.b16 %v3549
      %v3670 = vunpack.c.l.b16 %v3550
      %v3671 = vunpack.c.h.b16 %v3550
      %v3672 = vunpack.c.l.b16 %v3551
      %v3673 = vunpack.c.h.b16 %v3551
      %v3674 = vunpack.c.l.b16 %v3552
      %v3675 = vunpack.c.h.b16 %v3552
      %v3676 = vunpack.c.l.b16 %v3553
      %v3677 = vunpack.c.h.b16 %v3553
      %v3678 = vunpack.c.l.b16 %v3554
      %v3679 = vunpack.c.h.b16 %v3554
      %v3680 = vunpack.c.l.b16 %v3555
      %v3681 = vunpack.c.h.b16 %v3555
      %v3682 = vunpack.c.l.b16 %v3556
      %v3683 = vunpack.c.h.b16 %v3556
      %v3684 = vunpack.c.l.b16 %v3557
      %v3685 = vunpack.c.h.b16 %v3557
      %v3686 = vunpack.c.l.b16 %v3558
      %v3687 = vunpack.c.h.b16 %v3558
      %v3688 = vunpack.c.l.b16 %v3559
      %v3689 = vunpack.c.h.b16 %v3559
      %v3690 = vunpack.c.l.b16 %v3560
      %v3691 = vunpack.c.h.b16 %v3560
      %v3692 = vunpack.c.l.b16 %v3561
      %v3693 = vunpack.c.h.b16 %v3561
      %v3694 = vunpack.c.l.b16 %v3562
      %v3695 = vunpack.c.h.b16 %v3562
      %v3696 = vunpack.c.l.b16 %v3563
      %v3697 = vunpack.c.h.b16 %v3563
      %v3698 = vunpack.c.l.b16 %v3564
      %v3699 = vunpack.c.h.b16 %v3564
      %v3700 = vunpack.c.l.b16 %v3565
      %v3701 = vunpack.c.h.b16 %v3565
      %v3702 = vunpack.c.l.b16 %v3566
      %v3703 = vunpack.c.h.b16 %v3566
      %v3704 = vunpack.c.l.b16 %v3567
      %v3705 = vunpack.c.h.b16 %v3567
      %v3706 = vpack.c.b16 %v3650, %v3642
      %v3707 = vpack.c.b16 %v3651, %v3643
      %v3708 = vpack.c.b16 %v3652, %v3644
      %v3709 = vpack.c.b16 %v3653, %v3645
      %v3710 = vpack.c.b16 %v3654, %v3646
      %v3711 = vpack.c.b16 %v3655, %v3647
      %v3712 = vpack.c.b16 %v3656, %v3648
      %v3713 = vpack.c.b16 %v3657, %v3649
      %v3714 = vpack.c.b16 %v3666, %v3658
      %v3715 = vpack.c.b16 %v3667, %v3659
      %v3716 = vpack.c.b16 %v3668, %v3660
      %v3717 = vpack.c.b16 %v3669, %v3661
      %v3718 = vpack.c.b16 %v3670, %v3662
      %v3719 = vpack.c.b16 %v3671, %v3663
      %v3720 = vpack.c.b16 %v3672, %v3664
      %v3721 = vpack.c.b16 %v3673, %v3665
      %v3722 = vpack.c.b16 %v3682, %v3674
      %v3723 = vpack.c.b16 %v3683, %v3675
      %v3724 = vpack.c.b16 %v3684, %v3676
      %v3725 = vpack.c.b16 %v3685, %v3677
      %v3726 = vpack.c.b16 %v3686, %v3678
      %v3727 = vpack.c.b16 %v3687, %v3679
      %v3728 = vpack.c.b16 %v3688, %v3680
      %v3729 = vpack.c.b16 %v3689, %v3681
      %v3730 = vpack.c.b16 %v3698, %v3690
      %v3731 = vpack.c.b16 %v3699, %v3691
      %v3732 = vpack.c.b16 %v3700, %v3692
      %v3733 = vpack.c.b16 %v3701, %v3693
      %v3734 = vpack.c.b16 %v3702, %v3694
      %v3735 = vpack.c.b16 %v3703, %v3695
      %v3736 = vpack.c.b16 %v3704, %v3696
      %v3737 = vpack.c.b16 %v3705, %v3697
      %v3771 = vsel %vm3029, %v3535, 0
      %3773 = vmatprep.subr.bf16.mxu0 %v3707
      %3774 = vmatpush1.bf16.msra.mxu0 %v3706
      %3775 = vmatprep.subr.bf16.mxu0 %v3715
      %3776 = vmatpush1.bf16.msra.mxu0 %v3714
      %3777 = vmatprep.subr.bf16.mxu0 %v3723
      %3778 = vmatpush1.bf16.msra.mxu0 %v3722
      %3779 = vmatprep.subr.bf16.mxu0 %v3731
      %3780 = vmatpush1.bf16.msra.mxu0 %v3730
      %3781 = vmatprep.subr.bf16.mxu0 0
      %3782 = vmatpush1.bf16.msra.mxu0 0
      %3783 = vmatprep.subr.bf16.mxu0 0
      %3784 = vmatpush1.bf16.msra.mxu0 0
      %3785 = vmatprep.subr.bf16.mxu0 0
      %3786 = vmatpush1.bf16.msra.mxu0 0
      %3787 = vmatprep.subr.bf16.mxu0 0
      %3788 = vmatpush1.bf16.msra.mxu0 0
      %3789 = vmatprep.subr.bf16.mxu0 0
      %3790 = vmatpush1.bf16.msra.mxu0 0
      %3791 = vmatprep.subr.bf16.mxu0 0
      %3792 = vmatpush1.bf16.msra.mxu0 0
      %3793 = vmatprep.subr.bf16.mxu0 0
      %3794 = vmatpush1.bf16.msra.mxu0 0
      %3795 = vmatprep.subr.bf16.mxu0 0
      %3796 = vmatpush1.bf16.msra.mxu0 0
      %3797 = vmatprep.subr.bf16.mxu0 0
      %3798 = vmatpush1.bf16.msra.mxu0 0
      %3799 = vmatprep.subr.bf16.mxu0 0
      %3800 = vmatpush1.bf16.msra.mxu0 0
      %3801 = vmatprep.subr.bf16.mxu0 0
      %3802 = vmatpush1.bf16.msra.mxu0 0
      %3803 = vmatprep.subr.bf16.mxu0 0
      %3804 = vmatpush1.bf16.msra.mxu0 0
      %3805 = vmatprep.mubr.bf16.mxu0 0
      %3806 = vmatmul.mubr.bf16.gmra.mrb[0].mxu0 %v3771
      %v3807 = vpop.f32.mrb[0].mxu0
      %v3808 = vadd.f32 %v3573, %v3807
      %v3809 = vpop.f32.mrb[0].mxu0
      %v3810 = vadd.f32 %v3577, %v3809
      %v3811 = vpop.f32.mrb[0].mxu0
      %v3812 = vadd.f32 %v3573, %v3811
      %v3813 = vpop.f32.mrb[0].mxu0
      %v3814 = vadd.f32 %v3577, %v3813
      %3815 = vdwg.mxu0
      %3816 = vmatprep.subr.bf16.mxu0 %v3709
      %3817 = vmatpush1.bf16.msra.mxu0 %v3708
      %3818 = vmatprep.subr.bf16.mxu0 %v3717
      %3819 = vmatpush1.bf16.msra.mxu0 %v3716
      %3820 = vmatprep.subr.bf16.mxu0 %v3725
      %3821 = vmatpush1.bf16.msra.mxu0 %v3724
      %3822 = vmatprep.subr.bf16.mxu0 %v3733
      %3823 = vmatpush1.bf16.msra.mxu0 %v3732
      %3824 = vmatprep.subr.bf16.mxu0 0
      %3825 = vmatpush1.bf16.msra.mxu0 0
      %3826 = vmatprep.subr.bf16.mxu0 0
      %3827 = vmatpush1.bf16.msra.mxu0 0
      %3828 = vmatprep.subr.bf16.mxu0 0
      %3829 = vmatpush1.bf16.msra.mxu0 0
      %3830 = vmatprep.subr.bf16.mxu0 0
      %3831 = vmatpush1.bf16.msra.mxu0 0
      %3832 = vmatprep.subr.bf16.mxu0 0
      %3833 = vmatpush1.bf16.msra.mxu0 0
      %3834 = vmatprep.subr.bf16.mxu0 0
      %3835 = vmatpush1.bf16.msra.mxu0 0
      %3836 = vmatprep.subr.bf16.mxu0 0
      %3837 = vmatpush1.bf16.msra.mxu0 0
      %3838 = vmatprep.subr.bf16.mxu0 0
      %3839 = vmatpush1.bf16.msra.mxu0 0
      %3840 = vmatprep.subr.bf16.mxu0 0
      %3841 = vmatpush1.bf16.msra.mxu0 0
      %3842 = vmatprep.subr.bf16.mxu0 0
      %3843 = vmatpush1.bf16.msra.mxu0 0
      %3844 = vmatprep.subr.bf16.mxu0 0
      %3845 = vmatpush1.bf16.msra.mxu0 0
      %3846 = vmatprep.subr.bf16.mxu0 0
      %3847 = vmatpush1.bf16.msra.mxu0 0
      %3848 = vmatprep.mubr.bf16.mxu0 0
      %3849 = vmatmul.mubr.bf16.gmra.mrb[0].mxu0 %v3771
      %v3850 = vpop.f32.mrb[0].mxu0
      %v3851 = vadd.f32 %v3581, %v3850
      %v3852 = vpop.f32.mrb[0].mxu0
      %v3853 = vadd.f32 %v3585, %v3852
      %v3854 = vpop.f32.mrb[0].mxu0
      %v3855 = vadd.f32 %v3581, %v3854
      %v3856 = vpop.f32.mrb[0].mxu0
      %v3857 = vadd.f32 %v3585, %v3856
      %3858 = vdwg.mxu0
      %3859 = vmatprep.subr.bf16.mxu0 %v3711
      %3860 = vmatpush1.bf16.msra.mxu0 %v3710
      %3861 = vmatprep.subr.bf16.mxu0 %v3719
      %3862 = vmatpush1.bf16.msra.mxu0 %v3718
      %3863 = vmatprep.subr.bf16.mxu0 %v3727
      %3864 = vmatpush1.bf16.msra.mxu0 %v3726
      %3865 = vmatprep.subr.bf16.mxu0 %v3735
      %3866 = vmatpush1.bf16.msra.mxu0 %v3734
      %3867 = vmatprep.subr.bf16.mxu0 0
      %3868 = vmatpush1.bf16.msra.mxu0 0
      %3869 = vmatprep.subr.bf16.mxu0 0
      %3870 = vmatpush1.bf16.msra.mxu0 0
      %3871 = vmatprep.subr.bf16.mxu0 0
      %3872 = vmatpush1.bf16.msra.mxu0 0
      %3873 = vmatprep.subr.bf16.mxu0 0
      %3874 = vmatpush1.bf16.msra.mxu0 0
      %3875 = vmatprep.subr.bf16.mxu0 0
      %3876 = vmatpush1.bf16.msra.mxu0 0
      %3877 = vmatprep.subr.bf16.mxu0 0
      %3878 = vmatpush1.bf16.msra.mxu0 0
      %3879 = vmatprep.subr.bf16.mxu0 0
      %3880 = vmatpush1.bf16.msra.mxu0 0
      %3881 = vmatprep.subr.bf16.mxu0 0
      %3882 = vmatpush1.bf16.msra.mxu0 0
      %3883 = vmatprep.subr.bf16.mxu0 0
      %3884 = vmatpush1.bf16.msra.mxu0 0
      %3885 = vmatprep.subr.bf16.mxu0 0
      %3886 = vmatpush1.bf16.msra.mxu0 0
      %3887 = vmatprep.subr.bf16.mxu0 0
      %3888 = vmatpush1.bf16.msra.mxu0 0
      %3889 = vmatprep.subr.bf16.mxu0 0
      %3890 = vmatpush1.bf16.msra.mxu0 0
      %3891 = vmatprep.mubr.bf16.mxu0 0
      %3892 = vmatmul.mubr.bf16.gmra.mrb[0].mxu0 %v3771
      %v3893 = vpop.f32.mrb[0].mxu0
      %v3894 = vadd.f32 %v3589, %v3893
      %v3895 = vpop.f32.mrb[0].mxu0
      %v3896 = vadd.f32 %v3593, %v3895
      %v3897 = vpop.f32.mrb[0].mxu0
      %v3898 = vadd.f32 %v3589, %v3897
      %v3899 = vpop.f32.mrb[0].mxu0
      %v3900 = vadd.f32 %v3593, %v3899
      %3901 = vdwg.mxu0
      %3902 = vmatprep.subr.bf16.mxu0 %v3713
      %3903 = vmatpush1.bf16.msra.mxu0 %v3712
      %3904 = vmatprep.subr.bf16.mxu0 %v3721
      %3905 = vmatpush1.bf16.msra.mxu0 %v3720
      %3906 = vmatprep.subr.bf16.mxu0 %v3729
      %3907 = vmatpush1.bf16.msra.mxu0 %v3728
      %3908 = vmatprep.subr.bf16.mxu0 %v3737
      %3909 = vmatpush1.bf16.msra.mxu0 %v3736
      %3910 = vmatprep.subr.bf16.mxu0 0
      %3911 = vmatpush1.bf16.msra.mxu0 0
      %3912 = vmatprep.subr.bf16.mxu0 0
      %3913 = vmatpush1.bf16.msra.mxu0 0
      %3914 = vmatprep.subr.bf16.mxu0 0
      %3915 = vmatpush1.bf16.msra.mxu0 0
      %3916 = vmatprep.subr.bf16.mxu0 0
      %3917 = vmatpush1.bf16.msra.mxu0 0
      %3918 = vmatprep.subr.bf16.mxu0 0
      %3919 = vmatpush1.bf16.msra.mxu0 0
      %3920 = vmatprep.subr.bf16.mxu0 0
      %3921 = vmatpush1.bf16.msra.mxu0 0
      %3922 = vmatprep.subr.bf16.mxu0 0
      %3923 = vmatpush1.bf16.msra.mxu0 0
      %3924 = vmatprep.subr.bf16.mxu0 0
      %3925 = vmatpush1.bf16.msra.mxu0 0
      %3926 = vmatprep.subr.bf16.mxu0 0
      %3927 = vmatpush1.bf16.msra.mxu0 0
      %3928 = vmatprep.subr.bf16.mxu0 0
      %3929 = vmatpush1.bf16.msra.mxu0 0
      %3930 = vmatprep.subr.bf16.mxu0 0
      %3931 = vmatpush1.bf16.msra.mxu0 0
      %3932 = vmatprep.subr.bf16.mxu0 0
      %3933 = vmatpush1.bf16.msra.mxu0 0
      %3934 = vmatprep.mubr.bf16.mxu0 0
      %3935 = vmatmul.mubr.bf16.gmra.mrb[0].mxu0 %v3771
      %v3936 = vpop.f32.mrb[0].mxu0
      %v3937 = vadd.f32 %v3597, %v3936
      %v3938 = vpop.f32.mrb[0].mxu0
      %v3939 = vadd.f32 %v3601, %v3938
      %v3940 = vpop.f32.mrb[0].mxu0
      %v3941 = vadd.f32 %v3597, %v3940
      %v3942 = vpop.f32.mrb[0].mxu0
      %v3943 = vadd.f32 %v3601, %v3942
      %3944 = vdwg.mxu0
      %v3945 = vmax.f32 %v3808, 0.0
      %v3946 = vmax.f32 %v3810, 0.0
      %v3947 = vmax.f32 %v3851, 0.0
      %v3948 = vmax.f32 %v3853, 0.0
      %v3949 = vmax.f32 %v3894, 0.0
      %v3950 = vmax.f32 %v3896, 0.0
      %v3951 = vmax.f32 %v3937, 0.0
      %v3952 = vmax.f32 %v3939, 0.0
      %v3953 = vmax.f32 %v3812, 0.0
      %v3954 = vmax.f32 %v3814, 0.0
      %v3955 = vmax.f32 %v3855, 0.0
      %v3956 = vmax.f32 %v3857, 0.0
      %v3957 = vmax.f32 %v3898, 0.0
      %v3958 = vmax.f32 %v3900, 0.0
      %v3959 = vmax.f32 %v3941, 0.0
      %v3960 = vmax.f32 %v3943, 0.0
      %v3961 = vpack.c.bf16 %v3953, %v3945
      %v3962 = vpack.c.bf16 %v3954, %v3946
      %v3963 = vpack.c.bf16 %v3955, %v3947
      %v3964 = vpack.c.bf16 %v3956, %v3948
      %v3965 = vpack.c.bf16 %v3957, %v3949
      %v3966 = vpack.c.bf16 %v3958, %v3950
      %v3967 = vpack.c.bf16 %v3959, %v3951
      %v3968 = vpack.c.bf16 %v3960, %v3952
      %v3969 = vld [vmem:[%s9] sm:$0xf]
      %v3970 = vld [vmem:[%s9 + $0x4] sm:$0xf]
      %v3971 = vld [vmem:[%s9 + $0x8] sm:$0xf]
      %v3972 = vld [vmem:[%s9 + $0xc] sm:$0xf]
      %v3973 = vld [vmem:[%s9 + $0x10] sm:$0xf]
      %v3974 = vld [vmem:[%s9 + $0x14] sm:$0xf]
      %v3975 = vld [vmem:[%s9 + $0x18] sm:$0xf]
      %v3976 = vld [vmem:[%s9 + $0x1c] sm:$0xf]
      %v3977 = vld [vmem:[%s9 + $0x20] sm:$0xf]
      %v3978 = vld [vmem:[%s9 + $0x24] sm:$0xf]
      %v3979 = vld [vmem:[%s9 + $0x28] sm:$0xf]
      %v3980 = vld [vmem:[%s9 + $0x2c] sm:$0xf]
      %v3981 = vld [vmem:[%s9 + $0x30] sm:$0xf]
      %v3982 = vld [vmem:[%s9 + $0x34] sm:$0xf]
      %v3983 = vld [vmem:[%s9 + $0x38] sm:$0xf]
      %v3984 = vld [vmem:[%s9 + $0x3c] sm:$0xf]
      %v3985 = vld [vmem:[%s9 + $0x40] sm:$0xf]
      %v3986 = vld [vmem:[%s9 + $0x44] sm:$0xf]
      %v3987 = vld [vmem:[%s9 + $0x48] sm:$0xf]
      %v3988 = vld [vmem:[%s9 + $0x4c] sm:$0xf]
      %v3989 = vld [vmem:[%s9 + $0x50] sm:$0xf]
      %v3990 = vld [vmem:[%s9 + $0x54] sm:$0xf]
      %v3991 = vld [vmem:[%s9 + $0x58] sm:$0xf]
      %v3992 = vld [vmem:[%s9 + $0x5c] sm:$0xf]
      %v3993 = vld [vmem:[%s9 + $0x60] sm:$0xf]
      %v3994 = vld [vmem:[%s9 + $0x64] sm:$0xf]
      %v3995 = vld [vmem:[%s9 + $0x68] sm:$0xf]
      %v3996 = vld [vmem:[%s9 + $0x6c] sm:$0xf]
      %v3997 = vld [vmem:[%s9 + $0x70] sm:$0xf]
      %v3998 = vld [vmem:[%s9 + $0x74] sm:$0xf]
      %v3999 = vld [vmem:[%s9 + $0x78] sm:$0xf]
      %v4000 = vld [vmem:[%s9 + $0x7c] sm:$0xf]
      %v4001 = vld [vmem:[%s9 + $0x80] sm:$0xf]
      %v4002 = vld [vmem:[%s9 + $0x84] sm:$0xf]
      %v4003 = vld [vmem:[%s9 + $0x88] sm:$0xf]
      %v4004 = vld [vmem:[%s9 + $0x8c] sm:$0xf]
      %v4005 = vld [vmem:[%s9 + $0x90] sm:$0xf]
      %v4006 = vld [vmem:[%s9 + $0x94] sm:$0xf]
      %v4007 = vld [vmem:[%s9 + $0x98] sm:$0xf]
      %v4008 = vld [vmem:[%s9 + $0x9c] sm:$0xf]
      %v4009 = vld [vmem:[%s9 + $0xa0] sm:$0xf]
      %v4010 = vld [vmem:[%s9 + $0xa4] sm:$0xf]
      %v4011 = vld [vmem:[%s9 + $0xa8] sm:$0xf]
      %v4012 = vld [vmem:[%s9 + $0xac] sm:$0xf]
      %v4013 = vld [vmem:[%s9 + $0xb0] sm:$0xf]
      %v4014 = vld [vmem:[%s9 + $0xb4] sm:$0xf]
      %v4015 = vld [vmem:[%s9 + $0xb8] sm:$0xf]
      %v4016 = vld [vmem:[%s9 + $0xbc] sm:$0xf]
      %v4017 = vld [vmem:[%s9 + $0xc0] sm:$0xf]
      %v4018 = vld [vmem:[%s9 + $0xc4] sm:$0xf]
      %v4019 = vld [vmem:[%s9 + $0xc8] sm:$0xf]
      %v4020 = vld [vmem:[%s9 + $0xcc] sm:$0xf]
      %v4021 = vld [vmem:[%s9 + $0xd0] sm:$0xf]
      %v4022 = vld [vmem:[%s9 + $0xd4] sm:$0xf]
      %v4023 = vld [vmem:[%s9 + $0xd8] sm:$0xf]
      %v4024 = vld [vmem:[%s9 + $0xdc] sm:$0xf]
      %v4025 = vld [vmem:[%s9 + $0xe0] sm:$0xf]
      %v4026 = vld [vmem:[%s9 + $0xe4] sm:$0xf]
      %v4027 = vld [vmem:[%s9 + $0xe8] sm:$0xf]
      %v4028 = vld [vmem:[%s9 + $0xec] sm:$0xf]
      %v4029 = vld [vmem:[%s9 + $0xf0] sm:$0xf]
      %v4030 = vld [vmem:[%s9 + $0xf4] sm:$0xf]
      %v4031 = vld [vmem:[%s9 + $0xf8] sm:$0xf]
      %v4032 = vld [vmem:[%s9 + $0xfc] sm:$0xf]
      %v4033 = vld [vmem:[%s9 + $0x100] sm:$0xf]
      %v4034 = vld [vmem:[%s9 + $0x104] sm:$0xf]
      %v4035 = vld [vmem:[%s9 + $0x108] sm:$0xf]
      %v4036 = vld [vmem:[%s9 + $0x10c] sm:$0xf]
      %v4037 = vld [vmem:[%s9 + $0x110] sm:$0xf]
      %v4038 = vld [vmem:[%s9 + $0x114] sm:$0xf]
      %v4039 = vld [vmem:[%s9 + $0x118] sm:$0xf]
      %v4040 = vld [vmem:[%s9 + $0x11c] sm:$0xf]
      %v4041 = vld [vmem:[%s9 + $0x120] sm:$0xf]
      %v4042 = vld [vmem:[%s9 + $0x124] sm:$0xf]
      %v4043 = vld [vmem:[%s9 + $0x128] sm:$0xf]
      %v4044 = vld [vmem:[%s9 + $0x12c] sm:$0xf]
      %v4045 = vld [vmem:[%s9 + $0x130] sm:$0xf]
      %v4046 = vld [vmem:[%s9 + $0x134] sm:$0xf]
      %v4047 = vld [vmem:[%s9 + $0x138] sm:$0xf]
      %v4048 = vld [vmem:[%s9 + $0x13c] sm:$0xf]
      %v4049 = vld [vmem:[%s9 + $0x140] sm:$0xf]
      %v4050 = vld [vmem:[%s9 + $0x144] sm:$0xf]
      %v4051 = vld [vmem:[%s9 + $0x148] sm:$0xf]
      %v4052 = vld [vmem:[%s9 + $0x14c] sm:$0xf]
      %v4053 = vld [vmem:[%s9 + $0x150] sm:$0xf]
      %v4054 = vld [vmem:[%s9 + $0x154] sm:$0xf]
      %v4055 = vld [vmem:[%s9 + $0x158] sm:$0xf]
      %v4056 = vld [vmem:[%s9 + $0x15c] sm:$0xf]
      %v4057 = vld [vmem:[%s9 + $0x160] sm:$0xf]
      %v4058 = vld [vmem:[%s9 + $0x164] sm:$0xf]
      %v4059 = vld [vmem:[%s9 + $0x168] sm:$0xf]
      %v4060 = vld [vmem:[%s9 + $0x16c] sm:$0xf]
      %v4061 = vld [vmem:[%s9 + $0x170] sm:$0xf]
      %v4062 = vld [vmem:[%s9 + $0x174] sm:$0xf]
      %v4063 = vld [vmem:[%s9 + $0x178] sm:$0xf]
      %v4064 = vld [vmem:[%s9 + $0x17c] sm:$0xf]
      %v4065 = vld [vmem:[%s9 + $0x180] sm:$0xf]
      %v4066 = vld [vmem:[%s9 + $0x184] sm:$0xf]
      %v4067 = vld [vmem:[%s9 + $0x188] sm:$0xf]
      %v4068 = vld [vmem:[%s9 + $0x18c] sm:$0xf]
      %v4069 = vld [vmem:[%s9 + $0x190] sm:$0xf]
      %v4070 = vld [vmem:[%s9 + $0x194] sm:$0xf]
      %v4071 = vld [vmem:[%s9 + $0x198] sm:$0xf]
      %v4072 = vld [vmem:[%s9 + $0x19c] sm:$0xf]
      %v4073 = vld [vmem:[%s9 + $0x1a0] sm:$0xf]
      %v4074 = vld [vmem:[%s9 + $0x1a4] sm:$0xf]
      %v4075 = vld [vmem:[%s9 + $0x1a8] sm:$0xf]
      %v4076 = vld [vmem:[%s9 + $0x1ac] sm:$0xf]
      %v4077 = vld [vmem:[%s9 + $0x1b0] sm:$0xf]
      %v4078 = vld [vmem:[%s9 + $0x1b4] sm:$0xf]
      %v4079 = vld [vmem:[%s9 + $0x1b8] sm:$0xf]
      %v4080 = vld [vmem:[%s9 + $0x1bc] sm:$0xf]
      %v4081 = vld [vmem:[%s9 + $0x1c0] sm:$0xf]
      %v4082 = vld [vmem:[%s9 + $0x1c4] sm:$0xf]
      %v4083 = vld [vmem:[%s9 + $0x1c8] sm:$0xf]
      %v4084 = vld [vmem:[%s9 + $0x1cc] sm:$0xf]
      %v4085 = vld [vmem:[%s9 + $0x1d0] sm:$0xf]
      %v4086 = vld [vmem:[%s9 + $0x1d4] sm:$0xf]
      %v4087 = vld [vmem:[%s9 + $0x1d8] sm:$0xf]
      %v4088 = vld [vmem:[%s9 + $0x1dc] sm:$0xf]
      %v4089 = vld [vmem:[%s9 + $0x1e0] sm:$0xf]
      %v4090 = vld [vmem:[%s9 + $0x1e4] sm:$0xf]
      %v4091 = vld [vmem:[%s9 + $0x1e8] sm:$0xf]
      %v4092 = vld [vmem:[%s9 + $0x1ec] sm:$0xf]
      %v4093 = vld [vmem:[%s9 + $0x1f0] sm:$0xf]
      %v4094 = vld [vmem:[%s9 + $0x1f4] sm:$0xf]
      %v4095 = vld [vmem:[%s9 + $0x1f8] sm:$0xf]
      %v4096 = vld [vmem:[%s9 + $0x1fc] sm:$0xf]
      %v4097 = vld [vmem:[%s10] sm:$0x1]
      %v4099 = vlaneseq
      %v4100 = vshrl.u32 %v4099, 7
      %v4101 = vsub.s32 0, %v4100
      %v4102 = vrot.slane %v4097, %v4101
      %v4232 = vunpack.c.l.b16 %v3969
      %v4233 = vunpack.c.l.b16 %v3970
      %v4234 = vunpack.c.l.b16 %v3971
      %v4235 = vunpack.c.l.b16 %v3972
      %v4236 = vunpack.c.l.b16 %v3973
      %v4237 = vunpack.c.l.b16 %v3974
      %v4238 = vunpack.c.l.b16 %v3975
      %v4239 = vunpack.c.l.b16 %v3976
      %v4240 = vunpack.c.l.b16 %v3977
      %v4241 = vunpack.c.l.b16 %v3978
      %v4242 = vunpack.c.l.b16 %v3979
      %v4243 = vunpack.c.l.b16 %v3980
      %v4244 = vunpack.c.l.b16 %v3981
      %v4245 = vunpack.c.l.b16 %v3982
      %v4246 = vunpack.c.l.b16 %v3983
      %v4247 = vunpack.c.l.b16 %v3984
      %v4248 = vunpack.c.l.b16 %v3985
      %v4249 = vunpack.c.l.b16 %v3986
      %v4250 = vunpack.c.l.b16 %v3987
      %v4251 = vunpack.c.l.b16 %v3988
      %v4252 = vunpack.c.l.b16 %v3989
      %v4253 = vunpack.c.l.b16 %v3990
      %v4254 = vunpack.c.l.b16 %v3991
      %v4255 = vunpack.c.l.b16 %v3992
      %v4256 = vunpack.c.l.b16 %v3993
      %v4257 = vunpack.c.l.b16 %v3994
      %v4258 = vunpack.c.l.b16 %v3995
      %v4259 = vunpack.c.l.b16 %v3996
      %v4260 = vunpack.c.l.b16 %v3997
      %v4261 = vunpack.c.l.b16 %v3998
      %v4262 = vunpack.c.l.b16 %v3999
      %v4263 = vunpack.c.l.b16 %v4000
      %v4264 = vunpack.c.l.b16 %v4001
      %v4265 = vunpack.c.l.b16 %v4002
      %v4266 = vunpack.c.l.b16 %v4003
      %v4267 = vunpack.c.l.b16 %v4004
      %v4268 = vunpack.c.l.b16 %v4005
      %v4269 = vunpack.c.l.b16 %v4006
      %v4270 = vunpack.c.l.b16 %v4007
      %v4271 = vunpack.c.l.b16 %v4008
      %v4272 = vunpack.c.l.b16 %v4009
      %v4273 = vunpack.c.l.b16 %v4010
      %v4274 = vunpack.c.l.b16 %v4011
      %v4275 = vunpack.c.l.b16 %v4012
      %v4276 = vunpack.c.l.b16 %v4013
      %v4277 = vunpack.c.l.b16 %v4014
      %v4278 = vunpack.c.l.b16 %v4015
      %v4279 = vunpack.c.l.b16 %v4016
      %v4280 = vunpack.c.l.b16 %v4017
      %v4281 = vunpack.c.l.b16 %v4018
      %v4282 = vunpack.c.l.b16 %v4019
      %v4283 = vunpack.c.l.b16 %v4020
      %v4284 = vunpack.c.l.b16 %v4021
      %v4285 = vunpack.c.l.b16 %v4022
      %v4286 = vunpack.c.l.b16 %v4023
      %v4287 = vunpack.c.l.b16 %v4024
      %v4288 = vunpack.c.l.b16 %v4025
      %v4289 = vunpack.c.l.b16 %v4026
      %v4290 = vunpack.c.l.b16 %v4027
      %v4291 = vunpack.c.l.b16 %v4028
      %v4292 = vunpack.c.l.b16 %v4029
      %v4293 = vunpack.c.l.b16 %v4030
      %v4294 = vunpack.c.l.b16 %v4031
      %v4295 = vunpack.c.l.b16 %v4032
      %v4296 = vunpack.c.l.b16 %v4033
      %v4297 = vunpack.c.l.b16 %v4034
      %v4298 = vunpack.c.l.b16 %v4035
      %v4299 = vunpack.c.l.b16 %v4036
      %v4300 = vunpack.c.l.b16 %v4037
      %v4301 = vunpack.c.l.b16 %v4038
      %v4302 = vunpack.c.l.b16 %v4039
      %v4303 = vunpack.c.l.b16 %v4040
      %v4304 = vunpack.c.l.b16 %v4041
      %v4305 = vunpack.c.l.b16 %v4042
      %v4306 = vunpack.c.l.b16 %v4043
      %v4307 = vunpack.c.l.b16 %v4044
      %v4308 = vunpack.c.l.b16 %v4045
      %v4309 = vunpack.c.l.b16 %v4046
      %v4310 = vunpack.c.l.b16 %v4047
      %v4311 = vunpack.c.l.b16 %v4048
      %v4312 = vunpack.c.l.b16 %v4049
      %v4313 = vunpack.c.l.b16 %v4050
      %v4314 = vunpack.c.l.b16 %v4051
      %v4315 = vunpack.c.l.b16 %v4052
      %v4316 = vunpack.c.l.b16 %v4053
      %v4317 = vunpack.c.l.b16 %v4054
      %v4318 = vunpack.c.l.b16 %v4055
      %v4319 = vunpack.c.l.b16 %v4056
      %v4320 = vunpack.c.l.b16 %v4057
      %v4321 = vunpack.c.l.b16 %v4058
      %v4322 = vunpack.c.l.b16 %v4059
      %v4323 = vunpack.c.l.b16 %v4060
      %v4324 = vunpack.c.l.b16 %v4061
      %v4325 = vunpack.c.l.b16 %v4062
      %v4326 = vunpack.c.l.b16 %v4063
      %v4327 = vunpack.c.l.b16 %v4064
      %v4328 = vunpack.c.l.b16 %v4065
      %v4329 = vunpack.c.l.b16 %v4066
      %v4330 = vunpack.c.l.b16 %v4067
      %v4331 = vunpack.c.l.b16 %v4068
      %v4332 = vunpack.c.l.b16 %v4069
      %v4333 = vunpack.c.l.b16 %v4070
      %v4334 = vunpack.c.l.b16 %v4071
      %v4335 = vunpack.c.l.b16 %v4072
      %v4336 = vunpack.c.l.b16 %v4073
      %v4337 = vunpack.c.l.b16 %v4074
      %v4338 = vunpack.c.l.b16 %v4075
      %v4339 = vunpack.c.l.b16 %v4076
      %v4340 = vunpack.c.l.b16 %v4077
      %v4341 = vunpack.c.l.b16 %v4078
      %v4342 = vunpack.c.l.b16 %v4079
      %v4343 = vunpack.c.l.b16 %v4080
      %v4344 = vunpack.c.l.b16 %v4081
      %v4345 = vunpack.c.l.b16 %v4082
      %v4346 = vunpack.c.l.b16 %v4083
      %v4347 = vunpack.c.l.b16 %v4084
      %v4348 = vunpack.c.l.b16 %v4085
      %v4349 = vunpack.c.l.b16 %v4086
      %v4350 = vunpack.c.l.b16 %v4087
      %v4351 = vunpack.c.l.b16 %v4088
      %v4352 = vunpack.c.l.b16 %v4089
      %v4353 = vunpack.c.l.b16 %v4090
      %v4354 = vunpack.c.l.b16 %v4091
      %v4355 = vunpack.c.l.b16 %v4092
      %v4356 = vunpack.c.l.b16 %v4093
      %v4357 = vunpack.c.l.b16 %v4094
      %v4358 = vunpack.c.l.b16 %v4095
      %v4359 = vunpack.c.l.b16 %v4096
      %v4360 = vpack.c.b16 %v4233, %v4232
      %v4361 = vpack.c.b16 %v4235, %v4234
      %v4362 = vpack.c.b16 %v4237, %v4236
      %v4363 = vpack.c.b16 %v4239, %v4238
      %v4364 = vpack.c.b16 %v4241, %v4240
      %v4365 = vpack.c.b16 %v4243, %v4242
      %v4366 = vpack.c.b16 %v4245, %v4244
      %v4367 = vpack.c.b16 %v4247, %v4246
      %v4368 = vpack.c.b16 %v4249, %v4248
      %v4369 = vpack.c.b16 %v4251, %v4250
      %v4370 = vpack.c.b16 %v4253, %v4252
      %v4371 = vpack.c.b16 %v4255, %v4254
      %v4372 = vpack.c.b16 %v4257, %v4256
      %v4373 = vpack.c.b16 %v4259, %v4258
      %v4374 = vpack.c.b16 %v4261, %v4260
      %v4375 = vpack.c.b16 %v4263, %v4262
      %v4376 = vpack.c.b16 %v4265, %v4264
      %v4377 = vpack.c.b16 %v4267, %v4266
      %v4378 = vpack.c.b16 %v4269, %v4268
      %v4379 = vpack.c.b16 %v4271, %v4270
      %v4380 = vpack.c.b16 %v4273, %v4272
      %v4381 = vpack.c.b16 %v4275, %v4274
      %v4382 = vpack.c.b16 %v4277, %v4276
      %v4383 = vpack.c.b16 %v4279, %v4278
      %v4384 = vpack.c.b16 %v4281, %v4280
      %v4385 = vpack.c.b16 %v4283, %v4282
      %v4386 = vpack.c.b16 %v4285, %v4284
      %v4387 = vpack.c.b16 %v4287, %v4286
      %v4388 = vpack.c.b16 %v4289, %v4288
      %v4389 = vpack.c.b16 %v4291, %v4290
      %v4390 = vpack.c.b16 %v4293, %v4292
      %v4391 = vpack.c.b16 %v4295, %v4294
      %v4392 = vpack.c.b16 %v4297, %v4296
      %v4393 = vpack.c.b16 %v4299, %v4298
      %v4394 = vpack.c.b16 %v4301, %v4300
      %v4395 = vpack.c.b16 %v4303, %v4302
      %v4396 = vpack.c.b16 %v4305, %v4304
      %v4397 = vpack.c.b16 %v4307, %v4306
      %v4398 = vpack.c.b16 %v4309, %v4308
      %v4399 = vpack.c.b16 %v4311, %v4310
      %v4400 = vpack.c.b16 %v4313, %v4312
      %v4401 = vpack.c.b16 %v4315, %v4314
      %v4402 = vpack.c.b16 %v4317, %v4316
      %v4403 = vpack.c.b16 %v4319, %v4318
      %v4404 = vpack.c.b16 %v4321, %v4320
      %v4405 = vpack.c.b16 %v4323, %v4322
      %v4406 = vpack.c.b16 %v4325, %v4324
      %v4407 = vpack.c.b16 %v4327, %v4326
      %v4408 = vpack.c.b16 %v4329, %v4328
      %v4409 = vpack.c.b16 %v4331, %v4330
      %v4410 = vpack.c.b16 %v4333, %v4332
      %v4411 = vpack.c.b16 %v4335, %v4334
      %v4412 = vpack.c.b16 %v4337, %v4336
      %v4413 = vpack.c.b16 %v4339, %v4338
      %v4414 = vpack.c.b16 %v4341, %v4340
      %v4415 = vpack.c.b16 %v4343, %v4342
      %v4416 = vpack.c.b16 %v4345, %v4344
      %v4417 = vpack.c.b16 %v4347, %v4346
      %v4418 = vpack.c.b16 %v4349, %v4348
      %v4419 = vpack.c.b16 %v4351, %v4350
      %v4420 = vpack.c.b16 %v4353, %v4352
      %v4421 = vpack.c.b16 %v4355, %v4354
      %v4422 = vpack.c.b16 %v4357, %v4356
      %v4423 = vpack.c.b16 %v4359, %v4358
      %4488 = vmatprep.subr.bf16.mxu0 0
      %4489 = vmatpush1.bf16.msra.mxu0 %v4360
      %4490 = vmatprep.subr.bf16.mxu0 0
      %4491 = vmatpush1.bf16.msra.mxu0 %v4361
      %4492 = vmatprep.subr.bf16.mxu0 0
      %4493 = vmatpush1.bf16.msra.mxu0 %v4362
      %4494 = vmatprep.subr.bf16.mxu0 0
      %4495 = vmatpush1.bf16.msra.mxu0 %v4363
      %4496 = vmatprep.subr.bf16.mxu0 0
      %4497 = vmatpush1.bf16.msra.mxu0 %v4364
      %4498 = vmatprep.subr.bf16.mxu0 0
      %4499 = vmatpush1.bf16.msra.mxu0 %v4365
      %4500 = vmatprep.subr.bf16.mxu0 0
      %4501 = vmatpush1.bf16.msra.mxu0 %v4366
      %4502 = vmatprep.subr.bf16.mxu0 0
      %4503 = vmatpush1.bf16.msra.mxu0 %v4367
      %4504 = vmatprep.subr.bf16.mxu0 0
      %4505 = vmatpush1.bf16.msra.mxu0 %v4368
      %4506 = vmatprep.subr.bf16.mxu0 0
      %4507 = vmatpush1.bf16.msra.mxu0 %v4369
      %4508 = vmatprep.subr.bf16.mxu0 0
      %4509 = vmatpush1.bf16.msra.mxu0 %v4370
      %4510 = vmatprep.subr.bf16.mxu0 0
      %4511 = vmatpush1.bf16.msra.mxu0 %v4371
      %4512 = vmatprep.subr.bf16.mxu0 0
      %4513 = vmatpush1.bf16.msra.mxu0 %v4372
      %4514 = vmatprep.subr.bf16.mxu0 0
      %4515 = vmatpush1.bf16.msra.mxu0 %v4373
      %4516 = vmatprep.subr.bf16.mxu0 0
      %4517 = vmatpush1.bf16.msra.mxu0 %v4374
      %4518 = vmatprep.subr.bf16.mxu0 0
      %4519 = vmatpush1.bf16.msra.mxu0 %v4375
      %4520 = vmatprep.mubr.bf16.mxu0 %v3962
      %4521 = vmatmul.mubr.bf16.gmra.mrb[0].mxu0 %v3961
      %v4522 = vpop.f32.mrb[0].mxu0
      %v4523 = vadd.f32 %v4102, %v4522
      %v4524 = vpop.f32.mrb[0].mxu0
      %v4525 = vpop.f32.mrb[0].mxu0
      %v4526 = vadd.f32 %v4102, %v4525
      %v4527 = vpop.f32.mrb[0].mxu0
      %4528 = vdwg.mxu0
      %4529 = vmatprep.subr.bf16.mxu0 0
      %4530 = vmatpush1.bf16.msra.mxu0 %v4376
      %4531 = vmatprep.subr.bf16.mxu0 0
      %4532 = vmatpush1.bf16.msra.mxu0 %v4377
      %4533 = vmatprep.subr.bf16.mxu0 0
      %4534 = vmatpush1.bf16.msra.mxu0 %v4378
      %4535 = vmatprep.subr.bf16.mxu0 0
      %4536 = vmatpush1.bf16.msra.mxu0 %v4379
      %4537 = vmatprep.subr.bf16.mxu0 0
      %4538 = vmatpush1.bf16.msra.mxu0 %v4380
      %4539 = vmatprep.subr.bf16.mxu0 0
      %4540 = vmatpush1.bf16.msra.mxu0 %v4381
      %4541 = vmatprep.subr.bf16.mxu0 0
      %4542 = vmatpush1.bf16.msra.mxu0 %v4382
      %4543 = vmatprep.subr.bf16.mxu0 0
      %4544 = vmatpush1.bf16.msra.mxu0 %v4383
      %4545 = vmatprep.subr.bf16.mxu0 0
      %4546 = vmatpush1.bf16.msra.mxu0 %v4384
      %4547 = vmatprep.subr.bf16.mxu0 0
      %4548 = vmatpush1.bf16.msra.mxu0 %v4385
      %4549 = vmatprep.subr.bf16.mxu0 0
      %4550 = vmatpush1.bf16.msra.mxu0 %v4386
      %4551 = vmatprep.subr.bf16.mxu0 0
      %4552 = vmatpush1.bf16.msra.mxu0 %v4387
      %4553 = vmatprep.subr.bf16.mxu0 0
      %4554 = vmatpush1.bf16.msra.mxu0 %v4388
      %4555 = vmatprep.subr.bf16.mxu0 0
      %4556 = vmatpush1.bf16.msra.mxu0 %v4389
      %4557 = vmatprep.subr.bf16.mxu0 0
      %4558 = vmatpush1.bf16.msra.mxu0 %v4390
      %4559 = vmatprep.subr.bf16.mxu0 0
      %4560 = vmatpush1.bf16.msra.mxu0 %v4391
      %4561 = vmatprep.mubr.bf16.mxu0 %v3964
      %4562 = vmatmul.mubr.bf16.gmra.mrb[0].mxu0 %v3963
      %v4563 = vpop.f32.mrb[0].mxu0
      %v4564 = vadd.f32 %v4523, %v4563
      %v4565 = vpop.f32.mrb[0].mxu0
      %v4566 = vpop.f32.mrb[0].mxu0
      %v4567 = vadd.f32 %v4526, %v4566
      %v4568 = vpop.f32.mrb[0].mxu0
      %4569 = vdwg.mxu0
      %4570 = vmatprep.subr.bf16.mxu0 0
      %4571 = vmatpush1.bf16.msra.mxu0 %v4392
      %4572 = vmatprep.subr.bf16.mxu0 0
      %4573 = vmatpush1.bf16.msra.mxu0 %v4393
      %4574 = vmatprep.subr.bf16.mxu0 0
      %4575 = vmatpush1.bf16.msra.mxu0 %v4394
      %4576 = vmatprep.subr.bf16.mxu0 0
      %4577 = vmatpush1.bf16.msra.mxu0 %v4395
      %4578 = vmatprep.subr.bf16.mxu0 0
      %4579 = vmatpush1.bf16.msra.mxu0 %v4396
      %4580 = vmatprep.subr.bf16.mxu0 0
      %4581 = vmatpush1.bf16.msra.mxu0 %v4397
      %4582 = vmatprep.subr.bf16.mxu0 0
      %4583 = vmatpush1.bf16.msra.mxu0 %v4398
      %4584 = vmatprep.subr.bf16.mxu0 0
      %4585 = vmatpush1.bf16.msra.mxu0 %v4399
      %4586 = vmatprep.subr.bf16.mxu0 0
      %4587 = vmatpush1.bf16.msra.mxu0 %v4400
      %4588 = vmatprep.subr.bf16.mxu0 0
      %4589 = vmatpush1.bf16.msra.mxu0 %v4401
      %4590 = vmatprep.subr.bf16.mxu0 0
      %4591 = vmatpush1.bf16.msra.mxu0 %v4402
      %4592 = vmatprep.subr.bf16.mxu0 0
      %4593 = vmatpush1.bf16.msra.mxu0 %v4403
      %4594 = vmatprep.subr.bf16.mxu0 0
      %4595 = vmatpush1.bf16.msra.mxu0 %v4404
      %4596 = vmatprep.subr.bf16.mxu0 0
      %4597 = vmatpush1.bf16.msra.mxu0 %v4405
      %4598 = vmatprep.subr.bf16.mxu0 0
      %4599 = vmatpush1.bf16.msra.mxu0 %v4406
      %4600 = vmatprep.subr.bf16.mxu0 0
      %4601 = vmatpush1.bf16.msra.mxu0 %v4407
      %4602 = vmatprep.mubr.bf16.mxu0 %v3966
      %4603 = vmatmul.mubr.bf16.gmra.mrb[0].mxu0 %v3965
      %v4604 = vpop.f32.mrb[0].mxu0
      %v4605 = vadd.f32 %v4564, %v4604
      %v4606 = vpop.f32.mrb[0].mxu0
      %v4607 = vpop.f32.mrb[0].mxu0
      %v4608 = vadd.f32 %v4567, %v4607
      %v4609 = vpop.f32.mrb[0].mxu0
      %4610 = vdwg.mxu0
      %4611 = vmatprep.subr.bf16.mxu0 0
      %4612 = vmatpush1.bf16.msra.mxu0 %v4408
      %4613 = vmatprep.subr.bf16.mxu0 0
      %4614 = vmatpush1.bf16.msra.mxu0 %v4409
      %4615 = vmatprep.subr.bf16.mxu0 0
      %4616 = vmatpush1.bf16.msra.mxu0 %v4410
      %4617 = vmatprep.subr.bf16.mxu0 0
      %4618 = vmatpush1.bf16.msra.mxu0 %v4411
      %4619 = vmatprep.subr.bf16.mxu0 0
      %4620 = vmatpush1.bf16.msra.mxu0 %v4412
      %4621 = vmatprep.subr.bf16.mxu0 0
      %4622 = vmatpush1.bf16.msra.mxu0 %v4413
      %4623 = vmatprep.subr.bf16.mxu0 0
      %4624 = vmatpush1.bf16.msra.mxu0 %v4414
      %4625 = vmatprep.subr.bf16.mxu0 0
      %4626 = vmatpush1.bf16.msra.mxu0 %v4415
      %4627 = vmatprep.subr.bf16.mxu0 0
      %4628 = vmatpush1.bf16.msra.mxu0 %v4416
      %4629 = vmatprep.subr.bf16.mxu0 0
      %4630 = vmatpush1.bf16.msra.mxu0 %v4417
      %4631 = vmatprep.subr.bf16.mxu0 0
      %4632 = vmatpush1.bf16.msra.mxu0 %v4418
      %4633 = vmatprep.subr.bf16.mxu0 0
      %4634 = vmatpush1.bf16.msra.mxu0 %v4419
      %4635 = vmatprep.subr.bf16.mxu0 0
      %4636 = vmatpush1.bf16.msra.mxu0 %v4420
      %4637 = vmatprep.subr.bf16.mxu0 0
      %4638 = vmatpush1.bf16.msra.mxu0 %v4421
      %4639 = vmatprep.subr.bf16.mxu0 0
      %4640 = vmatpush1.bf16.msra.mxu0 %v4422
      %4641 = vmatprep.subr.bf16.mxu0 0
      %4642 = vmatpush1.bf16.msra.mxu0 %v4423
      %4643 = vmatprep.mubr.bf16.mxu0 %v3968
      %4644 = vmatmul.mubr.bf16.gmra.mrb[0].mxu0 %v3967
      %v4645 = vpop.f32.mrb[0].mxu0
      %v4646 = vadd.f32 %v4605, %v4645
      %v4647 = vpop.f32.mrb[0].mxu0
      %v4648 = vpop.f32.mrb[0].mxu0
      %v4649 = vadd.f32 %v4608, %v4648
      %v4650 = vpop.f32.mrb[0].mxu0
      %4651 = vdwg.mxu0
      %v4652 = vlaneseq
      %v4653 = vand.u32 %v4652, 127
      %vm4654 = vcmp.lt.s32.totalorder %v4653, 6
      %v4655 = vsel %vm4654, %v4646, -1e+30
      %v4656 = vsel %vm4654, %v4649, -1e+30
      %4657 = vmax.xlane.f32.xlu0 %v4655
      %v4658 = vpop.xlane.xlu0 %4657
      %4659 = vmax.xlane.f32.xlu0 %v4656
      %v4660 = vpop.xlane.xlu0 %4659
      %v4661 = vsub.f32 %v4655, %v4658
      %v4662 = vsub.f32 %v4656, %v4660
      %v4663 = vmul.f32 %v4661, 1.442695
      %v4664 = vpow.pop %v4663
      %v4665 = vmul.f32 %v4662, 1.442695
      %v4666 = vpow.pop %v4665
      %v4667 = vsel %vm4654, %v4664, 0.0
      %v4668 = vsel %vm4654, %v4666, 0.0
      %4669 = vadd.xlane.f32.xlu0 %v4667
      %v4670 = vpop.xlane.xlu0 %4669
      %4671 = vadd.xlane.f32.xlu0 %v4668
      %v4672 = vpop.xlane.xlu0 %4671
      %v4673 = vrcp.pop %v4670
      %v4674 = vmul.f32 %v4667, %v4673
      %v4675 = vrcp.pop %v4672
      %v4676 = vmul.f32 %v4668, %v4675
      %v4677 = vsel %vm4654, %v4674, %v4646
      %v4678 = vsel %vm4654, %v4676, %v4649
      %4679 = vst [vmem:[%s391] sm:$0xff] %v4677
      %4680 = vst [vmem:[%s391 + $0x8] sm:$0xff] %v4678
      %s4681 = smul.u32 2, %s22
      %p4682 = scmp.lt.s32.totalorder %s4681, 3
      %s4683 = scalar_select %p4682, %s4681, 3
      %s4684 = smul.addr %s4683, 8
      %s4685 = scalar_lea.vmem %s11, %s4684
      // Predicated region
      $region72: #{_lambda_.1} parent=63 // pred_check
        %p4686 = pneg %p276
      $region73: #{_lambda_.1} parent=63 // pred_check_branch
        %4688 = sbr.rel (%p4686) target = $region75
      $region74: #{_lambda_.1} parent=63 // pred_region
        %s4689 = smul.u32 2, %s22
      $region75: #{_lambda_.1} parent=63 // pred_fallthru
        _
    $region64: #{_lambda_.1} parent=5 // pred_fallthru
      _
    %p4690 = scmp.le.s32.totalorder 2, %s17
    // Predicated region
    $region76: #{_lambda_.1} parent=5 // pred_check
      %p4691 = pneg %p4690
    $region77: #{_lambda_.1} parent=5 // pred_check_branch
      %4693 = sbr.rel (%p4691) target = $region79
    $region78: #{_lambda_.1} parent=5 // pred_region
      %s4694 = ssub.s32 %s17, 2
      // Predicated region
      $region80: #{_lambda_.1} parent=78 // pred_check
        %p4695 = pneg %p282
      $region81: #{_lambda_.1} parent=78 // pred_check_branch
        %4697 = sbr.rel (%p4695) target = $region83
      $region82: #{_lambda_.1} parent=78 // pred_region
        %s4698 = smul.u32 2, %s23
        %p4699 = scmp.lt.s32.totalorder %s4698, 3
        %s4700 = scalar_select %p4699, %s4698, 3
        %s4701 = smul.addr %s4700, 8
        %s4702 = scalar_lea.vmem %s11, %s4701
      $region83: #{_lambda_.1} parent=78 // pred_fallthru
        _
    $region79: #{_lambda_.1} parent=5 // pred_fallthru
      _
  $region6: #{_lambda_.1} parent=0 // loop_footer
    %s21 = sadd.s32 1, %s17
  $region7: #{_lambda_.1} parent=0 // loop_footer_branch
    %16 = sbr.rel target = $region3
  $region8: #{_lambda_.1} parent=0 // loop_exit
    _

</llo_original>
